<compile_context>
chip_gen: v7x
topology: tpu7x:2x2x1
jax: 0.10.0
libtpu: 0.0.40
codegen_flags: <defaults>
</compile_context>

<pallas_src>
import functools

import jax
import jax.numpy as jnp
from jax.experimental import pallas as pl
from jax.experimental.pallas import tpu as pltpu


# ---------------------------------------------------------------------------
# Fused Pallas kernel: Conv3d(64->16,k3,p1)+BN+ReLU+MaxPool(2,1,1)
#                      -> Conv3d(16->16,k3,p1)+BN+ReLU+MaxPool(2,1,1)
#                      -> Conv3d(16->1,k1) -> Softmax2d
# One grid step == one batch element.
# ---------------------------------------------------------------------------

def _detector_kernel(x_ref, b1_ref, s1_ref, b2_ref, s2_ref, p3_ref, b3_ref,
                     o_ref, xpad_ref, ypad_ref, lhs1_ref, lhs2_ref,
                     *, D, H, W, C0, C1):
    WC0 = W * C0            # lane width of the packed (w, cin) input rows   (= 512)
    WC1 = W * C1            # lane width of the packed (w, c) activations    (= 128)
    P1 = D // 2             # pooled depths after block 1                    (= 2)

    # Zero the padded scratches every step (cheap; and correct when the two grid steps
    # land on different TensorCores, where a program_id==0 one-time init would be wrong).
    xpad_ref[...] = jnp.zeros_like(xpad_ref)
    ypad_ref[...] = jnp.zeros_like(ypad_ref)

    # Conv3d padding=1 along depth/height: copy the input block into the zero border.
    # (Padding along W is folded into the banded RHS instead, so K stays W*Cin.)
    for d in range(D):
        xpad_ref[d + 1, 1:H + 1, :] = x_ref[d]

    # ---- Block 1: build the (D*H, 9*W*C0) im2col LHS in VMEM (all pre-pool depths
    # stacked along M, the 9 (kd,kh) taps concatenated along K), then ONE MXU matmul.
    for d_out in range(D):
        for kd in range(3):
            for kh in range(3):
                tap = kd * 3 + kh
                lhs1_ref[d_out * H:(d_out + 1) * H, tap * WC0:(tap + 1) * WC0] = \
                    xpad_ref[d_out + kd, kh:kh + H, :]

    a1 = jnp.dot(lhs1_ref[...], b1_ref[...], preferred_element_type=jnp.float32)
    y1 = jnp.maximum(a1 + s1_ref[...], 0.0)                 # folded-BN shift + ReLU
    # MaxPool3d((2,1,1)): rows are depth-major, so pool adjacent H-row groups.
    pooled1 = [jnp.maximum(y1[2 * p * H:(2 * p + 1) * H, :],
                           y1[(2 * p + 1) * H:(2 * p + 2) * H, :]).astype(jnp.bfloat16)
               for p in range(P1)]

    # ---- Block 2: same structure, fed from the in-VMEM block-1 activations.
    for p in range(P1):
        ypad_ref[p + 1, 1:H + 1, :] = pooled1[p]
    for d_out in range(P1):
        for kd in range(3):
            for kh in range(3):
                tap = kd * 3 + kh
                lhs2_ref[d_out * H:(d_out + 1) * H, tap * WC1:(tap + 1) * WC1] = \
                    ypad_ref[d_out + kd, kh:kh + H, :]

    a2 = jnp.dot(lhs2_ref[...], b2_ref[...], preferred_element_type=jnp.float32)
    y2 = jnp.maximum(a2 + s2_ref[...], 0.0)
    pooled2 = jnp.maximum(y2[0:H, :], y2[H:2 * H, :])        # (H, W*C1); D // 4 == 1

    # ---- Head: Conv3d(16 -> 1, k=1) as a block-diagonal projection over the packed
    # (w, c) lanes, then nn.Softmax2d.  Softmax over a single channel is identically 1,
    # so the exp/divide are removed (per review); (s - s) + 1 reproduces the exact
    # PyTorch output, including NaN/Inf propagation.
    s = jnp.dot(pooled2, p3_ref[...], preferred_element_type=jnp.float32) + b3_ref[...]
    o_ref[...] = (s - s) + 1.0


# ---------------------------------------------------------------------------
# pallas_call plumbing
# ---------------------------------------------------------------------------

def _fused_detector_call(x_packed, params, D, H, W, C0, C1):
    N = x_packed.shape[0]

    def const_spec(arr):
        # Full-array block with a constant index -> fetched once per core, never refetched.
        return pl.BlockSpec(arr.shape, lambda n, _nd=arr.ndim: (0,) * _nd)

    kernel = functools.partial(_detector_kernel, D=D, H=H, W=W, C0=C0, C1=C1)

    return pl.pallas_call(
        kernel,
        out_shape=jax.ShapeDtypeStruct((N, H, W), jnp.float32),
        grid_spec=pltpu.PrefetchScalarGridSpec(
            num_scalar_prefetch=0,
            grid=(N,),
            in_specs=[
                pl.BlockSpec((None, D, H, W * C0), lambda n: (n, 0, 0, 0)),
                const_spec(params["B1"]), const_spec(params["shift1"]),
                const_spec(params["B2"]), const_spec(params["shift2"]),
                const_spec(params["P3"]), const_spec(params["b3"]),
            ],
            out_specs=pl.BlockSpec((None, H, W), lambda n: (n, 0, 0)),
            scratch_shapes=[
                pltpu.VMEM((D + 2, H + 2, W * C0), jnp.bfloat16),       # padded input
                pltpu.VMEM((D // 2 + 2, H + 2, W * C1), jnp.bfloat16),  # padded block-1 act
                pltpu.VMEM((D * H, 9 * W * C0), jnp.bfloat16),          # block-1 im2col LHS
                pltpu.VMEM(((D // 2) * H, 9 * W * C1), jnp.bfloat16),   # block-2 im2col LHS
            ],
        ),
        compiler_params=pltpu.CompilerParams(
            dimension_semantics=("parallel",)),
    )(x_packed, params["B1"], params["shift1"], params["B2"], params["shift2"],
      params["P3"], params["b3"])


@jax.jit
def softmax_spatial_detector(x_ncdhw, params):
    """Input (N, 64, D, H, W) NCDHW -> output (N, 1, 1, H, W) (post-Softmax2d).

    The PyTorch module's final `.view(b, t, 1, h, w)` is only shape-consistent when
    depth // 4 == 1, so D must be 4.
    """
    N, C0, D, H, W = x_ncdhw.shape
    C1 = 16
    assert C0 == 64 and D == 4, "expects 64 input channels and depth == 4"
    assert params["B1"].shape == (9 * W * C0, W * C1), "params were built for a different W"

    # The only wrapper ops: NCDHW -> (N, D, H, W*Cin) channels-last lane-packed bf16.
    # Padding and all intermediates stay inside the single kernel.
    x = jnp.transpose(x_ncdhw, (0, 2, 3, 4, 1)).reshape(N, D, H, W * C0).astype(jnp.bfloat16)

    sm = _fused_detector_call(x, params, D, H, W, C0, C1)    # (N, H, W)
    # PyTorch: sd.view(-1, 1, h, w) -> Softmax2d -> view(b, t=1, 1, h, w).
    return sm.reshape(N, 1, 1, H, W)


# ---------------------------------------------------------------------------
# Parameter preparation (trace-time folding; plain JAX)
# ---------------------------------------------------------------------------

def fold_bn_into_conv(w_pt, bias, gamma, beta, mean, var, eps=1e-5):
    """PyTorch Conv3d weight (Cout,Cin,3,3,3) + eval-mode BN -> ((3,3,3,Cin,Cout), (Cout,))."""
    scale = gamma / jnp.sqrt(var + eps)
    w = jnp.transpose(w_pt, (2, 3, 4, 1, 0)) * scale          # BN scale folded into weights
    shift = (bias - mean) * scale + beta
    return w, shift


def build_banded_rhs(w, W):
    """(3,3,3,Cin,Cout) -> (9*W*Cin, W*Cout) banded RHS.

    The kw taps and the W axis are folded into K/N; out-of-range kw taps are simply
    omitted, which implements the conv's zero padding along W without padding the input.
    """
    _, _, _, cin, cout = w.shape
    B = jnp.zeros((9, W * cin, W * cout), jnp.float32)
    for kd in range(3):
        for kh in range(3):
            for kw in range(3):
                for wo in range(W):
                    wi = wo + kw - 1
                    if 0 <= wi < W:
                        B = B.at[kd * 3 + kh,
                                 wi * cin:(wi + 1) * cin,
                                 wo * cout:(wo + 1) * cout].set(w[kd, kh, kw])
    return B.reshape(9 * W * cin, W * cout)


def prepare_params(raw, W):
    w1, s1 = fold_bn_into_conv(raw["w1"], raw["b1"], raw["g1"], raw["be1"], raw["m1"], raw["v1"])
    w2, s2 = fold_bn_into_conv(raw["w2"], raw["b2"], raw["g2"], raw["be2"], raw["m2"], raw["v2"])
    # Final 1x1x1 conv (16 -> 1) as a block-diagonal projector over the packed (w, c) lanes.
    w3 = raw["w3"].reshape(16)
    p3 = jnp.zeros((W * 16, W), jnp.float32)
    for wo in range(W):
        p3 = p3.at[wo * 16:(wo + 1) * 16, wo].set(w3)
    return {
        "B1": build_banded_rhs(w1, W).astype(jnp.bfloat16),
        "shift1": jnp.tile(s1, W).reshape(1, W * 16).astype(jnp.float32),
        "B2": build_banded_rhs(w2, W).astype(jnp.bfloat16),
        "shift2": jnp.tile(s2, W).reshape(1, W * 16).astype(jnp.float32),
        "P3": p3,
        "b3": raw["b3"].reshape(1, 1).astype(jnp.float32),
    }


def init_raw_params(key):
    ks = jax.random.split(key, 14)
    p = {}
    p["w1"] = jax.random.normal(ks[0], (16, 64, 3, 3, 3), jnp.float32) * 0.05   # Conv3d(64,16,k3,p1)
    p["b1"] = jax.random.normal(ks[1], (16,), jnp.float32) * 0.05
    p["g1"] = 1.0 + 0.1 * jax.random.normal(ks[2], (16,), jnp.float32)          # BatchNorm3d(16)
    p["be1"] = 0.1 * jax.random.normal(ks[3], (16,), jnp.float32)
    p["m1"] = 0.1 * jax.random.normal(ks[4], (16,), jnp.float32)
    p["v1"] = jax.random.uniform(ks[5], (16,), jnp.float32, 0.5, 1.5)
    p["w2"] = jax.random.normal(ks[6], (16, 16, 3, 3, 3), jnp.float32) * 0.05   # Conv3d(16,16,k3,p1)
    p["b2"] = jax.random.normal(ks[7], (16,), jnp.float32) * 0.05
    p["g2"] = 1.0 + 0.1 * jax.random.normal(ks[8], (16,), jnp.float32)          # BatchNorm3d(16)
    p["be2"] = 0.1 * jax.random.normal(ks[9], (16,), jnp.float32)
    p["m2"] = 0.1 * jax.random.normal(ks[10], (16,), jnp.float32)
    p["v2"] = jax.random.uniform(ks[11], (16,), jnp.float32, 0.5, 1.5)
    p["w3"] = jax.random.normal(ks[12], (1, 16, 1, 1, 1), jnp.float32) * 0.05   # Conv3d(16,1,k1)
    p["b3"] = jax.random.normal(ks[13], (1,), jnp.float32) * 0.05
    return p


if __name__ == "__main__":
    key = jax.random.PRNGKey(0)
    k_param, k_x = jax.random.split(key)
    params = prepare_params(init_raw_params(k_param), W=8)

    # (batch=2, channels=64, depth=4, height=8, width=8), NCDHW like PyTorch.
    x = jax.random.normal(k_x, (2, 64, 4, 8, 8), jnp.float32)

    out = jax.block_until_ready(softmax_spatial_detector(x, params))
    assert out.shape == (2, 1, 1, 8, 8), out.shape
    # nn.Softmax2d over a single channel is identically 1 -- verify the kernel agrees.
    assert bool(jnp.allclose(out, 1.0)), "Softmax2d over one channel must yield 1.0"
    print("KERNEL_OK")
</pallas_src>

<mosaic_0001>
module attributes {stable_mosaic.version = 11 : i64} {
  func.func @_detector_kernel(%arg0: i32, %arg1: memref<1x4x8x512xbf16, #tpu.memory_space<vmem>>, %arg2: memref<4608x128xbf16, #tpu.memory_space<vmem>>, %arg3: memref<1x128xf32, #tpu.memory_space<vmem>>, %arg4: memref<1152x128xbf16, #tpu.memory_space<vmem>>, %arg5: memref<1x128xf32, #tpu.memory_space<vmem>>, %arg6: memref<128x8xf32, #tpu.memory_space<vmem>>, %arg7: memref<1x1xf32, #tpu.memory_space<vmem>>, %arg8: memref<1x8x8xf32, #tpu.memory_space<vmem>>, %arg9: memref<6x10x512xbf16, #tpu.memory_space<vmem>>, %arg10: memref<4x10x128xbf16, #tpu.memory_space<vmem>>, %arg11: memref<32x4608xbf16, #tpu.memory_space<vmem>>, %arg12: memref<16x1152xbf16, #tpu.memory_space<vmem>>) attributes {dimension_semantics = [#tpu.dimension_semantics<parallel>], iteration_bounds = array<i64: 2>, scalar_prefetch = 0 : i64, scratch_operands = 4 : i64, tpu.core_type = #tpu.core_type<tc>, window_params = [{transform_indices = @transform_0, window_bounds = array<i64: 1, 4, 8, 512>}, {pipeline_mode = #tpu.pipeline_mode<synchronous>, transform_indices = @transform_1, window_bounds = array<i64: 4608, 128>}, {pipeline_mode = #tpu.pipeline_mode<synchronous>, transform_indices = @transform_2, window_bounds = array<i64: 1, 128>}, {pipeline_mode = #tpu.pipeline_mode<synchronous>, transform_indices = @transform_3, window_bounds = array<i64: 1152, 128>}, {pipeline_mode = #tpu.pipeline_mode<synchronous>, transform_indices = @transform_4, window_bounds = array<i64: 1, 128>}, {pipeline_mode = #tpu.pipeline_mode<synchronous>, transform_indices = @transform_5, window_bounds = array<i64: 128, 8>}, {pipeline_mode = #tpu.pipeline_mode<synchronous>, transform_indices = @transform_6, window_bounds = array<i64: 1, 1>}, {transform_indices = @transform_7, window_bounds = array<i64: 1, 8, 8>}]} {
    %cst = arith.constant 0.000000e+00 : bf16
    %0 = vector.broadcast %cst : bf16 to vector<6x10x512xbf16>
    %c0 = arith.constant 0 : index
    %c0_0 = arith.constant 0 : index
    %c0_1 = arith.constant 0 : index
    %1 = vector.load %arg9[%c0, %c0_0, %c0_1] : memref<6x10x512xbf16, #tpu.memory_space<vmem>>, vector<6x10x512xbf16>
    tpu.vector_store %arg9[%c0, %c0_0, %c0_1], %0 {strides = array<i32>} : memref<6x10x512xbf16, #tpu.memory_space<vmem>>, vector<6x10x512xbf16>,
    %cst_2 = arith.constant 0.000000e+00 : bf16
    %2 = vector.broadcast %cst_2 : bf16 to vector<4x10x128xbf16>
    %c0_3 = arith.constant 0 : index
    %c0_4 = arith.constant 0 : index
    %c0_5 = arith.constant 0 : index
    %3 = vector.load %arg10[%c0_3, %c0_4, %c0_5] : memref<4x10x128xbf16, #tpu.memory_space<vmem>>, vector<4x10x128xbf16>
    tpu.vector_store %arg10[%c0_3, %c0_4, %c0_5], %2 {strides = array<i32>} : memref<4x10x128xbf16, #tpu.memory_space<vmem>>, vector<4x10x128xbf16>,
    %c0_6 = arith.constant 0 : index
    %c0_7 = arith.constant 0 : index
    %c0_8 = arith.constant 0 : index
    %c0_9 = arith.constant 0 : index
    %4 = vector.load %arg1[%c0_6, %c0_7, %c0_8, %c0_9] : memref<1x4x8x512xbf16, #tpu.memory_space<vmem>>, vector<1x1x8x512xbf16>
    %5 = vector.shape_cast %4 : vector<1x1x8x512xbf16> to vector<8x512xbf16>
    %c1 = arith.constant 1 : index
    %c1_10 = arith.constant 1 : index
    %c0_11 = arith.constant 0 : index
    %6 = vector.load %arg9[%c1, %c1_10, %c0_11] : memref<6x10x512xbf16, #tpu.memory_space<vmem>>, vector<1x8x512xbf16>
    %7 = vector.shape_cast %6 : vector<1x8x512xbf16> to vector<8x512xbf16>
    %8 = vector.shape_cast %5 : vector<8x512xbf16> to vector<1x8x512xbf16>
    tpu.vector_store %arg9[%c1, %c1_10, %c0_11], %8 {strides = array<i32>} : memref<6x10x512xbf16, #tpu.memory_space<vmem>>, vector<1x8x512xbf16>,
    %c0_12 = arith.constant 0 : index
    %c1_13 = arith.constant 1 : index
    %c0_14 = arith.constant 0 : index
    %c0_15 = arith.constant 0 : index
    %9 = vector.load %arg1[%c0_12, %c1_13, %c0_14, %c0_15] : memref<1x4x8x512xbf16, #tpu.memory_space<vmem>>, vector<1x1x8x512xbf16>
    %10 = vector.shape_cast %9 : vector<1x1x8x512xbf16> to vector<8x512xbf16>
    %c2 = arith.constant 2 : index
    %c1_16 = arith.constant 1 : index
    %c0_17 = arith.constant 0 : index
    %11 = vector.load %arg9[%c2, %c1_16, %c0_17] : memref<6x10x512xbf16, #tpu.memory_space<vmem>>, vector<1x8x512xbf16>
    %12 = vector.shape_cast %11 : vector<1x8x512xbf16> to vector<8x512xbf16>
    %13 = vector.shape_cast %10 : vector<8x512xbf16> to vector<1x8x512xbf16>
    tpu.vector_store %arg9[%c2, %c1_16, %c0_17], %13 {strides = array<i32>} : memref<6x10x512xbf16, #tpu.memory_space<vmem>>, vector<1x8x512xbf16>,
    %c0_18 = arith.constant 0 : index
    %c2_19 = arith.constant 2 : index
    %c0_20 = arith.constant 0 : index
    %c0_21 = arith.constant 0 : index
    %14 = vector.load %arg1[%c0_18, %c2_19, %c0_20, %c0_21] : memref<1x4x8x512xbf16, #tpu.memory_space<vmem>>, vector<1x1x8x512xbf16>
    %15 = vector.shape_cast %14 : vector<1x1x8x512xbf16> to vector<8x512xbf16>
    %c3 = arith.constant 3 : index
    %c1_22 = arith.constant 1 : index
    %c0_23 = arith.constant 0 : index
    %16 = vector.load %arg9[%c3, %c1_22, %c0_23] : memref<6x10x512xbf16, #tpu.memory_space<vmem>>, vector<1x8x512xbf16>
    %17 = vector.shape_cast %16 : vector<1x8x512xbf16> to vector<8x512xbf16>
    %18 = vector.shape_cast %15 : vector<8x512xbf16> to vector<1x8x512xbf16>
    tpu.vector_store %arg9[%c3, %c1_22, %c0_23], %18 {strides = array<i32>} : memref<6x10x512xbf16, #tpu.memory_space<vmem>>, vector<1x8x512xbf16>,
    %c0_24 = arith.constant 0 : index
    %c3_25 = arith.constant 3 : index
    %c0_26 = arith.constant 0 : index
    %c0_27 = arith.constant 0 : index
    %19 = vector.load %arg1[%c0_24, %c3_25, %c0_26, %c0_27] : memref<1x4x8x512xbf16, #tpu.memory_space<vmem>>, vector<1x1x8x512xbf16>
    %20 = vector.shape_cast %19 : vector<1x1x8x512xbf16> to vector<8x512xbf16>
    %c4 = arith.constant 4 : index
    %c1_28 = arith.constant 1 : index
    %c0_29 = arith.constant 0 : index
    %21 = vector.load %arg9[%c4, %c1_28, %c0_29] : memref<6x10x512xbf16, #tpu.memory_space<vmem>>, vector<1x8x512xbf16>
    %22 = vector.shape_cast %21 : vector<1x8x512xbf16> to vector<8x512xbf16>
    %23 = vector.shape_cast %20 : vector<8x512xbf16> to vector<1x8x512xbf16>
    tpu.vector_store %arg9[%c4, %c1_28, %c0_29], %23 {strides = array<i32>} : memref<6x10x512xbf16, #tpu.memory_space<vmem>>, vector<1x8x512xbf16>,
    %c0_30 = arith.constant 0 : index
    %c0_31 = arith.constant 0 : index
    %c0_32 = arith.constant 0 : index
    %24 = vector.load %arg9[%c0_30, %c0_31, %c0_32] : memref<6x10x512xbf16, #tpu.memory_space<vmem>>, vector<1x8x512xbf16>
    %25 = vector.shape_cast %24 : vector<1x8x512xbf16> to vector<8x512xbf16>
    %c0_33 = arith.constant 0 : index
    %c0_34 = arith.constant 0 : index
    %26 = vector.load %arg11[%c0_33, %c0_34] : memref<32x4608xbf16, #tpu.memory_space<vmem>>, vector<8x512xbf16>
    tpu.vector_store %arg11[%c0_33, %c0_34], %25 {strides = array<i32>} : memref<32x4608xbf16, #tpu.memory_space<vmem>>, vector<8x512xbf16>,
    %c0_35 = arith.constant 0 : index
    %c1_36 = arith.constant 1 : index
    %c0_37 = arith.constant 0 : index
    %27 = vector.load %arg9[%c0_35, %c1_36, %c0_37] : memref<6x10x512xbf16, #tpu.memory_space<vmem>>, vector<1x8x512xbf16>
    %28 = vector.shape_cast %27 : vector<1x8x512xbf16> to vector<8x512xbf16>
    %c0_38 = arith.constant 0 : index
    %c512 = arith.constant 512 : index
    %29 = vector.load %arg11[%c0_38, %c512] : memref<32x4608xbf16, #tpu.memory_space<vmem>>, vector<8x512xbf16>
    tpu.vector_store %arg11[%c0_38, %c512], %28 {strides = array<i32>} : memref<32x4608xbf16, #tpu.memory_space<vmem>>, vector<8x512xbf16>,
    %c0_39 = arith.constant 0 : index
    %c2_40 = arith.constant 2 : index
    %c0_41 = arith.constant 0 : index
    %30 = vector.load %arg9[%c0_39, %c2_40, %c0_41] : memref<6x10x512xbf16, #tpu.memory_space<vmem>>, vector<1x8x512xbf16>
    %31 = vector.shape_cast %30 : vector<1x8x512xbf16> to vector<8x512xbf16>
    %c0_42 = arith.constant 0 : index
    %c1024 = arith.constant 1024 : index
    %32 = vector.load %arg11[%c0_42, %c1024] : memref<32x4608xbf16, #tpu.memory_space<vmem>>, vector<8x512xbf16>
    tpu.vector_store %arg11[%c0_42, %c1024], %31 {strides = array<i32>} : memref<32x4608xbf16, #tpu.memory_space<vmem>>, vector<8x512xbf16>,
    %c1_43 = arith.constant 1 : index
    %c0_44 = arith.constant 0 : index
    %c0_45 = arith.constant 0 : index
    %33 = vector.load %arg9[%c1_43, %c0_44, %c0_45] : memref<6x10x512xbf16, #tpu.memory_space<vmem>>, vector<1x8x512xbf16>
    %34 = vector.shape_cast %33 : vector<1x8x512xbf16> to vector<8x512xbf16>
    %c0_46 = arith.constant 0 : index
    %c1536 = arith.constant 1536 : index
    %35 = vector.load %arg11[%c0_46, %c1536] : memref<32x4608xbf16, #tpu.memory_space<vmem>>, vector<8x512xbf16>
    tpu.vector_store %arg11[%c0_46, %c1536], %34 {strides = array<i32>} : memref<32x4608xbf16, #tpu.memory_space<vmem>>, vector<8x512xbf16>,
    %c1_47 = arith.constant 1 : index
    %c1_48 = arith.constant 1 : index
    %c0_49 = arith.constant 0 : index
    %36 = vector.load %arg9[%c1_47, %c1_48, %c0_49] : memref<6x10x512xbf16, #tpu.memory_space<vmem>>, vector<1x8x512xbf16>
    %37 = vector.shape_cast %36 : vector<1x8x512xbf16> to vector<8x512xbf16>
    %c0_50 = arith.constant 0 : index
    %c2048 = arith.constant 2048 : index
    %38 = vector.load %arg11[%c0_50, %c2048] : memref<32x4608xbf16, #tpu.memory_space<vmem>>, vector<8x512xbf16>
    tpu.vector_store %arg11[%c0_50, %c2048], %37 {strides = array<i32>} : memref<32x4608xbf16, #tpu.memory_space<vmem>>, vector<8x512xbf16>,
    %c1_51 = arith.constant 1 : index
    %c2_52 = arith.constant 2 : index
    %c0_53 = arith.constant 0 : index
    %39 = vector.load %arg9[%c1_51, %c2_52, %c0_53] : memref<6x10x512xbf16, #tpu.memory_space<vmem>>, vector<1x8x512xbf16>
    %40 = vector.shape_cast %39 : vector<1x8x512xbf16> to vector<8x512xbf16>
    %c0_54 = arith.constant 0 : index
    %c2560 = arith.constant 2560 : index
    %41 = vector.load %arg11[%c0_54, %c2560] : memref<32x4608xbf16, #tpu.memory_space<vmem>>, vector<8x512xbf16>
    tpu.vector_store %arg11[%c0_54, %c2560], %40 {strides = array<i32>} : memref<32x4608xbf16, #tpu.memory_space<vmem>>, vector<8x512xbf16>,
    %c2_55 = arith.constant 2 : index
    %c0_56 = arith.constant 0 : index
    %c0_57 = arith.constant 0 : index
    %42 = vector.load %arg9[%c2_55, %c0_56, %c0_57] : memref<6x10x512xbf16, #tpu.memory_space<vmem>>, vector<1x8x512xbf16>
    %43 = vector.shape_cast %42 : vector<1x8x512xbf16> to vector<8x512xbf16>
    %c0_58 = arith.constant 0 : index
    %c3072 = arith.constant 3072 : index
    %44 = vector.load %arg11[%c0_58, %c3072] : memref<32x4608xbf16, #tpu.memory_space<vmem>>, vector<8x512xbf16>
    tpu.vector_store %arg11[%c0_58, %c3072], %43 {strides = array<i32>} : memref<32x4608xbf16, #tpu.memory_space<vmem>>, vector<8x512xbf16>,
    %c2_59 = arith.constant 2 : index
    %c1_60 = arith.constant 1 : index
    %c0_61 = arith.constant 0 : index
    %45 = vector.load %arg9[%c2_59, %c1_60, %c0_61] : memref<6x10x512xbf16, #tpu.memory_space<vmem>>, vector<1x8x512xbf16>
    %46 = vector.shape_cast %45 : vector<1x8x512xbf16> to vector<8x512xbf16>
    %c0_62 = arith.constant 0 : index
    %c3584 = arith.constant 3584 : index
    %47 = vector.load %arg11[%c0_62, %c3584] : memref<32x4608xbf16, #tpu.memory_space<vmem>>, vector<8x512xbf16>
    tpu.vector_store %arg11[%c0_62, %c3584], %46 {strides = array<i32>} : memref<32x4608xbf16, #tpu.memory_space<vmem>>, vector<8x512xbf16>,
    %c2_63 = arith.constant 2 : index
    %c2_64 = arith.constant 2 : index
    %c0_65 = arith.constant 0 : index
    %48 = vector.load %arg9[%c2_63, %c2_64, %c0_65] : memref<6x10x512xbf16, #tpu.memory_space<vmem>>, vector<1x8x512xbf16>
    %49 = vector.shape_cast %48 : vector<1x8x512xbf16> to vector<8x512xbf16>
    %c0_66 = arith.constant 0 : index
    %c4096 = arith.constant 4096 : index
    %50 = vector.load %arg11[%c0_66, %c4096] : memref<32x4608xbf16, #tpu.memory_space<vmem>>, vector<8x512xbf16>
    tpu.vector_store %arg11[%c0_66, %c4096], %49 {strides = array<i32>} : memref<32x4608xbf16, #tpu.memory_space<vmem>>, vector<8x512xbf16>,
    %c1_67 = arith.constant 1 : index
    %c0_68 = arith.constant 0 : index
    %c0_69 = arith.constant 0 : index
    %51 = vector.load %arg9[%c1_67, %c0_68, %c0_69] : memref<6x10x512xbf16, #tpu.memory_space<vmem>>, vector<1x8x512xbf16>
    %52 = vector.shape_cast %51 : vector<1x8x512xbf16> to vector<8x512xbf16>
    %c8 = arith.constant 8 : index
    %c0_70 = arith.constant 0 : index
    %53 = vector.load %arg11[%c8, %c0_70] : memref<32x4608xbf16, #tpu.memory_space<vmem>>, vector<8x512xbf16>
    tpu.vector_store %arg11[%c8, %c0_70], %52 {strides = array<i32>} : memref<32x4608xbf16, #tpu.memory_space<vmem>>, vector<8x512xbf16>,
    %c1_71 = arith.constant 1 : index
    %c1_72 = arith.constant 1 : index
    %c0_73 = arith.constant 0 : index
    %54 = vector.load %arg9[%c1_71, %c1_72, %c0_73] : memref<6x10x512xbf16, #tpu.memory_space<vmem>>, vector<1x8x512xbf16>
    %55 = vector.shape_cast %54 : vector<1x8x512xbf16> to vector<8x512xbf16>
    %c8_74 = arith.constant 8 : index
    %c512_75 = arith.constant 512 : index
    %56 = vector.load %arg11[%c8_74, %c512_75] : memref<32x4608xbf16, #tpu.memory_space<vmem>>, vector<8x512xbf16>
    tpu.vector_store %arg11[%c8_74, %c512_75], %55 {strides = array<i32>} : memref<32x4608xbf16, #tpu.memory_space<vmem>>, vector<8x512xbf16>,
    %c1_76 = arith.constant 1 : index
    %c2_77 = arith.constant 2 : index
    %c0_78 = arith.constant 0 : index
    %57 = vector.load %arg9[%c1_76, %c2_77, %c0_78] : memref<6x10x512xbf16, #tpu.memory_space<vmem>>, vector<1x8x512xbf16>
    %58 = vector.shape_cast %57 : vector<1x8x512xbf16> to vector<8x512xbf16>
    %c8_79 = arith.constant 8 : index
    %c1024_80 = arith.constant 1024 : index
    %59 = vector.load %arg11[%c8_79, %c1024_80] : memref<32x4608xbf16, #tpu.memory_space<vmem>>, vector<8x512xbf16>
    tpu.vector_store %arg11[%c8_79, %c1024_80], %58 {strides = array<i32>} : memref<32x4608xbf16, #tpu.memory_space<vmem>>, vector<8x512xbf16>,
    %c2_81 = arith.constant 2 : index
    %c0_82 = arith.constant 0 : index
    %c0_83 = arith.constant 0 : index
    %60 = vector.load %arg9[%c2_81, %c0_82, %c0_83] : memref<6x10x512xbf16, #tpu.memory_space<vmem>>, vector<1x8x512xbf16>
    %61 = vector.shape_cast %60 : vector<1x8x512xbf16> to vector<8x512xbf16>
    %c8_84 = arith.constant 8 : index
    %c1536_85 = arith.constant 1536 : index
    %62 = vector.load %arg11[%c8_84, %c1536_85] : memref<32x4608xbf16, #tpu.memory_space<vmem>>, vector<8x512xbf16>
    tpu.vector_store %arg11[%c8_84, %c1536_85], %61 {strides = array<i32>} : memref<32x4608xbf16, #tpu.memory_space<vmem>>, vector<8x512xbf16>,
    %c2_86 = arith.constant 2 : index
    %c1_87 = arith.constant 1 : index
    %c0_88 = arith.constant 0 : index
    %63 = vector.load %arg9[%c2_86, %c1_87, %c0_88] : memref<6x10x512xbf16, #tpu.memory_space<vmem>>, vector<1x8x512xbf16>
    %64 = vector.shape_cast %63 : vector<1x8x512xbf16> to vector<8x512xbf16>
    %c8_89 = arith.constant 8 : index
    %c2048_90 = arith.constant 2048 : index
    %65 = vector.load %arg11[%c8_89, %c2048_90] : memref<32x4608xbf16, #tpu.memory_space<vmem>>, vector<8x512xbf16>
    tpu.vector_store %arg11[%c8_89, %c2048_90], %64 {strides = array<i32>} : memref<32x4608xbf16, #tpu.memory_space<vmem>>, vector<8x512xbf16>,
    %c2_91 = arith.constant 2 : index
    %c2_92 = arith.constant 2 : index
    %c0_93 = arith.constant 0 : index
    %66 = vector.load %arg9[%c2_91, %c2_92, %c0_93] : memref<6x10x512xbf16, #tpu.memory_space<vmem>>, vector<1x8x512xbf16>
    %67 = vector.shape_cast %66 : vector<1x8x512xbf16> to vector<8x512xbf16>
    %c8_94 = arith.constant 8 : index
    %c2560_95 = arith.constant 2560 : index
    %68 = vector.load %arg11[%c8_94, %c2560_95] : memref<32x4608xbf16, #tpu.memory_space<vmem>>, vector<8x512xbf16>
    tpu.vector_store %arg11[%c8_94, %c2560_95], %67 {strides = array<i32>} : memref<32x4608xbf16, #tpu.memory_space<vmem>>, vector<8x512xbf16>,
    %c3_96 = arith.constant 3 : index
    %c0_97 = arith.constant 0 : index
    %c0_98 = arith.constant 0 : index
    %69 = vector.load %arg9[%c3_96, %c0_97, %c0_98] : memref<6x10x512xbf16, #tpu.memory_space<vmem>>, vector<1x8x512xbf16>
    %70 = vector.shape_cast %69 : vector<1x8x512xbf16> to vector<8x512xbf16>
    %c8_99 = arith.constant 8 : index
    %c3072_100 = arith.constant 3072 : index
    %71 = vector.load %arg11[%c8_99, %c3072_100] : memref<32x4608xbf16, #tpu.memory_space<vmem>>, vector<8x512xbf16>
    tpu.vector_store %arg11[%c8_99, %c3072_100], %70 {strides = array<i32>} : memref<32x4608xbf16, #tpu.memory_space<vmem>>, vector<8x512xbf16>,
    %c3_101 = arith.constant 3 : index
    %c1_102 = arith.constant 1 : index
    %c0_103 = arith.constant 0 : index
    %72 = vector.load %arg9[%c3_101, %c1_102, %c0_103] : memref<6x10x512xbf16, #tpu.memory_space<vmem>>, vector<1x8x512xbf16>
    %73 = vector.shape_cast %72 : vector<1x8x512xbf16> to vector<8x512xbf16>
    %c8_104 = arith.constant 8 : index
    %c3584_105 = arith.constant 3584 : index
    %74 = vector.load %arg11[%c8_104, %c3584_105] : memref<32x4608xbf16, #tpu.memory_space<vmem>>, vector<8x512xbf16>
    tpu.vector_store %arg11[%c8_104, %c3584_105], %73 {strides = array<i32>} : memref<32x4608xbf16, #tpu.memory_space<vmem>>, vector<8x512xbf16>,
    %c3_106 = arith.constant 3 : index
    %c2_107 = arith.constant 2 : index
    %c0_108 = arith.constant 0 : index
    %75 = vector.load %arg9[%c3_106, %c2_107, %c0_108] : memref<6x10x512xbf16, #tpu.memory_space<vmem>>, vector<1x8x512xbf16>
    %76 = vector.shape_cast %75 : vector<1x8x512xbf16> to vector<8x512xbf16>
    %c8_109 = arith.constant 8 : index
    %c4096_110 = arith.constant 4096 : index
    %77 = vector.load %arg11[%c8_109, %c4096_110] : memref<32x4608xbf16, #tpu.memory_space<vmem>>, vector<8x512xbf16>
    tpu.vector_store %arg11[%c8_109, %c4096_110], %76 {strides = array<i32>} : memref<32x4608xbf16, #tpu.memory_space<vmem>>, vector<8x512xbf16>,
    %c2_111 = arith.constant 2 : index
    %c0_112 = arith.constant 0 : index
    %c0_113 = arith.constant 0 : index
    %78 = vector.load %arg9[%c2_111, %c0_112, %c0_113] : memref<6x10x512xbf16, #tpu.memory_space<vmem>>, vector<1x8x512xbf16>
    %79 = vector.shape_cast %78 : vector<1x8x512xbf16> to vector<8x512xbf16>
    %c16 = arith.constant 16 : index
    %c0_114 = arith.constant 0 : index
    %80 = vector.load %arg11[%c16, %c0_114] : memref<32x4608xbf16, #tpu.memory_space<vmem>>, vector<8x512xbf16>
    tpu.vector_store %arg11[%c16, %c0_114], %79 {strides = array<i32>} : memref<32x4608xbf16, #tpu.memory_space<vmem>>, vector<8x512xbf16>,
    %c2_115 = arith.constant 2 : index
    %c1_116 = arith.constant 1 : index
    %c0_117 = arith.constant 0 : index
    %81 = vector.load %arg9[%c2_115, %c1_116, %c0_117] : memref<6x10x512xbf16, #tpu.memory_space<vmem>>, vector<1x8x512xbf16>
    %82 = vector.shape_cast %81 : vector<1x8x512xbf16> to vector<8x512xbf16>
    %c16_118 = arith.constant 16 : index
    %c512_119 = arith.constant 512 : index
    %83 = vector.load %arg11[%c16_118, %c512_119] : memref<32x4608xbf16, #tpu.memory_space<vmem>>, vector<8x512xbf16>
    tpu.vector_store %arg11[%c16_118, %c512_119], %82 {strides = array<i32>} : memref<32x4608xbf16, #tpu.memory_space<vmem>>, vector<8x512xbf16>,
    %c2_120 = arith.constant 2 : index
    %c2_121 = arith.constant 2 : index
    %c0_122 = arith.constant 0 : index
    %84 = vector.load %arg9[%c2_120, %c2_121, %c0_122] : memref<6x10x512xbf16, #tpu.memory_space<vmem>>, vector<1x8x512xbf16>
    %85 = vector.shape_cast %84 : vector<1x8x512xbf16> to vector<8x512xbf16>
    %c16_123 = arith.constant 16 : index
    %c1024_124 = arith.constant 1024 : index
    %86 = vector.load %arg11[%c16_123, %c1024_124] : memref<32x4608xbf16, #tpu.memory_space<vmem>>, vector<8x512xbf16>
    tpu.vector_store %arg11[%c16_123, %c1024_124], %85 {strides = array<i32>} : memref<32x4608xbf16, #tpu.memory_space<vmem>>, vector<8x512xbf16>,
    %c3_125 = arith.constant 3 : index
    %c0_126 = arith.constant 0 : index
    %c0_127 = arith.constant 0 : index
    %87 = vector.load %arg9[%c3_125, %c0_126, %c0_127] : memref<6x10x512xbf16, #tpu.memory_space<vmem>>, vector<1x8x512xbf16>
    %88 = vector.shape_cast %87 : vector<1x8x512xbf16> to vector<8x512xbf16>
    %c16_128 = arith.constant 16 : index
    %c1536_129 = arith.constant 1536 : index
    %89 = vector.load %arg11[%c16_128, %c1536_129] : memref<32x4608xbf16, #tpu.memory_space<vmem>>, vector<8x512xbf16>
    tpu.vector_store %arg11[%c16_128, %c1536_129], %88 {strides = array<i32>} : memref<32x4608xbf16, #tpu.memory_space<vmem>>, vector<8x512xbf16>,
    %c3_130 = arith.constant 3 : index
    %c1_131 = arith.constant 1 : index
    %c0_132 = arith.constant 0 : index
    %90 = vector.load %arg9[%c3_130, %c1_131, %c0_132] : memref<6x10x512xbf16, #tpu.memory_space<vmem>>, vector<1x8x512xbf16>
    %91 = vector.shape_cast %90 : vector<1x8x512xbf16> to vector<8x512xbf16>
    %c16_133 = arith.constant 16 : index
    %c2048_134 = arith.constant 2048 : index
    %92 = vector.load %arg11[%c16_133, %c2048_134] : memref<32x4608xbf16, #tpu.memory_space<vmem>>, vector<8x512xbf16>
    tpu.vector_store %arg11[%c16_133, %c2048_134], %91 {strides = array<i32>} : memref<32x4608xbf16, #tpu.memory_space<vmem>>, vector<8x512xbf16>,
    %c3_135 = arith.constant 3 : index
    %c2_136 = arith.constant 2 : index
    %c0_137 = arith.constant 0 : index
    %93 = vector.load %arg9[%c3_135, %c2_136, %c0_137] : memref<6x10x512xbf16, #tpu.memory_space<vmem>>, vector<1x8x512xbf16>
    %94 = vector.shape_cast %93 : vector<1x8x512xbf16> to vector<8x512xbf16>
    %c16_138 = arith.constant 16 : index
    %c2560_139 = arith.constant 2560 : index
    %95 = vector.load %arg11[%c16_138, %c2560_139] : memref<32x4608xbf16, #tpu.memory_space<vmem>>, vector<8x512xbf16>
    tpu.vector_store %arg11[%c16_138, %c2560_139], %94 {strides = array<i32>} : memref<32x4608xbf16, #tpu.memory_space<vmem>>, vector<8x512xbf16>,
    %c4_140 = arith.constant 4 : index
    %c0_141 = arith.constant 0 : index
    %c0_142 = arith.constant 0 : index
    %96 = vector.load %arg9[%c4_140, %c0_141, %c0_142] : memref<6x10x512xbf16, #tpu.memory_space<vmem>>, vector<1x8x512xbf16>
    %97 = vector.shape_cast %96 : vector<1x8x512xbf16> to vector<8x512xbf16>
    %c16_143 = arith.constant 16 : index
    %c3072_144 = arith.constant 3072 : index
    %98 = vector.load %arg11[%c16_143, %c3072_144] : memref<32x4608xbf16, #tpu.memory_space<vmem>>, vector<8x512xbf16>
    tpu.vector_store %arg11[%c16_143, %c3072_144], %97 {strides = array<i32>} : memref<32x4608xbf16, #tpu.memory_space<vmem>>, vector<8x512xbf16>,
    %c4_145 = arith.constant 4 : index
    %c1_146 = arith.constant 1 : index
    %c0_147 = arith.constant 0 : index
    %99 = vector.load %arg9[%c4_145, %c1_146, %c0_147] : memref<6x10x512xbf16, #tpu.memory_space<vmem>>, vector<1x8x512xbf16>
    %100 = vector.shape_cast %99 : vector<1x8x512xbf16> to vector<8x512xbf16>
    %c16_148 = arith.constant 16 : index
    %c3584_149 = arith.constant 3584 : index
    %101 = vector.load %arg11[%c16_148, %c3584_149] : memref<32x4608xbf16, #tpu.memory_space<vmem>>, vector<8x512xbf16>
    tpu.vector_store %arg11[%c16_148, %c3584_149], %100 {strides = array<i32>} : memref<32x4608xbf16, #tpu.memory_space<vmem>>, vector<8x512xbf16>,
    %c4_150 = arith.constant 4 : index
    %c2_151 = arith.constant 2 : index
    %c0_152 = arith.constant 0 : index
    %102 = vector.load %arg9[%c4_150, %c2_151, %c0_152] : memref<6x10x512xbf16, #tpu.memory_space<vmem>>, vector<1x8x512xbf16>
    %103 = vector.shape_cast %102 : vector<1x8x512xbf16> to vector<8x512xbf16>
    %c16_153 = arith.constant 16 : index
    %c4096_154 = arith.constant 4096 : index
    %104 = vector.load %arg11[%c16_153, %c4096_154] : memref<32x4608xbf16, #tpu.memory_space<vmem>>, vector<8x512xbf16>
    tpu.vector_store %arg11[%c16_153, %c4096_154], %103 {strides = array<i32>} : memref<32x4608xbf16, #tpu.memory_space<vmem>>, vector<8x512xbf16>,
    %c3_155 = arith.constant 3 : index
    %c0_156 = arith.constant 0 : index
    %c0_157 = arith.constant 0 : index
    %105 = vector.load %arg9[%c3_155, %c0_156, %c0_157] : memref<6x10x512xbf16, #tpu.memory_space<vmem>>, vector<1x8x512xbf16>
    %106 = vector.shape_cast %105 : vector<1x8x512xbf16> to vector<8x512xbf16>
    %c24 = arith.constant 24 : index
    %c0_158 = arith.constant 0 : index
    %107 = vector.load %arg11[%c24, %c0_158] : memref<32x4608xbf16, #tpu.memory_space<vmem>>, vector<8x512xbf16>
    tpu.vector_store %arg11[%c24, %c0_158], %106 {strides = array<i32>} : memref<32x4608xbf16, #tpu.memory_space<vmem>>, vector<8x512xbf16>,
    %c3_159 = arith.constant 3 : index
    %c1_160 = arith.constant 1 : index
    %c0_161 = arith.constant 0 : index
    %108 = vector.load %arg9[%c3_159, %c1_160, %c0_161] : memref<6x10x512xbf16, #tpu.memory_space<vmem>>, vector<1x8x512xbf16>
    %109 = vector.shape_cast %108 : vector<1x8x512xbf16> to vector<8x512xbf16>
    %c24_162 = arith.constant 24 : index
    %c512_163 = arith.constant 512 : index
    %110 = vector.load %arg11[%c24_162, %c512_163] : memref<32x4608xbf16, #tpu.memory_space<vmem>>, vector<8x512xbf16>
    tpu.vector_store %arg11[%c24_162, %c512_163], %109 {strides = array<i32>} : memref<32x4608xbf16, #tpu.memory_space<vmem>>, vector<8x512xbf16>,
    %c3_164 = arith.constant 3 : index
    %c2_165 = arith.constant 2 : index
    %c0_166 = arith.constant 0 : index
    %111 = vector.load %arg9[%c3_164, %c2_165, %c0_166] : memref<6x10x512xbf16, #tpu.memory_space<vmem>>, vector<1x8x512xbf16>
    %112 = vector.shape_cast %111 : vector<1x8x512xbf16> to vector<8x512xbf16>
    %c24_167 = arith.constant 24 : index
    %c1024_168 = arith.constant 1024 : index
    %113 = vector.load %arg11[%c24_167, %c1024_168] : memref<32x4608xbf16, #tpu.memory_space<vmem>>, vector<8x512xbf16>
    tpu.vector_store %arg11[%c24_167, %c1024_168], %112 {strides = array<i32>} : memref<32x4608xbf16, #tpu.memory_space<vmem>>, vector<8x512xbf16>,
    %c4_169 = arith.constant 4 : index
    %c0_170 = arith.constant 0 : index
    %c0_171 = arith.constant 0 : index
    %114 = vector.load %arg9[%c4_169, %c0_170, %c0_171] : memref<6x10x512xbf16, #tpu.memory_space<vmem>>, vector<1x8x512xbf16>
    %115 = vector.shape_cast %114 : vector<1x8x512xbf16> to vector<8x512xbf16>
    %c24_172 = arith.constant 24 : index
    %c1536_173 = arith.constant 1536 : index
    %116 = vector.load %arg11[%c24_172, %c1536_173] : memref<32x4608xbf16, #tpu.memory_space<vmem>>, vector<8x512xbf16>
    tpu.vector_store %arg11[%c24_172, %c1536_173], %115 {strides = array<i32>} : memref<32x4608xbf16, #tpu.memory_space<vmem>>, vector<8x512xbf16>,
    %c4_174 = arith.constant 4 : index
    %c1_175 = arith.constant 1 : index
    %c0_176 = arith.constant 0 : index
    %117 = vector.load %arg9[%c4_174, %c1_175, %c0_176] : memref<6x10x512xbf16, #tpu.memory_space<vmem>>, vector<1x8x512xbf16>
    %118 = vector.shape_cast %117 : vector<1x8x512xbf16> to vector<8x512xbf16>
    %c24_177 = arith.constant 24 : index
    %c2048_178 = arith.constant 2048 : index
    %119 = vector.load %arg11[%c24_177, %c2048_178] : memref<32x4608xbf16, #tpu.memory_space<vmem>>, vector<8x512xbf16>
    tpu.vector_store %arg11[%c24_177, %c2048_178], %118 {strides = array<i32>} : memref<32x4608xbf16, #tpu.memory_space<vmem>>, vector<8x512xbf16>,
    %c4_179 = arith.constant 4 : index
    %c2_180 = arith.constant 2 : index
    %c0_181 = arith.constant 0 : index
    %120 = vector.load %arg9[%c4_179, %c2_180, %c0_181] : memref<6x10x512xbf16, #tpu.memory_space<vmem>>, vector<1x8x512xbf16>
    %121 = vector.shape_cast %120 : vector<1x8x512xbf16> to vector<8x512xbf16>
    %c24_182 = arith.constant 24 : index
    %c2560_183 = arith.constant 2560 : index
    %122 = vector.load %arg11[%c24_182, %c2560_183] : memref<32x4608xbf16, #tpu.memory_space<vmem>>, vector<8x512xbf16>
    tpu.vector_store %arg11[%c24_182, %c2560_183], %121 {strides = array<i32>} : memref<32x4608xbf16, #tpu.memory_space<vmem>>, vector<8x512xbf16>,
    %c5 = arith.constant 5 : index
    %c0_184 = arith.constant 0 : index
    %c0_185 = arith.constant 0 : index
    %123 = vector.load %arg9[%c5, %c0_184, %c0_185] : memref<6x10x512xbf16, #tpu.memory_space<vmem>>, vector<1x8x512xbf16>
    %124 = vector.shape_cast %123 : vector<1x8x512xbf16> to vector<8x512xbf16>
    %c24_186 = arith.constant 24 : index
    %c3072_187 = arith.constant 3072 : index
    %125 = vector.load %arg11[%c24_186, %c3072_187] : memref<32x4608xbf16, #tpu.memory_space<vmem>>, vector<8x512xbf16>
    tpu.vector_store %arg11[%c24_186, %c3072_187], %124 {strides = array<i32>} : memref<32x4608xbf16, #tpu.memory_space<vmem>>, vector<8x512xbf16>,
    %c5_188 = arith.constant 5 : index
    %c1_189 = arith.constant 1 : index
    %c0_190 = arith.constant 0 : index
    %126 = vector.load %arg9[%c5_188, %c1_189, %c0_190] : memref<6x10x512xbf16, #tpu.memory_space<vmem>>, vector<1x8x512xbf16>
    %127 = vector.shape_cast %126 : vector<1x8x512xbf16> to vector<8x512xbf16>
    %c24_191 = arith.constant 24 : index
    %c3584_192 = arith.constant 3584 : index
    %128 = vector.load %arg11[%c24_191, %c3584_192] : memref<32x4608xbf16, #tpu.memory_space<vmem>>, vector<8x512xbf16>
    tpu.vector_store %arg11[%c24_191, %c3584_192], %127 {strides = array<i32>} : memref<32x4608xbf16, #tpu.memory_space<vmem>>, vector<8x512xbf16>,
    %c5_193 = arith.constant 5 : index
    %c2_194 = arith.constant 2 : index
    %c0_195 = arith.constant 0 : index
    %129 = vector.load %arg9[%c5_193, %c2_194, %c0_195] : memref<6x10x512xbf16, #tpu.memory_space<vmem>>, vector<1x8x512xbf16>
    %130 = vector.shape_cast %129 : vector<1x8x512xbf16> to vector<8x512xbf16>
    %c24_196 = arith.constant 24 : index
    %c4096_197 = arith.constant 4096 : index
    %131 = vector.load %arg11[%c24_196, %c4096_197] : memref<32x4608xbf16, #tpu.memory_space<vmem>>, vector<8x512xbf16>
    tpu.vector_store %arg11[%c24_196, %c4096_197], %130 {strides = array<i32>} : memref<32x4608xbf16, #tpu.memory_space<vmem>>, vector<8x512xbf16>,
    %c0_198 = arith.constant 0 : index
    %c0_199 = arith.constant 0 : index
    %132 = vector.load %arg11[%c0_198, %c0_199] : memref<32x4608xbf16, #tpu.memory_space<vmem>>, vector<32x4608xbf16>
    %c0_200 = arith.constant 0 : index
    %c0_201 = arith.constant 0 : index
    %133 = vector.load %arg2[%c0_200, %c0_201] : memref<4608x128xbf16, #tpu.memory_space<vmem>>, vector<4608x128xbf16>
    %cst_202 = arith.constant dense<0.000000e+00> : vector<32x128xf32>
    %134 = tpu.matmul %132, %133, %cst_202 {dimension_numbers = #tpu.dot_dimension_numbers<[1], [0], [0], [1], [0, 0, 1, 1], [], []>} : vector<32x4608xbf16>, vector<4608x128xbf16>, vector<32x128xf32> -> vector<32x128xf32>
    %c0_203 = arith.constant 0 : index
    %c0_204 = arith.constant 0 : index
    %135 = vector.load %arg3[%c0_203, %c0_204] : memref<1x128xf32, #tpu.memory_space<vmem>>, vector<1x128xf32>
    %136 = vector.broadcast %135 : vector<1x128xf32> to vector<32x128xf32>
    %137 = arith.addf %134, %136 : vector<32x128xf32>
    %cst_205 = arith.constant 0.000000e+00 : f32
    %138 = vector.broadcast %cst_205 : f32 to vector<32x128xf32>
    %139 = arith.maximumf %137, %138 : vector<32x128xf32>
    %140 = vector.extract_strided_slice %139 {offsets = [0, 0], sizes = [8, 128], strides = [1, 1]} : vector<32x128xf32> to vector<8x128xf32>
    %141 = vector.extract_strided_slice %139 {offsets = [8, 0], sizes = [8, 128], strides = [1, 1]} : vector<32x128xf32> to vector<8x128xf32>
    %142 = arith.maximumf %140, %141 : vector<8x128xf32>
    %143 = arith.truncf %142 : vector<8x128xf32> to vector<8x128xbf16>
    %144 = vector.extract_strided_slice %139 {offsets = [16, 0], sizes = [8, 128], strides = [1, 1]} : vector<32x128xf32> to vector<8x128xf32>
    %145 = vector.extract_strided_slice %139 {offsets = [24, 0], sizes = [8, 128], strides = [1, 1]} : vector<32x128xf32> to vector<8x128xf32>
    %146 = arith.maximumf %144, %145 : vector<8x128xf32>
    %147 = arith.truncf %146 : vector<8x128xf32> to vector<8x128xbf16>
    %c1_206 = arith.constant 1 : index
    %c1_207 = arith.constant 1 : index
    %c0_208 = arith.constant 0 : index
    %148 = vector.load %arg10[%c1_206, %c1_207, %c0_208] : memref<4x10x128xbf16, #tpu.memory_space<vmem>>, vector<1x8x128xbf16>
    %149 = vector.shape_cast %148 : vector<1x8x128xbf16> to vector<8x128xbf16>
    %150 = vector.shape_cast %143 : vector<8x128xbf16> to vector<1x8x128xbf16>
    tpu.vector_store %arg10[%c1_206, %c1_207, %c0_208], %150 {strides = array<i32>} : memref<4x10x128xbf16, #tpu.memory_space<vmem>>, vector<1x8x128xbf16>,
    %c2_209 = arith.constant 2 : index
    %c1_210 = arith.constant 1 : index
    %c0_211 = arith.constant 0 : index
    %151 = vector.load %arg10[%c2_209, %c1_210, %c0_211] : memref<4x10x128xbf16, #tpu.memory_space<vmem>>, vector<1x8x128xbf16>
    %152 = vector.shape_cast %151 : vector<1x8x128xbf16> to vector<8x128xbf16>
    %153 = vector.shape_cast %147 : vector<8x128xbf16> to vector<1x8x128xbf16>
    tpu.vector_store %arg10[%c2_209, %c1_210, %c0_211], %153 {strides = array<i32>} : memref<4x10x128xbf16, #tpu.memory_space<vmem>>, vector<1x8x128xbf16>,
    %c0_212 = arith.constant 0 : index
    %c0_213 = arith.constant 0 : index
    %c0_214 = arith.constant 0 : index
    %154 = vector.load %arg10[%c0_212, %c0_213, %c0_214] : memref<4x10x128xbf16, #tpu.memory_space<vmem>>, vector<1x8x128xbf16>
    %155 = vector.shape_cast %154 : vector<1x8x128xbf16> to vector<8x128xbf16>
    %c0_215 = arith.constant 0 : index
    %c0_216 = arith.constant 0 : index
    %156 = vector.load %arg12[%c0_215, %c0_216] : memref<16x1152xbf16, #tpu.memory_space<vmem>>, vector<8x128xbf16>
    tpu.vector_store %arg12[%c0_215, %c0_216], %155 {strides = array<i32>} : memref<16x1152xbf16, #tpu.memory_space<vmem>>, vector<8x128xbf16>,
    %c0_217 = arith.constant 0 : index
    %c1_218 = arith.constant 1 : index
    %c0_219 = arith.constant 0 : index
    %157 = vector.load %arg10[%c0_217, %c1_218, %c0_219] : memref<4x10x128xbf16, #tpu.memory_space<vmem>>, vector<1x8x128xbf16>
    %158 = vector.shape_cast %157 : vector<1x8x128xbf16> to vector<8x128xbf16>
    %c0_220 = arith.constant 0 : index
    %c128 = arith.constant 128 : index
    %159 = vector.load %arg12[%c0_220, %c128] : memref<16x1152xbf16, #tpu.memory_space<vmem>>, vector<8x128xbf16>
    tpu.vector_store %arg12[%c0_220, %c128], %158 {strides = array<i32>} : memref<16x1152xbf16, #tpu.memory_space<vmem>>, vector<8x128xbf16>,
    %c0_221 = arith.constant 0 : index
    %c2_222 = arith.constant 2 : index
    %c0_223 = arith.constant 0 : index
    %160 = vector.load %arg10[%c0_221, %c2_222, %c0_223] : memref<4x10x128xbf16, #tpu.memory_space<vmem>>, vector<1x8x128xbf16>
    %161 = vector.shape_cast %160 : vector<1x8x128xbf16> to vector<8x128xbf16>
    %c0_224 = arith.constant 0 : index
    %c256 = arith.constant 256 : index
    %162 = vector.load %arg12[%c0_224, %c256] : memref<16x1152xbf16, #tpu.memory_space<vmem>>, vector<8x128xbf16>
    tpu.vector_store %arg12[%c0_224, %c256], %161 {strides = array<i32>} : memref<16x1152xbf16, #tpu.memory_space<vmem>>, vector<8x128xbf16>,
    %c1_225 = arith.constant 1 : index
    %c0_226 = arith.constant 0 : index
    %c0_227 = arith.constant 0 : index
    %163 = vector.load %arg10[%c1_225, %c0_226, %c0_227] : memref<4x10x128xbf16, #tpu.memory_space<vmem>>, vector<1x8x128xbf16>
    %164 = vector.shape_cast %163 : vector<1x8x128xbf16> to vector<8x128xbf16>
    %c0_228 = arith.constant 0 : index
    %c384 = arith.constant 384 : index
    %165 = vector.load %arg12[%c0_228, %c384] : memref<16x1152xbf16, #tpu.memory_space<vmem>>, vector<8x128xbf16>
    tpu.vector_store %arg12[%c0_228, %c384], %164 {strides = array<i32>} : memref<16x1152xbf16, #tpu.memory_space<vmem>>, vector<8x128xbf16>,
    %c1_229 = arith.constant 1 : index
    %c1_230 = arith.constant 1 : index
    %c0_231 = arith.constant 0 : index
    %166 = vector.load %arg10[%c1_229, %c1_230, %c0_231] : memref<4x10x128xbf16, #tpu.memory_space<vmem>>, vector<1x8x128xbf16>
    %167 = vector.shape_cast %166 : vector<1x8x128xbf16> to vector<8x128xbf16>
    %c0_232 = arith.constant 0 : index
    %c512_233 = arith.constant 512 : index
    %168 = vector.load %arg12[%c0_232, %c512_233] : memref<16x1152xbf16, #tpu.memory_space<vmem>>, vector<8x128xbf16>
    tpu.vector_store %arg12[%c0_232, %c512_233], %167 {strides = array<i32>} : memref<16x1152xbf16, #tpu.memory_space<vmem>>, vector<8x128xbf16>,
    %c1_234 = arith.constant 1 : index
    %c2_235 = arith.constant 2 : index
    %c0_236 = arith.constant 0 : index
    %169 = vector.load %arg10[%c1_234, %c2_235, %c0_236] : memref<4x10x128xbf16, #tpu.memory_space<vmem>>, vector<1x8x128xbf16>
    %170 = vector.shape_cast %169 : vector<1x8x128xbf16> to vector<8x128xbf16>
    %c0_237 = arith.constant 0 : index
    %c640 = arith.constant 640 : index
    %171 = vector.load %arg12[%c0_237, %c640] : memref<16x1152xbf16, #tpu.memory_space<vmem>>, vector<8x128xbf16>
    tpu.vector_store %arg12[%c0_237, %c640], %170 {strides = array<i32>} : memref<16x1152xbf16, #tpu.memory_space<vmem>>, vector<8x128xbf16>,
    %c2_238 = arith.constant 2 : index
    %c0_239 = arith.constant 0 : index
    %c0_240 = arith.constant 0 : index
    %172 = vector.load %arg10[%c2_238, %c0_239, %c0_240] : memref<4x10x128xbf16, #tpu.memory_space<vmem>>, vector<1x8x128xbf16>
    %173 = vector.shape_cast %172 : vector<1x8x128xbf16> to vector<8x128xbf16>
    %c0_241 = arith.constant 0 : index
    %c768 = arith.constant 768 : index
    %174 = vector.load %arg12[%c0_241, %c768] : memref<16x1152xbf16, #tpu.memory_space<vmem>>, vector<8x128xbf16>
    tpu.vector_store %arg12[%c0_241, %c768], %173 {strides = array<i32>} : memref<16x1152xbf16, #tpu.memory_space<vmem>>, vector<8x128xbf16>,
    %c2_242 = arith.constant 2 : index
    %c1_243 = arith.constant 1 : index
    %c0_244 = arith.constant 0 : index
    %175 = vector.load %arg10[%c2_242, %c1_243, %c0_244] : memref<4x10x128xbf16, #tpu.memory_space<vmem>>, vector<1x8x128xbf16>
    %176 = vector.shape_cast %175 : vector<1x8x128xbf16> to vector<8x128xbf16>
    %c0_245 = arith.constant 0 : index
    %c896 = arith.constant 896 : index
    %177 = vector.load %arg12[%c0_245, %c896] : memref<16x1152xbf16, #tpu.memory_space<vmem>>, vector<8x128xbf16>
    tpu.vector_store %arg12[%c0_245, %c896], %176 {strides = array<i32>} : memref<16x1152xbf16, #tpu.memory_space<vmem>>, vector<8x128xbf16>,
    %c2_246 = arith.constant 2 : index
    %c2_247 = arith.constant 2 : index
    %c0_248 = arith.constant 0 : index
    %178 = vector.load %arg10[%c2_246, %c2_247, %c0_248] : memref<4x10x128xbf16, #tpu.memory_space<vmem>>, vector<1x8x128xbf16>
    %179 = vector.shape_cast %178 : vector<1x8x128xbf16> to vector<8x128xbf16>
    %c0_249 = arith.constant 0 : index
    %c1024_250 = arith.constant 1024 : index
    %180 = vector.load %arg12[%c0_249, %c1024_250] : memref<16x1152xbf16, #tpu.memory_space<vmem>>, vector<8x128xbf16>
    tpu.vector_store %arg12[%c0_249, %c1024_250], %179 {strides = array<i32>} : memref<16x1152xbf16, #tpu.memory_space<vmem>>, vector<8x128xbf16>,
    %c1_251 = arith.constant 1 : index
    %c0_252 = arith.constant 0 : index
    %c0_253 = arith.constant 0 : index
    %181 = vector.load %arg10[%c1_251, %c0_252, %c0_253] : memref<4x10x128xbf16, #tpu.memory_space<vmem>>, vector<1x8x128xbf16>
    %182 = vector.shape_cast %181 : vector<1x8x128xbf16> to vector<8x128xbf16>
    %c8_254 = arith.constant 8 : index
    %c0_255 = arith.constant 0 : index
    %183 = vector.load %arg12[%c8_254, %c0_255] : memref<16x1152xbf16, #tpu.memory_space<vmem>>, vector<8x128xbf16>
    tpu.vector_store %arg12[%c8_254, %c0_255], %182 {strides = array<i32>} : memref<16x1152xbf16, #tpu.memory_space<vmem>>, vector<8x128xbf16>,
    %c1_256 = arith.constant 1 : index
    %c1_257 = arith.constant 1 : index
    %c0_258 = arith.constant 0 : index
    %184 = vector.load %arg10[%c1_256, %c1_257, %c0_258] : memref<4x10x128xbf16, #tpu.memory_space<vmem>>, vector<1x8x128xbf16>
    %185 = vector.shape_cast %184 : vector<1x8x128xbf16> to vector<8x128xbf16>
    %c8_259 = arith.constant 8 : index
    %c128_260 = arith.constant 128 : index
    %186 = vector.load %arg12[%c8_259, %c128_260] : memref<16x1152xbf16, #tpu.memory_space<vmem>>, vector<8x128xbf16>
    tpu.vector_store %arg12[%c8_259, %c128_260], %185 {strides = array<i32>} : memref<16x1152xbf16, #tpu.memory_space<vmem>>, vector<8x128xbf16>,
    %c1_261 = arith.constant 1 : index
    %c2_262 = arith.constant 2 : index
    %c0_263 = arith.constant 0 : index
    %187 = vector.load %arg10[%c1_261, %c2_262, %c0_263] : memref<4x10x128xbf16, #tpu.memory_space<vmem>>, vector<1x8x128xbf16>
    %188 = vector.shape_cast %187 : vector<1x8x128xbf16> to vector<8x128xbf16>
    %c8_264 = arith.constant 8 : index
    %c256_265 = arith.constant 256 : index
    %189 = vector.load %arg12[%c8_264, %c256_265] : memref<16x1152xbf16, #tpu.memory_space<vmem>>, vector<8x128xbf16>
    tpu.vector_store %arg12[%c8_264, %c256_265], %188 {strides = array<i32>} : memref<16x1152xbf16, #tpu.memory_space<vmem>>, vector<8x128xbf16>,
    %c2_266 = arith.constant 2 : index
    %c0_267 = arith.constant 0 : index
    %c0_268 = arith.constant 0 : index
    %190 = vector.load %arg10[%c2_266, %c0_267, %c0_268] : memref<4x10x128xbf16, #tpu.memory_space<vmem>>, vector<1x8x128xbf16>
    %191 = vector.shape_cast %190 : vector<1x8x128xbf16> to vector<8x128xbf16>
    %c8_269 = arith.constant 8 : index
    %c384_270 = arith.constant 384 : index
    %192 = vector.load %arg12[%c8_269, %c384_270] : memref<16x1152xbf16, #tpu.memory_space<vmem>>, vector<8x128xbf16>
    tpu.vector_store %arg12[%c8_269, %c384_270], %191 {strides = array<i32>} : memref<16x1152xbf16, #tpu.memory_space<vmem>>, vector<8x128xbf16>,
    %c2_271 = arith.constant 2 : index
    %c1_272 = arith.constant 1 : index
    %c0_273 = arith.constant 0 : index
    %193 = vector.load %arg10[%c2_271, %c1_272, %c0_273] : memref<4x10x128xbf16, #tpu.memory_space<vmem>>, vector<1x8x128xbf16>
    %194 = vector.shape_cast %193 : vector<1x8x128xbf16> to vector<8x128xbf16>
    %c8_274 = arith.constant 8 : index
    %c512_275 = arith.constant 512 : index
    %195 = vector.load %arg12[%c8_274, %c512_275] : memref<16x1152xbf16, #tpu.memory_space<vmem>>, vector<8x128xbf16>
    tpu.vector_store %arg12[%c8_274, %c512_275], %194 {strides = array<i32>} : memref<16x1152xbf16, #tpu.memory_space<vmem>>, vector<8x128xbf16>,
    %c2_276 = arith.constant 2 : index
    %c2_277 = arith.constant 2 : index
    %c0_278 = arith.constant 0 : index
    %196 = vector.load %arg10[%c2_276, %c2_277, %c0_278] : memref<4x10x128xbf16, #tpu.memory_space<vmem>>, vector<1x8x128xbf16>
    %197 = vector.shape_cast %196 : vector<1x8x128xbf16> to vector<8x128xbf16>
    %c8_279 = arith.constant 8 : index
    %c640_280 = arith.constant 640 : index
    %198 = vector.load %arg12[%c8_279, %c640_280] : memref<16x1152xbf16, #tpu.memory_space<vmem>>, vector<8x128xbf16>
    tpu.vector_store %arg12[%c8_279, %c640_280], %197 {strides = array<i32>} : memref<16x1152xbf16, #tpu.memory_space<vmem>>, vector<8x128xbf16>,
    %c3_281 = arith.constant 3 : index
    %c0_282 = arith.constant 0 : index
    %c0_283 = arith.constant 0 : index
    %199 = vector.load %arg10[%c3_281, %c0_282, %c0_283] : memref<4x10x128xbf16, #tpu.memory_space<vmem>>, vector<1x8x128xbf16>
    %200 = vector.shape_cast %199 : vector<1x8x128xbf16> to vector<8x128xbf16>
    %c8_284 = arith.constant 8 : index
    %c768_285 = arith.constant 768 : index
    %201 = vector.load %arg12[%c8_284, %c768_285] : memref<16x1152xbf16, #tpu.memory_space<vmem>>, vector<8x128xbf16>
    tpu.vector_store %arg12[%c8_284, %c768_285], %200 {strides = array<i32>} : memref<16x1152xbf16, #tpu.memory_space<vmem>>, vector<8x128xbf16>,
    %c3_286 = arith.constant 3 : index
    %c1_287 = arith.constant 1 : index
    %c0_288 = arith.constant 0 : index
    %202 = vector.load %arg10[%c3_286, %c1_287, %c0_288] : memref<4x10x128xbf16, #tpu.memory_space<vmem>>, vector<1x8x128xbf16>
    %203 = vector.shape_cast %202 : vector<1x8x128xbf16> to vector<8x128xbf16>
    %c8_289 = arith.constant 8 : index
    %c896_290 = arith.constant 896 : index
    %204 = vector.load %arg12[%c8_289, %c896_290] : memref<16x1152xbf16, #tpu.memory_space<vmem>>, vector<8x128xbf16>
    tpu.vector_store %arg12[%c8_289, %c896_290], %203 {strides = array<i32>} : memref<16x1152xbf16, #tpu.memory_space<vmem>>, vector<8x128xbf16>,
    %c3_291 = arith.constant 3 : index
    %c2_292 = arith.constant 2 : index
    %c0_293 = arith.constant 0 : index
    %205 = vector.load %arg10[%c3_291, %c2_292, %c0_293] : memref<4x10x128xbf16, #tpu.memory_space<vmem>>, vector<1x8x128xbf16>
    %206 = vector.shape_cast %205 : vector<1x8x128xbf16> to vector<8x128xbf16>
    %c8_294 = arith.constant 8 : index
    %c1024_295 = arith.constant 1024 : index
    %207 = vector.load %arg12[%c8_294, %c1024_295] : memref<16x1152xbf16, #tpu.memory_space<vmem>>, vector<8x128xbf16>
    tpu.vector_store %arg12[%c8_294, %c1024_295], %206 {strides = array<i32>} : memref<16x1152xbf16, #tpu.memory_space<vmem>>, vector<8x128xbf16>,
    %c0_296 = arith.constant 0 : index
    %c0_297 = arith.constant 0 : index
    %208 = vector.load %arg12[%c0_296, %c0_297] : memref<16x1152xbf16, #tpu.memory_space<vmem>>, vector<16x1152xbf16>
    %c0_298 = arith.constant 0 : index
    %c0_299 = arith.constant 0 : index
    %209 = vector.load %arg4[%c0_298, %c0_299] : memref<1152x128xbf16, #tpu.memory_space<vmem>>, vector<1152x128xbf16>
    %cst_300 = arith.constant dense<0.000000e+00> : vector<16x128xf32>
    %210 = tpu.matmul %208, %209, %cst_300 {dimension_numbers = #tpu.dot_dimension_numbers<[1], [0], [0], [1], [0, 0, 1, 1], [], []>} : vector<16x1152xbf16>, vector<1152x128xbf16>, vector<16x128xf32> -> vector<16x128xf32>
    %c0_301 = arith.constant 0 : index
    %c0_302 = arith.constant 0 : index
    %211 = vector.load %arg5[%c0_301, %c0_302] : memref<1x128xf32, #tpu.memory_space<vmem>>, vector<1x128xf32>
    %212 = vector.broadcast %211 : vector<1x128xf32> to vector<16x128xf32>
    %213 = arith.addf %210, %212 : vector<16x128xf32>
    %cst_303 = arith.constant 0.000000e+00 : f32
    %214 = vector.broadcast %cst_303 : f32 to vector<16x128xf32>
    %215 = arith.maximumf %213, %214 : vector<16x128xf32>
    %216 = vector.extract_strided_slice %215 {offsets = [0, 0], sizes = [8, 128], strides = [1, 1]} : vector<16x128xf32> to vector<8x128xf32>
    %217 = vector.extract_strided_slice %215 {offsets = [8, 0], sizes = [8, 128], strides = [1, 1]} : vector<16x128xf32> to vector<8x128xf32>
    %218 = arith.maximumf %216, %217 : vector<8x128xf32>
    %c0_304 = arith.constant 0 : index
    %c0_305 = arith.constant 0 : index
    %219 = vector.load %arg6[%c0_304, %c0_305] : memref<128x8xf32, #tpu.memory_space<vmem>>, vector<128x8xf32>
    %cst_306 = arith.constant dense<0.000000e+00> : vector<8x8xf32>
    %220 = tpu.matmul %218, %219, %cst_306 {dimension_numbers = #tpu.dot_dimension_numbers<[1], [0], [0], [1], [0, 0, 1, 1], [], []>} : vector<8x128xf32>, vector<128x8xf32>, vector<8x8xf32> -> vector<8x8xf32>
    %c0_307 = arith.constant 0 : index
    %c0_308 = arith.constant 0 : index
    %221 = vector.load %arg7[%c0_307, %c0_308] : memref<1x1xf32, #tpu.memory_space<vmem>>, vector<1x1xf32>
    %222 = vector.broadcast %221 : vector<1x1xf32> to vector<8x8xf32>
    %223 = arith.addf %220, %222 : vector<8x8xf32>
    %224 = arith.subf %223, %223 : vector<8x8xf32>
    %cst_309 = arith.constant 1.000000e+00 : f32
    %225 = vector.broadcast %cst_309 : f32 to vector<8x8xf32>
    %226 = arith.addf %224, %225 : vector<8x8xf32>
    %c0_310 = arith.constant 0 : index
    %c0_311 = arith.constant 0 : index
    %c0_312 = arith.constant 0 : index
    %227 = vector.load %arg8[%c0_310, %c0_311, %c0_312] : memref<1x8x8xf32, #tpu.memory_space<vmem>>, vector<1x8x8xf32>
    %228 = vector.shape_cast %227 : vector<1x8x8xf32> to vector<8x8xf32>
    %229 = vector.shape_cast %226 : vector<8x8xf32> to vector<1x8x8xf32>
    tpu.vector_store %arg8[%c0_310, %c0_311, %c0_312], %229 {strides = array<i32>} : memref<1x8x8xf32, #tpu.memory_space<vmem>>, vector<1x8x8xf32>,
    return
  }
  func.func @transform_0(%arg0: i32) -> (i32, i32, i32, i32) {
    %c0_i32 = arith.constant 0 : i32
    %c0_i32_0 = arith.constant 0 : i32
    %c0_i32_1 = arith.constant 0 : i32
    %c0_i32_2 = arith.constant 0 : i32
    return %arg0, %c0_i32, %c0_i32_0, %c0_i32_1 : i32, i32, i32, i32
  }
  func.func @transform_1(%arg0: i32) -> (i32, i32) {
    %c0_i32 = arith.constant 0 : i32
    %c0_i32_0 = arith.constant 0 : i32
    %c0_i32_1 = arith.constant 0 : i32
    return %c0_i32, %c0_i32_0 : i32, i32
  }
  func.func @transform_2(%arg0: i32) -> (i32, i32) {
    %c0_i32 = arith.constant 0 : i32
    %c0_i32_0 = arith.constant 0 : i32
    %c0_i32_1 = arith.constant 0 : i32
    return %c0_i32, %c0_i32_0 : i32, i32
  }
  func.func @transform_3(%arg0: i32) -> (i32, i32) {
    %c0_i32 = arith.constant 0 : i32
    %c0_i32_0 = arith.constant 0 : i32
    %c0_i32_1 = arith.constant 0 : i32
    return %c0_i32, %c0_i32_0 : i32, i32
  }
  func.func @transform_4(%arg0: i32) -> (i32, i32) {
    %c0_i32 = arith.constant 0 : i32
    %c0_i32_0 = arith.constant 0 : i32
    %c0_i32_1 = arith.constant 0 : i32
    return %c0_i32, %c0_i32_0 : i32, i32
  }
  func.func @transform_5(%arg0: i32) -> (i32, i32) {
    %c0_i32 = arith.constant 0 : i32
    %c0_i32_0 = arith.constant 0 : i32
    %c0_i32_1 = arith.constant 0 : i32
    return %c0_i32, %c0_i32_0 : i32, i32
  }
  func.func @transform_6(%arg0: i32) -> (i32, i32) {
    %c0_i32 = arith.constant 0 : i32
    %c0_i32_0 = arith.constant 0 : i32
    %c0_i32_1 = arith.constant 0 : i32
    return %c0_i32, %c0_i32_0 : i32, i32
  }
  func.func @transform_7(%arg0: i32) -> (i32, i32, i32) {
    %c0_i32 = arith.constant 0 : i32
    %c0_i32_0 = arith.constant 0 : i32
    %c0_i32_1 = arith.constant 0 : i32
    return %arg0, %c0_i32, %c0_i32_0 : i32, i32, i32
  }
}

</mosaic_0001>

<llo_original>
// kernel: softmax_spatial_detector.1
$region0: #{softmax_spatial_detector.1}
  #allocation0 [shape = 'u32[]', space=smem, size = 0x4, offset = 0x4, fixed_abs, tag = 'smem constant byte address 0x4 - core index']
  #allocation1 [shape = 'u32[144,128]{1,0:T(1,128)}', space=vmem, size = 0x12000, scoped, tag = 'internal scratch']
  #allocation2 [shape = 'bf16[6,10,512]{2,1,0:T(8,128)(2,1)}', space=vmem, size = 0x18000, scoped, tag = 'scratch operand']
  #allocation3 [shape = 'bf16[4,10,128]{2,1,0:T(8,128)(2,1)}', space=vmem, size = 0x4000, scoped, tag = 'scratch operand']
  #allocation4 [shape = 'bf16[32,4608]{1,0:T(16,128)(2,1)}', space=vmem, size = 0x48000, scoped, tag = 'scratch operand']
  #allocation5 [shape = 'bf16[16,1152]{1,0:T(16,128)(2,1)}', space=vmem, size = 0x9000, scoped, tag = 'scratch operand']
  #allocation6 [shape = 'f32[1,1]{1,0:T(1,128)S(1)}', space=vmem, size = 0x200, scoped, tag = 'scoped memory for softmax_spatial_detector.1']
  %s0 = inlined_call_operand.vmem [shape: bf16[2,4,8,512], index: 0, kind: input, shape index: {}]
  %s1 = inlined_call_operand.hbm [shape: bf16[4608,128], index: 1, kind: input, shape index: {}]
  %s2 = inlined_call_operand.hbm [shape: f32[1,128], index: 2, kind: input, shape index: {}]
  %s3 = inlined_call_operand.hbm [shape: bf16[1152,128], index: 3, kind: input, shape index: {}]
  %s4 = inlined_call_operand.hbm [shape: f32[1,128], index: 4, kind: input, shape index: {}]
  %s5 = inlined_call_operand.vmem [shape: f32[128,8], index: 5, kind: input, shape index: {}]
  %s6 = inlined_call_operand.<no memory space> [shape: f32[1,1], index: 6, kind: input, shape index: {}]
  %s7 = inlined_call_operand.hbm [shape: f32[2,8,8], index: 7, kind: output, shape index: {}]
  %s8 = sld [smem:[#allocation0]]
  $region77: #{softmax_spatial_detector.1} parent=0
    _
  %s10 = ssub.s32 1, %s8
  %s11 = scalar_select 0, %s10, %s8
  %v12 = vstv %s6
  %13 = vst [vmem:[#allocation6] sm:$0x1] %v12
  $region1: #{softmax_spatial_detector.1} parent=0
    #allocation7 [shape = 'u8[1179648]{0}', space=vmem, size = 0x120000, scoped, tag = 'input window, operand 1, single buffered']
    #allocation8 [shape = 's32[2]{0}', space=sflag, size = 0x8, scoped, tag = 'scoped memory for softmax_spatial_detector.1']
    #allocation9 [shape = 's32[2]{0}', space=sflag, size = 0x8, scoped, tag = 'scoped memory for softmax_spatial_detector.1']
    #allocation10 [shape = 'u8[512]{0}', space=vmem, size = 0x400, scoped, tag = 'input window, operand 2, single buffered']
    #allocation11 [shape = 's32[1]{0}', space=sflag, size = 0x4, scoped, tag = 'scoped memory for softmax_spatial_detector.1']
    #allocation12 [shape = 'u8[294912]{0}', space=vmem, size = 0x48000, scoped, tag = 'input window, operand 3, single buffered']
    #allocation13 [shape = 'u8[512]{0}', space=vmem, size = 0x400, scoped, tag = 'input window, operand 4, single buffered']
    #allocation14 [shape = 's32[1]{0}', space=sflag, size = 0x4, scoped, tag = 'scoped memory for softmax_spatial_detector.1']
    #allocation15 [shape = 'u8[8192]{0}', space=vmem, size = 0x2000, scoped, tag = 'output window, operand 0']
    %14 = vsyncpa [#allocation8], 0
    %15 = vsyncpa [#allocation11], 0
    %16 = vsyncpa [#allocation14], 0
    %17 = vsyncpa [#allocation9], 0
    %s18 = scalar_lea.sflag [#allocation9], 1
    %19 = vsyncpa %s18, 0
    loop: start=0, step=1, limit=4
    $region2: #{softmax_spatial_detector.1} parent=1 // loop_pre_header
      _
    $region3: #{softmax_spatial_detector.1} parent=1 // loop_header
      %s21 = sphi 0, %s25
      %p22 = scmp.ge.s32.totalorder %s21, 4
      %s31 = sphi 0, %s33
      %s34 = sphi 0, %s31
      %s35 = sphi 0, %s34
      %s51 = sphi 0, %s35
      %s55 = sphi 0, %s55
      %s57 = sphi 0, %s55
      %s58 = sphi 0, %s57
      %s72 = sphi 0, %s58
      %s76 = sphi 0, %s76
      %s78 = sphi 0, %s76
      %s79 = sphi 0, %s78
      %s93 = sphi 0, %s79
      %s97 = sphi 0, %s97
      %s99 = sphi 0, %s97
      %s100 = sphi 0, %s99
      %s114 = sphi 0, %s100
      %s118 = sphi 0, %s118
      %s120 = sphi 0, %s118
      %s121 = sphi 0, %s120
      %s135 = sphi 0, %s121
      %s139 = sphi 0, %s139
      %s141 = sphi 0, %s139
      %s142 = sphi 0, %s141
      %s156 = sphi 0, %s142
      %s160 = sphi 0, %s160
      %s162 = sphi 0, %s160
      %s163 = sphi 0, %s162
      %s177 = sphi 0, %s163
      %s183 = sphi 0, %s185
      %s186 = sphi 0, %s183
      %s187 = sphi 0, %s186
      %s203 = sphi 0, %s187
    $region4: #{softmax_spatial_detector.1} parent=1 // loop_header_branch
      %24 = sbr.rel (%p22) target = $region8
    $region5: #{softmax_spatial_detector.1} parent=1 // loop_body
      %s26 = ssub.s32 %s21, 1
      %s27 = ssub.s32 %s21, 2
      %s28 = sadd.s32 %s21, 1
      %s29 = ssub.s32 %s21, %s28
      %p30 = scmp.eq.s32.totalorder %s29, 0
      %s32 = sadd.s32 %s31, 1
      %s33 = scalar_select %p30, %s31, %s32
      %p36 = pneg %p30
      %p37 = scmp.eq.s32.totalorder %s21, 1
      %p38 = por %p36, %p37
      %p39 = scmp.ne.s32.totalorder %s31, %s34
      %p40 = scmp.eq.s32.totalorder %s21, 0
      %p41 = por %p39, %p40
      %p42 = scmp.ne.s32.totalorder %s31, %s34
      %p43 = scmp.eq.s32.totalorder %s26, 1
      %p44 = por %p42, %p43
      %p45 = scmp.ne.s32.totalorder %s34, %s35
      %p46 = scmp.eq.s32.totalorder %s26, 0
      %p47 = por %p45, %p46
      %p48 = scmp.ne.s32.totalorder %s34, %s35
      %p49 = scmp.eq.s32.totalorder %s27, 1
      %p50 = por %p48, %p49
      %p52 = scmp.ne.s32.totalorder %s35, %s51
      %p53 = scmp.eq.s32.totalorder %s27, 0
      %p54 = por %p52, %p53
      %s56 = sadd.s32 %s55, 1
      %p59 = scmp.eq.s32.totalorder %s21, 1
      %p60 = scmp.ne.s32.totalorder %s55, %s57
      %p61 = scmp.eq.s32.totalorder %s21, 0
      %p62 = por %p60, %p61
      %p63 = scmp.ne.s32.totalorder %s55, %s57
      %p64 = scmp.eq.s32.totalorder %s26, 1
      %p65 = por %p63, %p64
      %p66 = scmp.ne.s32.totalorder %s57, %s58
      %p67 = scmp.eq.s32.totalorder %s26, 0
      %p68 = por %p66, %p67
      %p69 = scmp.ne.s32.totalorder %s57, %s58
      %p70 = scmp.eq.s32.totalorder %s27, 1
      %p71 = por %p69, %p70
      %p73 = scmp.ne.s32.totalorder %s58, %s72
      %p74 = scmp.eq.s32.totalorder %s27, 0
      %p75 = por %p73, %p74
      %s77 = sadd.s32 %s76, 1
      %p80 = scmp.eq.s32.totalorder %s21, 1
      %p81 = scmp.ne.s32.totalorder %s76, %s78
      %p82 = scmp.eq.s32.totalorder %s21, 0
      %p83 = por %p81, %p82
      %p84 = scmp.ne.s32.totalorder %s76, %s78
      %p85 = scmp.eq.s32.totalorder %s26, 1
      %p86 = por %p84, %p85
      %p87 = scmp.ne.s32.totalorder %s78, %s79
      %p88 = scmp.eq.s32.totalorder %s26, 0
      %p89 = por %p87, %p88
      %p90 = scmp.ne.s32.totalorder %s78, %s79
      %p91 = scmp.eq.s32.totalorder %s27, 1
      %p92 = por %p90, %p91
      %p94 = scmp.ne.s32.totalorder %s79, %s93
      %p95 = scmp.eq.s32.totalorder %s27, 0
      %p96 = por %p94, %p95
      %s98 = sadd.s32 %s97, 1
      %p101 = scmp.eq.s32.totalorder %s21, 1
      %p102 = scmp.ne.s32.totalorder %s97, %s99
      %p103 = scmp.eq.s32.totalorder %s21, 0
      %p104 = por %p102, %p103
      %p105 = scmp.ne.s32.totalorder %s97, %s99
      %p106 = scmp.eq.s32.totalorder %s26, 1
      %p107 = por %p105, %p106
      %p108 = scmp.ne.s32.totalorder %s99, %s100
      %p109 = scmp.eq.s32.totalorder %s26, 0
      %p110 = por %p108, %p109
      %p111 = scmp.ne.s32.totalorder %s99, %s100
      %p112 = scmp.eq.s32.totalorder %s27, 1
      %p113 = por %p111, %p112
      %p115 = scmp.ne.s32.totalorder %s100, %s114
      %p116 = scmp.eq.s32.totalorder %s27, 0
      %p117 = por %p115, %p116
      %s119 = sadd.s32 %s118, 1
      %p122 = scmp.eq.s32.totalorder %s21, 1
      %p123 = scmp.ne.s32.totalorder %s118, %s120
      %p124 = scmp.eq.s32.totalorder %s21, 0
      %p125 = por %p123, %p124
      %p126 = scmp.ne.s32.totalorder %s118, %s120
      %p127 = scmp.eq.s32.totalorder %s26, 1
      %p128 = por %p126, %p127
      %p129 = scmp.ne.s32.totalorder %s120, %s121
      %p130 = scmp.eq.s32.totalorder %s26, 0
      %p131 = por %p129, %p130
      %p132 = scmp.ne.s32.totalorder %s120, %s121
      %p133 = scmp.eq.s32.totalorder %s27, 1
      %p134 = por %p132, %p133
      %p136 = scmp.ne.s32.totalorder %s121, %s135
      %p137 = scmp.eq.s32.totalorder %s27, 0
      %p138 = por %p136, %p137
      %s140 = sadd.s32 %s139, 1
      %p143 = scmp.eq.s32.totalorder %s21, 1
      %p144 = scmp.ne.s32.totalorder %s139, %s141
      %p145 = scmp.eq.s32.totalorder %s21, 0
      %p146 = por %p144, %p145
      %p147 = scmp.ne.s32.totalorder %s139, %s141
      %p148 = scmp.eq.s32.totalorder %s26, 1
      %p149 = por %p147, %p148
      %p150 = scmp.ne.s32.totalorder %s141, %s142
      %p151 = scmp.eq.s32.totalorder %s26, 0
      %p152 = por %p150, %p151
      %p153 = scmp.ne.s32.totalorder %s141, %s142
      %p154 = scmp.eq.s32.totalorder %s27, 1
      %p155 = por %p153, %p154
      %p157 = scmp.ne.s32.totalorder %s142, %s156
      %p158 = scmp.eq.s32.totalorder %s27, 0
      %p159 = por %p157, %p158
      %s161 = sadd.s32 %s160, 1
      %p164 = scmp.eq.s32.totalorder %s21, 1
      %p165 = scmp.ne.s32.totalorder %s160, %s162
      %p166 = scmp.eq.s32.totalorder %s21, 0
      %p167 = por %p165, %p166
      %p168 = scmp.ne.s32.totalorder %s160, %s162
      %p169 = scmp.eq.s32.totalorder %s26, 1
      %p170 = por %p168, %p169
      %p171 = scmp.ne.s32.totalorder %s162, %s163
      %p172 = scmp.eq.s32.totalorder %s26, 0
      %p173 = por %p171, %p172
      %p174 = scmp.ne.s32.totalorder %s162, %s163
      %p175 = scmp.eq.s32.totalorder %s27, 1
      %p176 = por %p174, %p175
      %p178 = scmp.ne.s32.totalorder %s163, %s177
      %p179 = scmp.eq.s32.totalorder %s27, 0
      %p180 = por %p178, %p179
      %s181 = ssub.s32 %s21, %s28
      %p182 = scmp.eq.s32.totalorder %s181, 0
      %s184 = sadd.s32 %s183, 1
      %s185 = scalar_select %p182, %s183, %s184
      %p188 = pneg %p182
      %p189 = scmp.eq.s32.totalorder %s21, 1
      %p190 = por %p188, %p189
      %p191 = scmp.ne.s32.totalorder %s183, %s186
      %p192 = scmp.eq.s32.totalorder %s21, 0
      %p193 = por %p191, %p192
      %p194 = scmp.ne.s32.totalorder %s183, %s186
      %p195 = scmp.eq.s32.totalorder %s26, 1
      %p196 = por %p194, %p195
      %p197 = scmp.ne.s32.totalorder %s186, %s187
      %p198 = scmp.eq.s32.totalorder %s26, 0
      %p199 = por %p197, %p198
      %p200 = scmp.ne.s32.totalorder %s186, %s187
      %p201 = scmp.eq.s32.totalorder %s27, 1
      %p202 = por %p200, %p201
      %p204 = scmp.ne.s32.totalorder %s187, %s203
      %p205 = scmp.eq.s32.totalorder %s27, 0
      %p206 = por %p204, %p205
      %p207 = scmp.le.s32.totalorder 1, %s21
      %p208 = scmp.lt.s32.totalorder %s21, 3
      %p209 = pnand %p207, %p208
      %p210 = pneg %p209
      // Predicated region
      $region9: #{softmax_spatial_detector.1} parent=5 // pred_check
        _
      $region10: #{softmax_spatial_detector.1} parent=5 // pred_check_branch
        %212 = sbr.rel (%p209) target = $region12
      $region11: #{softmax_spatial_detector.1} parent=5 // pred_region
        %s213 = ssub.s32 %s21, 1
        // Predicated region
        $region13: #{softmax_spatial_detector.1} parent=11 // pred_check
          %p214 = pneg %p68
        $region14: #{softmax_spatial_detector.1} parent=11 // pred_check_branch
          %216 = sbr.rel (%p214) target = $region16
        $region15: #{softmax_spatial_detector.1} parent=11 // pred_region
          %s218 = ssub.s32 36864, 36864
          %219 = vsyncadd [#allocation8], %s218
          %s220 = sshll.u32 [#allocation7], 4
          %s221 = int_to_ptr.vmem [resolvable:$true] %s220
          %226 = dma.hbm_to_vmem [thread:$0]  %s1, 36864, %s221, [#allocation8], 64, 64, 4
        $region16: #{softmax_spatial_detector.1} parent=11 // pred_fallthru
          _
        // Predicated region
        $region17: #{softmax_spatial_detector.1} parent=11 // pred_check
          %p227 = pneg %p89
        $region18: #{softmax_spatial_detector.1} parent=11 // pred_check_branch
          %229 = sbr.rel (%p227) target = $region20
        $region19: #{softmax_spatial_detector.1} parent=11 // pred_region
          %s231 = ssub.s32 16, 16
          %232 = vsyncadd [#allocation11], %s231
          %s234 = sshll.u32 [#allocation10], 4
          %s235 = int_to_ptr.vmem [resolvable:$true] %s234
          %237 = dma.hbm_to_vmem [thread:$0]  %s2, 16, %s235, [#allocation11]
        $region20: #{softmax_spatial_detector.1} parent=11 // pred_fallthru
          _
        // Predicated region
        $region21: #{softmax_spatial_detector.1} parent=11 // pred_check
          %p238 = pneg %p110
        $region22: #{softmax_spatial_detector.1} parent=11 // pred_check_branch
          %240 = sbr.rel (%p238) target = $region24
        $region23: #{softmax_spatial_detector.1} parent=11 // pred_region
          %s242 = ssub.s32 9216, 9216
          %243 = vsyncadd [#allocation11], %s242
          %s244 = sshll.u32 [#allocation12], 4
          %s245 = int_to_ptr.vmem [resolvable:$true] %s244
          %250 = dma.hbm_to_vmem [thread:$0]  %s3, 9216, %s245, [#allocation11], 64, 64, 4
        $region24: #{softmax_spatial_detector.1} parent=11 // pred_fallthru
          _
        // Predicated region
        $region25: #{softmax_spatial_detector.1} parent=11 // pred_check
          %p251 = pneg %p131
        $region26: #{softmax_spatial_detector.1} parent=11 // pred_check_branch
          %253 = sbr.rel (%p251) target = $region28
        $region27: #{softmax_spatial_detector.1} parent=11 // pred_region
          %s255 = ssub.s32 16, 16
          %256 = vsyncadd [#allocation14], %s255
          %s258 = sshll.u32 [#allocation13], 4
          %s259 = int_to_ptr.vmem [resolvable:$true] %s258
          %261 = dma.hbm_to_vmem [thread:$0]  %s4, 16, %s259, [#allocation14]
        $region28: #{softmax_spatial_detector.1} parent=11 // pred_fallthru
          _
        // Predicated region
        $region29: #{softmax_spatial_detector.1} parent=11 // pred_check
          %p262 = pneg %p152
        $region30: #{softmax_spatial_detector.1} parent=11 // pred_check_branch
          %264 = sbr.rel (%p262) target = $region32
        $region31: #{softmax_spatial_detector.1} parent=11 // pred_region
          _
        $region32: #{softmax_spatial_detector.1} parent=11 // pred_fallthru
          _
        // Predicated region
        $region33: #{softmax_spatial_detector.1} parent=11 // pred_check
          %p265 = pneg %p173
        $region34: #{softmax_spatial_detector.1} parent=11 // pred_check_branch
          %267 = sbr.rel (%p265) target = $region36
        $region35: #{softmax_spatial_detector.1} parent=11 // pred_region
          _
        $region36: #{softmax_spatial_detector.1} parent=11 // pred_fallthru
          _
      $region12: #{softmax_spatial_detector.1} parent=5 // pred_fallthru
        _
      %p268 = scmp.lt.s32.totalorder %s21, 2
      // Predicated region
      $region37: #{softmax_spatial_detector.1} parent=5 // pred_check
        %p269 = pneg %p268
      $region38: #{softmax_spatial_detector.1} parent=5 // pred_check_branch
        %271 = sbr.rel (%p269) target = $region40
      $region39: #{softmax_spatial_detector.1} parent=5 // pred_region
        // Predicated region
        $region41: #{softmax_spatial_detector.1} parent=39 // pred_check
          %p272 = pneg %p41
        $region42: #{softmax_spatial_detector.1} parent=39 // pred_check_branch
          %274 = sbr.rel (%p272) target = $region44
        $region43: #{softmax_spatial_detector.1} parent=39 // pred_region
          %p275 = scmp.lt.s32.totalorder %s21, 1
          %s276 = scalar_select %p275, %s21, 1
          %s277 = smul.addr %s276, 16
          %s278 = smul.addr %s277, 4
          %s279 = scalar_lea.vmem %s0, %s278
        $region44: #{softmax_spatial_detector.1} parent=39 // pred_fallthru
          _
      $region40: #{softmax_spatial_detector.1} parent=5 // pred_fallthru
        _
      %p280 = scmp.le.s32.totalorder 1, %s21
      %p281 = scmp.lt.s32.totalorder %s21, 3
      %p282 = pnand %p280, %p281
      %p283 = pneg %p282
      // Predicated region
      $region45: #{softmax_spatial_detector.1} parent=5 // pred_check
        _
      $region46: #{softmax_spatial_detector.1} parent=5 // pred_check_branch
        %285 = sbr.rel (%p282) target = $region48
      $region47: #{softmax_spatial_detector.1} parent=5 // pred_region
        %s286 = ssub.s32 %s21, 1
        // Predicated region
        $region49: #{softmax_spatial_detector.1} parent=47 // pred_check
          %p287 = pneg %p68
        $region50: #{softmax_spatial_detector.1} parent=47 // pred_check_branch
          %289 = sbr.rel (%p287) target = $region52
        $region51: #{softmax_spatial_detector.1} parent=47 // pred_region
          %290 = dma.done [#allocation8], 36864
        $region52: #{softmax_spatial_detector.1} parent=47 // pred_fallthru
          _
        // Predicated region
        $region53: #{softmax_spatial_detector.1} parent=47 // pred_check
          %p291 = pneg %p89
        $region54: #{softmax_spatial_detector.1} parent=47 // pred_check_branch
          %293 = sbr.rel (%p291) target = $region56
        $region55: #{softmax_spatial_detector.1} parent=47 // pred_region
          %294 = dma.done [#allocation11], 16
        $region56: #{softmax_spatial_detector.1} parent=47 // pred_fallthru
          _
        // Predicated region
        $region57: #{softmax_spatial_detector.1} parent=47 // pred_check
          %p295 = pneg %p110
        $region58: #{softmax_spatial_detector.1} parent=47 // pred_check_branch
          %297 = sbr.rel (%p295) target = $region60
        $region59: #{softmax_spatial_detector.1} parent=47 // pred_region
          %298 = dma.done [#allocation11], 9216
        $region60: #{softmax_spatial_detector.1} parent=47 // pred_fallthru
          _
        // Predicated region
        $region61: #{softmax_spatial_detector.1} parent=47 // pred_check
          %p299 = pneg %p131
        $region62: #{softmax_spatial_detector.1} parent=47 // pred_check_branch
          %301 = sbr.rel (%p299) target = $region64
        $region63: #{softmax_spatial_detector.1} parent=47 // pred_region
          %302 = dma.done [#allocation14], 16
        $region64: #{softmax_spatial_detector.1} parent=47 // pred_fallthru
          _
        %p303 = scmp.lt.s32.totalorder %s26, 1
        %s304 = scalar_select %p303, %s26, 1
        %s305 = smul.addr %s304, 16
        %s306 = smul.addr %s305, 4
        %s307 = scalar_lea.vmem %s0, %s306
        %p308 = pneg %p47
        %p309 = pneg %p44
        %p310 = pneg %p68
        %p311 = pneg %p65
        %p312 = pneg %p89
        %p313 = pneg %p86
        %p314 = pneg %p110
        %p315 = pneg %p107
        %p316 = pneg %p131
        %p317 = pneg %p128
        %p318 = pneg %p152
        %p319 = pneg %p149
        %p320 = pneg %p173
        %p321 = pneg %p170
        %p322 = pneg %p199
        %p323 = pneg %p196
        %s324 = sand.u32 %s186, 1
        %s325 = scalar_lea.sflag [#allocation9], %s324
        %s326 = sand.u32 %s186, 1
        %s327 = smul.addr %s326, 8
        %s328 = scalar_lea.vmem [#allocation15], %s327
        %p329 = scmp.lt.s32.totalorder %s26, 1
        %s330 = scalar_select %p329, %s26, 1
        %s331 = smul.addr %s330, 16
        %s332 = smul.addr %s331, 4
        %s333 = scalar_lea.vmem %s0, %s332
        %335 = vst [vmem:[#allocation2] sm:$0xff] 0
        %336 = vst [vmem:[#allocation2 + $0x8] sm:$0xff] 0
        %337 = vst [vmem:[#allocation2 + $0x10] sm:$0x11] 0
        %338 = vst [vmem:[#allocation2 + $0x18] sm:$0x11] 0
        %339 = vst [vmem:[#allocation2 + $0x20] sm:$0xff] 0
        %340 = vst [vmem:[#allocation2 + $0x28] sm:$0xff] 0
        %341 = vst [vmem:[#allocation2 + $0x30] sm:$0x11] 0
        %342 = vst [vmem:[#allocation2 + $0x38] sm:$0x11] 0
        %343 = vst [vmem:[#allocation2 + $0x40] sm:$0xff] 0
        %344 = vst [vmem:[#allocation2 + $0x48] sm:$0xff] 0
        %345 = vst [vmem:[#allocation2 + $0x50] sm:$0x11] 0
        %346 = vst [vmem:[#allocation2 + $0x58] sm:$0x11] 0
        %347 = vst [vmem:[#allocation2 + $0x60] sm:$0xff] 0
        %348 = vst [vmem:[#allocation2 + $0x68] sm:$0xff] 0
        %349 = vst [vmem:[#allocation2 + $0x70] sm:$0x11] 0
        %350 = vst [vmem:[#allocation2 + $0x78] sm:$0x11] 0
        %351 = vst [vmem:[#allocation2 + $0x80] sm:$0xff] 0
        %352 = vst [vmem:[#allocation2 + $0x88] sm:$0xff] 0
        %353 = vst [vmem:[#allocation2 + $0x90] sm:$0x11] 0
        %354 = vst [vmem:[#allocation2 + $0x98] sm:$0x11] 0
        %355 = vst [vmem:[#allocation2 + $0xa0] sm:$0xff] 0
        %356 = vst [vmem:[#allocation2 + $0xa8] sm:$0xff] 0
        %357 = vst [vmem:[#allocation2 + $0xb0] sm:$0x11] 0
        %358 = vst [vmem:[#allocation2 + $0xb8] sm:$0x11] 0
        %359 = vst [vmem:[#allocation3] sm:$0xf] 0
        %360 = vst [vmem:[#allocation3 + $0x4] sm:$0x1] 0
        %361 = vst [vmem:[#allocation3 + $0x8] sm:$0xf] 0
        %362 = vst [vmem:[#allocation3 + $0xc] sm:$0x1] 0
        %363 = vst [vmem:[#allocation3 + $0x10] sm:$0xf] 0
        %364 = vst [vmem:[#allocation3 + $0x14] sm:$0x1] 0
        %365 = vst [vmem:[#allocation3 + $0x18] sm:$0xf] 0
        %366 = vst [vmem:[#allocation3 + $0x1c] sm:$0x1] 0
        %v367 = vld [vmem:[%s333] sm:$0xff]
        %v368 = vld [vmem:[%s333 + $0x8] sm:$0xff]
        %v370 = vshrl.u32 %v367, 16
        %v372 = vrot.slane %v370, 7
        %v373 = vshll.u32 %v367, 16
        %v375 = vor.u32 %v372, %v373
        %v377 = vshrl.u32 %v368, 16
        %v379 = vrot.slane %v377, 7
        %v380 = vshll.u32 %v368, 16
        %v382 = vor.u32 %v379, %v380
        %v383 = vrot.slane %v372, 4
        %v384 = vrot.slane %v379, 4
        %s389 = scalar_lea.vmem [#allocation2], 32
        %vm390 = vcmask 1043456
        %vm391 = vsmask.f32 7938
        %vm392 = vmand %vm390, %vm391
        %vm393 = vcmask 1047556
        %vm394 = vsmask.f32 7954
        %vm395 = vmand %vm393, %vm394
        %vm396 = vmor %vm395, %vm392
        %v397 = vld [vmem:[%s389] sm:$0xff]
        %v398 = vsel %vm396, %v375, %v397
        %399 = vst [vmem:[%s389] sm:$0xff] %v398
        %v400 = vld [vmem:[%s389 + $0x8] sm:$0xff]
        %v401 = vsel %vm396, %v382, %v400
        %402 = vst [vmem:[%s389 + $0x8] sm:$0xff] %v401
        %vm403 = vcmask 1040384
        %vm404 = vsmask.f32 256
        %vm405 = vmand %vm403, %vm404
        %vm406 = vcmask 1044484
        %vm407 = vsmask.f32 4352
        %vm408 = vmand %vm406, %vm407
        %vm409 = vmor %vm408, %vm405
        %v410 = vld [vmem:[%s389 + $0x10] sm:$0x11]
        %v411 = vsel %vm409, %v383, %v410
        %412 = vst [vmem:[%s389 + $0x10] sm:$0x11] %v411
        %v413 = vld [vmem:[%s389 + $0x18] sm:$0x11]
        %v414 = vsel %vm409, %v384, %v413
        %415 = vst [vmem:[%s389 + $0x18] sm:$0x11] %v414
        %s416 = scalar_lea.vmem %s333, 16
        %v417 = vld [vmem:[%s416] sm:$0xff]
        %v418 = vld [vmem:[%s416 + $0x8] sm:$0xff]
        %v420 = vshrl.u32 %v417, 16
        %v422 = vrot.slane %v420, 7
        %v423 = vshll.u32 %v417, 16
        %v425 = vor.u32 %v422, %v423
        %v427 = vshrl.u32 %v418, 16
        %v429 = vrot.slane %v427, 7
        %v430 = vshll.u32 %v418, 16
        %v432 = vor.u32 %v429, %v430
        %v433 = vrot.slane %v422, 4
        %v434 = vrot.slane %v429, 4
        %s439 = scalar_lea.vmem [#allocation2], 64
        %v440 = vld [vmem:[%s439] sm:$0xff]
        %v441 = vsel %vm396, %v425, %v440
        %442 = vst [vmem:[%s439] sm:$0xff] %v441
        %v443 = vld [vmem:[%s439 + $0x8] sm:$0xff]
        %v444 = vsel %vm396, %v432, %v443
        %445 = vst [vmem:[%s439 + $0x8] sm:$0xff] %v444
        %v446 = vld [vmem:[%s439 + $0x10] sm:$0x11]
        %v447 = vsel %vm409, %v433, %v446
        %448 = vst [vmem:[%s439 + $0x10] sm:$0x11] %v447
        %v449 = vld [vmem:[%s439 + $0x18] sm:$0x11]
        %v450 = vsel %vm409, %v434, %v449
        %451 = vst [vmem:[%s439 + $0x18] sm:$0x11] %v450
        %s452 = scalar_lea.vmem %s333, 32
        %v453 = vld [vmem:[%s452] sm:$0xff]
        %v454 = vld [vmem:[%s452 + $0x8] sm:$0xff]
        %v456 = vshrl.u32 %v453, 16
        %v458 = vrot.slane %v456, 7
        %v459 = vshll.u32 %v453, 16
        %v461 = vor.u32 %v458, %v459
        %v463 = vshrl.u32 %v454, 16
        %v465 = vrot.slane %v463, 7
        %v466 = vshll.u32 %v454, 16
        %v468 = vor.u32 %v465, %v466
        %v469 = vrot.slane %v458, 4
        %v470 = vrot.slane %v465, 4
        %s475 = scalar_lea.vmem [#allocation2], 96
        %v476 = vld [vmem:[%s475] sm:$0xff]
        %v477 = vsel %vm396, %v461, %v476
        %478 = vst [vmem:[%s475] sm:$0xff] %v477
        %v479 = vld [vmem:[%s475 + $0x8] sm:$0xff]
        %v480 = vsel %vm396, %v468, %v479
        %481 = vst [vmem:[%s475 + $0x8] sm:$0xff] %v480
        %v482 = vld [vmem:[%s475 + $0x10] sm:$0x11]
        %v483 = vsel %vm409, %v469, %v482
        %484 = vst [vmem:[%s475 + $0x10] sm:$0x11] %v483
        %v485 = vld [vmem:[%s475 + $0x18] sm:$0x11]
        %v486 = vsel %vm409, %v470, %v485
        %487 = vst [vmem:[%s475 + $0x18] sm:$0x11] %v486
        %s488 = scalar_lea.vmem %s333, 48
        %v489 = vld [vmem:[%s488] sm:$0xff]
        %v490 = vld [vmem:[%s488 + $0x8] sm:$0xff]
        %v492 = vshrl.u32 %v489, 16
        %v494 = vrot.slane %v492, 7
        %v495 = vshll.u32 %v489, 16
        %v497 = vor.u32 %v494, %v495
        %v499 = vshrl.u32 %v490, 16
        %v501 = vrot.slane %v499, 7
        %v502 = vshll.u32 %v490, 16
        %v504 = vor.u32 %v501, %v502
        %v505 = vrot.slane %v494, 4
        %v506 = vrot.slane %v501, 4
        %s511 = scalar_lea.vmem [#allocation2], 128
        %v512 = vld [vmem:[%s511] sm:$0xff]
        %v513 = vsel %vm396, %v497, %v512
        %514 = vst [vmem:[%s511] sm:$0xff] %v513
        %v515 = vld [vmem:[%s511 + $0x8] sm:$0xff]
        %v516 = vsel %vm396, %v504, %v515
        %517 = vst [vmem:[%s511 + $0x8] sm:$0xff] %v516
        %v518 = vld [vmem:[%s511 + $0x10] sm:$0x11]
        %v519 = vsel %vm409, %v505, %v518
        %520 = vst [vmem:[%s511 + $0x10] sm:$0x11] %v519
        %v521 = vld [vmem:[%s511 + $0x18] sm:$0x11]
        %v522 = vsel %vm409, %v506, %v521
        %523 = vst [vmem:[%s511 + $0x18] sm:$0x11] %v522
        %v524 = vld [vmem:[#allocation2] sm:$0xff]
        %v525 = vld [vmem:[#allocation2 + $0x8] sm:$0xff]
        %v528 = vunpack.c.l.b16 %v524
        %v529 = vunpack.c.h.b16 %v524
        %v530 = vunpack.c.l.b16 %v525
        %v531 = vunpack.c.h.b16 %v525
        %v532 = vpack.c.b16 %v528, %v528
        %v533 = vpack.c.b16 %v529, %v529
        %v534 = vpack.c.b16 %v530, %v530
        %v535 = vpack.c.b16 %v531, %v531
        %540 = vst [vmem:[#allocation4] sm:$0xf] %v532
        %541 = vst [vmem:[#allocation4 + $0x8] sm:$0xf] %v533
        %542 = vst [vmem:[#allocation4 + $0x10] sm:$0xf] %v534
        %543 = vst [vmem:[#allocation4 + $0x18] sm:$0xf] %v535
        %v544 = vld [vmem:[#allocation2] sm:$0xff]
        %v545 = vld [vmem:[#allocation2 + $0x8] sm:$0xff]
        %v546 = vld [vmem:[#allocation2 + $0x10] sm:$0x11]
        %v547 = vld [vmem:[#allocation2 + $0x18] sm:$0x11]
        %v552 = vunpack.c.l.b16 %v544
        %v553 = vunpack.c.h.b16 %v544
        %v554 = vunpack.c.l.b16 %v545
        %v555 = vunpack.c.h.b16 %v545
        %v556 = vunpack.c.l.b16 %v546
        %v557 = vunpack.c.h.b16 %v546
        %v558 = vunpack.c.l.b16 %v547
        %v559 = vunpack.c.h.b16 %v547
        %v560 = vpack.c.b16 %v556, %v552
        %v561 = vpack.c.b16 %v557, %v553
        %v562 = vpack.c.b16 %v558, %v554
        %v563 = vpack.c.b16 %v559, %v555
        %v565 = vshrl.u32 %v560, 16
        %v567 = vshll.u32 %v560, 16
        %v569 = vrot.slane %v567, 1
        %v570 = vor.u32 %v565, %v569
        %v572 = vshrl.u32 %v561, 16
        %v574 = vshll.u32 %v561, 16
        %v576 = vrot.slane %v574, 1
        %v577 = vor.u32 %v572, %v576
        %v579 = vshrl.u32 %v562, 16
        %v581 = vshll.u32 %v562, 16
        %v583 = vrot.slane %v581, 1
        %v584 = vor.u32 %v579, %v583
        %v586 = vshrl.u32 %v563, 16
        %v588 = vshll.u32 %v563, 16
        %v590 = vrot.slane %v588, 1
        %v591 = vor.u32 %v586, %v590
        %596 = vst [vmem:[#allocation4 + $0x20] sm:$0xf] %v570
        %597 = vst [vmem:[#allocation4 + $0x28] sm:$0xf] %v577
        %598 = vst [vmem:[#allocation4 + $0x30] sm:$0xf] %v584
        %599 = vst [vmem:[#allocation4 + $0x38] sm:$0xf] %v591
        %v600 = vld [vmem:[#allocation2] sm:$0xee]
        %v601 = vld [vmem:[#allocation2 + $0x8] sm:$0xee]
        %v602 = vld [vmem:[#allocation2 + $0x10] sm:$0x11]
        %v603 = vld [vmem:[#allocation2 + $0x18] sm:$0x11]
        %v608 = vunpack.c.l.b16 %v600
        %v609 = vunpack.c.h.b16 %v600
        %v610 = vunpack.c.l.b16 %v601
        %v611 = vunpack.c.h.b16 %v601
        %v612 = vunpack.c.l.b16 %v602
        %v613 = vunpack.c.h.b16 %v602
        %v614 = vunpack.c.l.b16 %v603
        %v615 = vunpack.c.h.b16 %v603
        %v616 = vpack.c.b16 %v612, %v608
        %v617 = vpack.c.b16 %v613, %v609
        %v618 = vpack.c.b16 %v614, %v610
        %v619 = vpack.c.b16 %v615, %v611
        %v620 = vrot.slane %v616, 1
        %v621 = vrot.slane %v617, 1
        %v622 = vrot.slane %v618, 1
        %v623 = vrot.slane %v619, 1
        %628 = vst [vmem:[#allocation4 + $0x40] sm:$0xf] %v620
        %629 = vst [vmem:[#allocation4 + $0x48] sm:$0xf] %v621
        %630 = vst [vmem:[#allocation4 + $0x50] sm:$0xf] %v622
        %631 = vst [vmem:[#allocation4 + $0x58] sm:$0xf] %v623
        %v632 = vld [vmem:[%s389] sm:$0xff]
        %v633 = vld [vmem:[%s389 + $0x8] sm:$0xff]
        %v636 = vunpack.c.l.b16 %v632
        %v637 = vunpack.c.h.b16 %v632
        %v638 = vunpack.c.l.b16 %v633
        %v639 = vunpack.c.h.b16 %v633
        %v640 = vpack.c.b16 %v636, %v636
        %v641 = vpack.c.b16 %v637, %v637
        %v642 = vpack.c.b16 %v638, %v638
        %v643 = vpack.c.b16 %v639, %v639
        %648 = vst [vmem:[#allocation4 + $0x60] sm:$0xf] %v640
        %649 = vst [vmem:[#allocation4 + $0x68] sm:$0xf] %v641
        %650 = vst [vmem:[#allocation4 + $0x70] sm:$0xf] %v642
        %651 = vst [vmem:[#allocation4 + $0x78] sm:$0xf] %v643
        %v652 = vld [vmem:[%s389] sm:$0xff]
        %v653 = vld [vmem:[%s389 + $0x8] sm:$0xff]
        %v654 = vld [vmem:[%s389 + $0x10] sm:$0x11]
        %v655 = vld [vmem:[%s389 + $0x18] sm:$0x11]
        %v660 = vunpack.c.l.b16 %v652
        %v661 = vunpack.c.h.b16 %v652
        %v662 = vunpack.c.l.b16 %v653
        %v663 = vunpack.c.h.b16 %v653
        %v664 = vunpack.c.l.b16 %v654
        %v665 = vunpack.c.h.b16 %v654
        %v666 = vunpack.c.l.b16 %v655
        %v667 = vunpack.c.h.b16 %v655
        %v668 = vpack.c.b16 %v664, %v660
        %v669 = vpack.c.b16 %v665, %v661
        %v670 = vpack.c.b16 %v666, %v662
        %v671 = vpack.c.b16 %v667, %v663
        %v673 = vshrl.u32 %v668, 16
        %v675 = vshll.u32 %v668, 16
        %v677 = vrot.slane %v675, 1
        %v678 = vor.u32 %v673, %v677
        %v680 = vshrl.u32 %v669, 16
        %v682 = vshll.u32 %v669, 16
        %v684 = vrot.slane %v682, 1
        %v685 = vor.u32 %v680, %v684
        %v687 = vshrl.u32 %v670, 16
        %v689 = vshll.u32 %v670, 16
        %v691 = vrot.slane %v689, 1
        %v692 = vor.u32 %v687, %v691
        %v694 = vshrl.u32 %v671, 16
        %v696 = vshll.u32 %v671, 16
        %v698 = vrot.slane %v696, 1
        %v699 = vor.u32 %v694, %v698
        %704 = vst [vmem:[#allocation4 + $0x80] sm:$0xf] %v678
        %705 = vst [vmem:[#allocation4 + $0x88] sm:$0xf] %v685
        %706 = vst [vmem:[#allocation4 + $0x90] sm:$0xf] %v692
        %707 = vst [vmem:[#allocation4 + $0x98] sm:$0xf] %v699
        %v708 = vld [vmem:[%s389] sm:$0xee]
        %v709 = vld [vmem:[%s389 + $0x8] sm:$0xee]
        %v710 = vld [vmem:[%s389 + $0x10] sm:$0x11]
        %v711 = vld [vmem:[%s389 + $0x18] sm:$0x11]
        %v716 = vunpack.c.l.b16 %v708
        %v717 = vunpack.c.h.b16 %v708
        %v718 = vunpack.c.l.b16 %v709
        %v719 = vunpack.c.h.b16 %v709
        %v720 = vunpack.c.l.b16 %v710
        %v721 = vunpack.c.h.b16 %v710
        %v722 = vunpack.c.l.b16 %v711
        %v723 = vunpack.c.h.b16 %v711
        %v724 = vpack.c.b16 %v720, %v716
        %v725 = vpack.c.b16 %v721, %v717
        %v726 = vpack.c.b16 %v722, %v718
        %v727 = vpack.c.b16 %v723, %v719
        %v728 = vrot.slane %v724, 1
        %v729 = vrot.slane %v725, 1
        %v730 = vrot.slane %v726, 1
        %v731 = vrot.slane %v727, 1
        %736 = vst [vmem:[#allocation4 + $0xa0] sm:$0xf] %v728
        %737 = vst [vmem:[#allocation4 + $0xa8] sm:$0xf] %v729
        %738 = vst [vmem:[#allocation4 + $0xb0] sm:$0xf] %v730
        %739 = vst [vmem:[#allocation4 + $0xb8] sm:$0xf] %v731
        %v740 = vld [vmem:[%s439] sm:$0xff]
        %v741 = vld [vmem:[%s439 + $0x8] sm:$0xff]
        %v744 = vunpack.c.l.b16 %v740
        %v745 = vunpack.c.h.b16 %v740
        %v746 = vunpack.c.l.b16 %v741
        %v747 = vunpack.c.h.b16 %v741
        %v748 = vpack.c.b16 %v744, %v744
        %v749 = vpack.c.b16 %v745, %v745
        %v750 = vpack.c.b16 %v746, %v746
        %v751 = vpack.c.b16 %v747, %v747
        %756 = vst [vmem:[#allocation4 + $0xc0] sm:$0xf] %v748
        %757 = vst [vmem:[#allocation4 + $0xc8] sm:$0xf] %v749
        %758 = vst [vmem:[#allocation4 + $0xd0] sm:$0xf] %v750
        %759 = vst [vmem:[#allocation4 + $0xd8] sm:$0xf] %v751
        %v760 = vld [vmem:[%s439] sm:$0xff]
        %v761 = vld [vmem:[%s439 + $0x8] sm:$0xff]
        %v762 = vld [vmem:[%s439 + $0x10] sm:$0x11]
        %v763 = vld [vmem:[%s439 + $0x18] sm:$0x11]
        %v768 = vunpack.c.l.b16 %v760
        %v769 = vunpack.c.h.b16 %v760
        %v770 = vunpack.c.l.b16 %v761
        %v771 = vunpack.c.h.b16 %v761
        %v772 = vunpack.c.l.b16 %v762
        %v773 = vunpack.c.h.b16 %v762
        %v774 = vunpack.c.l.b16 %v763
        %v775 = vunpack.c.h.b16 %v763
        %v776 = vpack.c.b16 %v772, %v768
        %v777 = vpack.c.b16 %v773, %v769
        %v778 = vpack.c.b16 %v774, %v770
        %v779 = vpack.c.b16 %v775, %v771
        %v781 = vshrl.u32 %v776, 16
        %v783 = vshll.u32 %v776, 16
        %v785 = vrot.slane %v783, 1
        %v786 = vor.u32 %v781, %v785
        %v788 = vshrl.u32 %v777, 16
        %v790 = vshll.u32 %v777, 16
        %v792 = vrot.slane %v790, 1
        %v793 = vor.u32 %v788, %v792
        %v795 = vshrl.u32 %v778, 16
        %v797 = vshll.u32 %v778, 16
        %v799 = vrot.slane %v797, 1
        %v800 = vor.u32 %v795, %v799
        %v802 = vshrl.u32 %v779, 16
        %v804 = vshll.u32 %v779, 16
        %v806 = vrot.slane %v804, 1
        %v807 = vor.u32 %v802, %v806
        %812 = vst [vmem:[#allocation4 + $0xe0] sm:$0xf] %v786
        %813 = vst [vmem:[#allocation4 + $0xe8] sm:$0xf] %v793
        %814 = vst [vmem:[#allocation4 + $0xf0] sm:$0xf] %v800
        %815 = vst [vmem:[#allocation4 + $0xf8] sm:$0xf] %v807
        %v816 = vld [vmem:[%s439] sm:$0xee]
        %v817 = vld [vmem:[%s439 + $0x8] sm:$0xee]
        %v818 = vld [vmem:[%s439 + $0x10] sm:$0x11]
        %v819 = vld [vmem:[%s439 + $0x18] sm:$0x11]
        %v824 = vunpack.c.l.b16 %v816
        %v825 = vunpack.c.h.b16 %v816
        %v826 = vunpack.c.l.b16 %v817
        %v827 = vunpack.c.h.b16 %v817
        %v828 = vunpack.c.l.b16 %v818
        %v829 = vunpack.c.h.b16 %v818
        %v830 = vunpack.c.l.b16 %v819
        %v831 = vunpack.c.h.b16 %v819
        %v832 = vpack.c.b16 %v828, %v824
        %v833 = vpack.c.b16 %v829, %v825
        %v834 = vpack.c.b16 %v830, %v826
        %v835 = vpack.c.b16 %v831, %v827
        %v836 = vrot.slane %v832, 1
        %v837 = vrot.slane %v833, 1
        %v838 = vrot.slane %v834, 1
        %v839 = vrot.slane %v835, 1
        %844 = vst [vmem:[#allocation4 + $0x100] sm:$0xf] %v836
        %845 = vst [vmem:[#allocation4 + $0x108] sm:$0xf] %v837
        %846 = vst [vmem:[#allocation4 + $0x110] sm:$0xf] %v838
        %847 = vst [vmem:[#allocation4 + $0x118] sm:$0xf] %v839
        %v848 = vld [vmem:[%s389] sm:$0xff]
        %v849 = vld [vmem:[%s389 + $0x8] sm:$0xff]
        %v852 = vunpack.c.l.b16 %v848
        %v853 = vunpack.c.h.b16 %v848
        %v854 = vunpack.c.l.b16 %v849
        %v855 = vunpack.c.h.b16 %v849
        %v856 = vpack.c.b16 %v852, %v852
        %v857 = vpack.c.b16 %v853, %v853
        %v858 = vpack.c.b16 %v854, %v854
        %v859 = vpack.c.b16 %v855, %v855
        %864 = vst [vmem:[#allocation4] sm:$0xf0] %v856
        %865 = vst [vmem:[#allocation4 + $0x8] sm:$0xf0] %v857
        %866 = vst [vmem:[#allocation4 + $0x10] sm:$0xf0] %v858
        %867 = vst [vmem:[#allocation4 + $0x18] sm:$0xf0] %v859
        %v868 = vld [vmem:[%s389] sm:$0xff]
        %v869 = vld [vmem:[%s389 + $0x8] sm:$0xff]
        %v870 = vld [vmem:[%s389 + $0x10] sm:$0x11]
        %v871 = vld [vmem:[%s389 + $0x18] sm:$0x11]
        %v876 = vunpack.c.l.b16 %v868
        %v877 = vunpack.c.h.b16 %v868
        %v878 = vunpack.c.l.b16 %v869
        %v879 = vunpack.c.h.b16 %v869
        %v880 = vunpack.c.l.b16 %v870
        %v881 = vunpack.c.h.b16 %v870
        %v882 = vunpack.c.l.b16 %v871
        %v883 = vunpack.c.h.b16 %v871
        %v884 = vpack.c.b16 %v880, %v876
        %v885 = vpack.c.b16 %v881, %v877
        %v886 = vpack.c.b16 %v882, %v878
        %v887 = vpack.c.b16 %v883, %v879
        %v889 = vshrl.u32 %v884, 16
        %v891 = vrot.slane %v889, 4
        %v892 = vshll.u32 %v884, 16
        %v894 = vrot.slane %v892, 5
        %v895 = vor.u32 %v891, %v894
        %v897 = vshrl.u32 %v885, 16
        %v899 = vrot.slane %v897, 4
        %v900 = vshll.u32 %v885, 16
        %v902 = vrot.slane %v900, 5
        %v903 = vor.u32 %v899, %v902
        %v905 = vshrl.u32 %v886, 16
        %v907 = vrot.slane %v905, 4
        %v908 = vshll.u32 %v886, 16
        %v910 = vrot.slane %v908, 5
        %v911 = vor.u32 %v907, %v910
        %v913 = vshrl.u32 %v887, 16
        %v915 = vrot.slane %v913, 4
        %v916 = vshll.u32 %v887, 16
        %v918 = vrot.slane %v916, 5
        %v919 = vor.u32 %v915, %v918
        %924 = vst [vmem:[#allocation4 + $0x20] sm:$0xf0] %v895
        %925 = vst [vmem:[#allocation4 + $0x28] sm:$0xf0] %v903
        %926 = vst [vmem:[#allocation4 + $0x30] sm:$0xf0] %v911
        %927 = vst [vmem:[#allocation4 + $0x38] sm:$0xf0] %v919
        %v928 = vld [vmem:[%s389] sm:$0xee]
        %v929 = vld [vmem:[%s389 + $0x8] sm:$0xee]
        %v930 = vld [vmem:[%s389 + $0x10] sm:$0x11]
        %v931 = vld [vmem:[%s389 + $0x18] sm:$0x11]
        %v936 = vunpack.c.l.b16 %v928
        %v937 = vunpack.c.h.b16 %v928
        %v938 = vunpack.c.l.b16 %v929
        %v939 = vunpack.c.h.b16 %v929
        %v940 = vunpack.c.l.b16 %v930
        %v941 = vunpack.c.h.b16 %v930
        %v942 = vunpack.c.l.b16 %v931
        %v943 = vunpack.c.h.b16 %v931
        %v944 = vpack.c.b16 %v940, %v936
        %v945 = vpack.c.b16 %v941, %v937
        %v946 = vpack.c.b16 %v942, %v938
        %v947 = vpack.c.b16 %v943, %v939
        %v948 = vrot.slane %v944, 5
        %v949 = vrot.slane %v945, 5
        %v950 = vrot.slane %v946, 5
        %v951 = vrot.slane %v947, 5
        %956 = vst [vmem:[#allocation4 + $0x40] sm:$0xf0] %v948
        %957 = vst [vmem:[#allocation4 + $0x48] sm:$0xf0] %v949
        %958 = vst [vmem:[#allocation4 + $0x50] sm:$0xf0] %v950
        %959 = vst [vmem:[#allocation4 + $0x58] sm:$0xf0] %v951
        %v960 = vld [vmem:[%s439] sm:$0xff]
        %v961 = vld [vmem:[%s439 + $0x8] sm:$0xff]
        %v964 = vunpack.c.l.b16 %v960
        %v965 = vunpack.c.h.b16 %v960
        %v966 = vunpack.c.l.b16 %v961
        %v967 = vunpack.c.h.b16 %v961
        %v968 = vpack.c.b16 %v964, %v964
        %v969 = vpack.c.b16 %v965, %v965
        %v970 = vpack.c.b16 %v966, %v966
        %v971 = vpack.c.b16 %v967, %v967
        %976 = vst [vmem:[#allocation4 + $0x60] sm:$0xf0] %v968
        %977 = vst [vmem:[#allocation4 + $0x68] sm:$0xf0] %v969
        %978 = vst [vmem:[#allocation4 + $0x70] sm:$0xf0] %v970
        %979 = vst [vmem:[#allocation4 + $0x78] sm:$0xf0] %v971
        %v980 = vld [vmem:[%s439] sm:$0xff]
        %v981 = vld [vmem:[%s439 + $0x8] sm:$0xff]
        %v982 = vld [vmem:[%s439 + $0x10] sm:$0x11]
        %v983 = vld [vmem:[%s439 + $0x18] sm:$0x11]
        %v988 = vunpack.c.l.b16 %v980
        %v989 = vunpack.c.h.b16 %v980
        %v990 = vunpack.c.l.b16 %v981
        %v991 = vunpack.c.h.b16 %v981
        %v992 = vunpack.c.l.b16 %v982
        %v993 = vunpack.c.h.b16 %v982
        %v994 = vunpack.c.l.b16 %v983
        %v995 = vunpack.c.h.b16 %v983
        %v996 = vpack.c.b16 %v992, %v988
        %v997 = vpack.c.b16 %v993, %v989
        %v998 = vpack.c.b16 %v994, %v990
        %v999 = vpack.c.b16 %v995, %v991
        %v1001 = vshrl.u32 %v996, 16
        %v1003 = vrot.slane %v1001, 4
        %v1004 = vshll.u32 %v996, 16
        %v1006 = vrot.slane %v1004, 5
        %v1007 = vor.u32 %v1003, %v1006
        %v1009 = vshrl.u32 %v997, 16
        %v1011 = vrot.slane %v1009, 4
        %v1012 = vshll.u32 %v997, 16
        %v1014 = vrot.slane %v1012, 5
        %v1015 = vor.u32 %v1011, %v1014
        %v1017 = vshrl.u32 %v998, 16
        %v1019 = vrot.slane %v1017, 4
        %v1020 = vshll.u32 %v998, 16
        %v1022 = vrot.slane %v1020, 5
        %v1023 = vor.u32 %v1019, %v1022
        %v1025 = vshrl.u32 %v999, 16
        %v1027 = vrot.slane %v1025, 4
        %v1028 = vshll.u32 %v999, 16
        %v1030 = vrot.slane %v1028, 5
        %v1031 = vor.u32 %v1027, %v1030
        %1036 = vst [vmem:[#allocation4 + $0x80] sm:$0xf0] %v1007
        %1037 = vst [vmem:[#allocation4 + $0x88] sm:$0xf0] %v1015
        %1038 = vst [vmem:[#allocation4 + $0x90] sm:$0xf0] %v1023
        %1039 = vst [vmem:[#allocation4 + $0x98] sm:$0xf0] %v1031
        %v1040 = vld [vmem:[%s439] sm:$0xee]
        %v1041 = vld [vmem:[%s439 + $0x8] sm:$0xee]
        %v1042 = vld [vmem:[%s439 + $0x10] sm:$0x11]
        %v1043 = vld [vmem:[%s439 + $0x18] sm:$0x11]
        %v1048 = vunpack.c.l.b16 %v1040
        %v1049 = vunpack.c.h.b16 %v1040
        %v1050 = vunpack.c.l.b16 %v1041
        %v1051 = vunpack.c.h.b16 %v1041
        %v1052 = vunpack.c.l.b16 %v1042
        %v1053 = vunpack.c.h.b16 %v1042
        %v1054 = vunpack.c.l.b16 %v1043
        %v1055 = vunpack.c.h.b16 %v1043
        %v1056 = vpack.c.b16 %v1052, %v1048
        %v1057 = vpack.c.b16 %v1053, %v1049
        %v1058 = vpack.c.b16 %v1054, %v1050
        %v1059 = vpack.c.b16 %v1055, %v1051
        %v1060 = vrot.slane %v1056, 5
        %v1061 = vrot.slane %v1057, 5
        %v1062 = vrot.slane %v1058, 5
        %v1063 = vrot.slane %v1059, 5
        %1068 = vst [vmem:[#allocation4 + $0xa0] sm:$0xf0] %v1060
        %1069 = vst [vmem:[#allocation4 + $0xa8] sm:$0xf0] %v1061
        %1070 = vst [vmem:[#allocation4 + $0xb0] sm:$0xf0] %v1062
        %1071 = vst [vmem:[#allocation4 + $0xb8] sm:$0xf0] %v1063
        %v1072 = vld [vmem:[%s475] sm:$0xff]
        %v1073 = vld [vmem:[%s475 + $0x8] sm:$0xff]
        %v1076 = vunpack.c.l.b16 %v1072
        %v1077 = vunpack.c.h.b16 %v1072
        %v1078 = vunpack.c.l.b16 %v1073
        %v1079 = vunpack.c.h.b16 %v1073
        %v1080 = vpack.c.b16 %v1076, %v1076
        %v1081 = vpack.c.b16 %v1077, %v1077
        %v1082 = vpack.c.b16 %v1078, %v1078
        %v1083 = vpack.c.b16 %v1079, %v1079
        %1088 = vst [vmem:[#allocation4 + $0xc0] sm:$0xf0] %v1080
        %1089 = vst [vmem:[#allocation4 + $0xc8] sm:$0xf0] %v1081
        %1090 = vst [vmem:[#allocation4 + $0xd0] sm:$0xf0] %v1082
        %1091 = vst [vmem:[#allocation4 + $0xd8] sm:$0xf0] %v1083
        %v1092 = vld [vmem:[%s475] sm:$0xff]
        %v1093 = vld [vmem:[%s475 + $0x8] sm:$0xff]
        %v1094 = vld [vmem:[%s475 + $0x10] sm:$0x11]
        %v1095 = vld [vmem:[%s475 + $0x18] sm:$0x11]
        %v1100 = vunpack.c.l.b16 %v1092
        %v1101 = vunpack.c.h.b16 %v1092
        %v1102 = vunpack.c.l.b16 %v1093
        %v1103 = vunpack.c.h.b16 %v1093
        %v1104 = vunpack.c.l.b16 %v1094
        %v1105 = vunpack.c.h.b16 %v1094
        %v1106 = vunpack.c.l.b16 %v1095
        %v1107 = vunpack.c.h.b16 %v1095
        %v1108 = vpack.c.b16 %v1104, %v1100
        %v1109 = vpack.c.b16 %v1105, %v1101
        %v1110 = vpack.c.b16 %v1106, %v1102
        %v1111 = vpack.c.b16 %v1107, %v1103
        %v1113 = vshrl.u32 %v1108, 16
        %v1115 = vrot.slane %v1113, 4
        %v1116 = vshll.u32 %v1108, 16
        %v1118 = vrot.slane %v1116, 5
        %v1119 = vor.u32 %v1115, %v1118
        %v1121 = vshrl.u32 %v1109, 16
        %v1123 = vrot.slane %v1121, 4
        %v1124 = vshll.u32 %v1109, 16
        %v1126 = vrot.slane %v1124, 5
        %v1127 = vor.u32 %v1123, %v1126
        %v1129 = vshrl.u32 %v1110, 16
        %v1131 = vrot.slane %v1129, 4
        %v1132 = vshll.u32 %v1110, 16
        %v1134 = vrot.slane %v1132, 5
        %v1135 = vor.u32 %v1131, %v1134
        %v1137 = vshrl.u32 %v1111, 16
        %v1139 = vrot.slane %v1137, 4
        %v1140 = vshll.u32 %v1111, 16
        %v1142 = vrot.slane %v1140, 5
        %v1143 = vor.u32 %v1139, %v1142
        %1148 = vst [vmem:[#allocation4 + $0xe0] sm:$0xf0] %v1119
        %1149 = vst [vmem:[#allocation4 + $0xe8] sm:$0xf0] %v1127
        %1150 = vst [vmem:[#allocation4 + $0xf0] sm:$0xf0] %v1135
        %1151 = vst [vmem:[#allocation4 + $0xf8] sm:$0xf0] %v1143
        %v1152 = vld [vmem:[%s475] sm:$0xee]
        %v1153 = vld [vmem:[%s475 + $0x8] sm:$0xee]
        %v1154 = vld [vmem:[%s475 + $0x10] sm:$0x11]
        %v1155 = vld [vmem:[%s475 + $0x18] sm:$0x11]
        %v1160 = vunpack.c.l.b16 %v1152
        %v1161 = vunpack.c.h.b16 %v1152
        %v1162 = vunpack.c.l.b16 %v1153
        %v1163 = vunpack.c.h.b16 %v1153
        %v1164 = vunpack.c.l.b16 %v1154
        %v1165 = vunpack.c.h.b16 %v1154
        %v1166 = vunpack.c.l.b16 %v1155
        %v1167 = vunpack.c.h.b16 %v1155
        %v1168 = vpack.c.b16 %v1164, %v1160
        %v1169 = vpack.c.b16 %v1165, %v1161
        %v1170 = vpack.c.b16 %v1166, %v1162
        %v1171 = vpack.c.b16 %v1167, %v1163
        %v1172 = vrot.slane %v1168, 5
        %v1173 = vrot.slane %v1169, 5
        %v1174 = vrot.slane %v1170, 5
        %v1175 = vrot.slane %v1171, 5
        %1180 = vst [vmem:[#allocation4 + $0x100] sm:$0xf0] %v1172
        %1181 = vst [vmem:[#allocation4 + $0x108] sm:$0xf0] %v1173
        %1182 = vst [vmem:[#allocation4 + $0x110] sm:$0xf0] %v1174
        %1183 = vst [vmem:[#allocation4 + $0x118] sm:$0xf0] %v1175
        %v1184 = vld [vmem:[%s439] sm:$0xff]
        %v1185 = vld [vmem:[%s439 + $0x8] sm:$0xff]
        %v1188 = vunpack.c.l.b16 %v1184
        %v1189 = vunpack.c.h.b16 %v1184
        %v1190 = vunpack.c.l.b16 %v1185
        %v1191 = vunpack.c.h.b16 %v1185
        %v1192 = vpack.c.b16 %v1188, %v1188
        %v1193 = vpack.c.b16 %v1189, %v1189
        %v1194 = vpack.c.b16 %v1190, %v1190
        %v1195 = vpack.c.b16 %v1191, %v1191
        %1200 = vst [vmem:[#allocation4 + $0x120] sm:$0xf] %v1192
        %1201 = vst [vmem:[#allocation4 + $0x128] sm:$0xf] %v1193
        %1202 = vst [vmem:[#allocation4 + $0x130] sm:$0xf] %v1194
        %1203 = vst [vmem:[#allocation4 + $0x138] sm:$0xf] %v1195
        %v1204 = vld [vmem:[%s439] sm:$0xff]
        %v1205 = vld [vmem:[%s439 + $0x8] sm:$0xff]
        %v1206 = vld [vmem:[%s439 + $0x10] sm:$0x11]
        %v1207 = vld [vmem:[%s439 + $0x18] sm:$0x11]
        %v1212 = vunpack.c.l.b16 %v1204
        %v1213 = vunpack.c.h.b16 %v1204
        %v1214 = vunpack.c.l.b16 %v1205
        %v1215 = vunpack.c.h.b16 %v1205
        %v1216 = vunpack.c.l.b16 %v1206
        %v1217 = vunpack.c.h.b16 %v1206
        %v1218 = vunpack.c.l.b16 %v1207
        %v1219 = vunpack.c.h.b16 %v1207
        %v1220 = vpack.c.b16 %v1216, %v1212
        %v1221 = vpack.c.b16 %v1217, %v1213
        %v1222 = vpack.c.b16 %v1218, %v1214
        %v1223 = vpack.c.b16 %v1219, %v1215
        %v1225 = vshrl.u32 %v1220, 16
        %v1227 = vshll.u32 %v1220, 16
        %v1229 = vrot.slane %v1227, 1
        %v1230 = vor.u32 %v1225, %v1229
        %v1232 = vshrl.u32 %v1221, 16
        %v1234 = vshll.u32 %v1221, 16
        %v1236 = vrot.slane %v1234, 1
        %v1237 = vor.u32 %v1232, %v1236
        %v1239 = vshrl.u32 %v1222, 16
        %v1241 = vshll.u32 %v1222, 16
        %v1243 = vrot.slane %v1241, 1
        %v1244 = vor.u32 %v1239, %v1243
        %v1246 = vshrl.u32 %v1223, 16
        %v1248 = vshll.u32 %v1223, 16
        %v1250 = vrot.slane %v1248, 1
        %v1251 = vor.u32 %v1246, %v1250
        %1256 = vst [vmem:[#allocation4 + $0x140] sm:$0xf] %v1230
        %1257 = vst [vmem:[#allocation4 + $0x148] sm:$0xf] %v1237
        %1258 = vst [vmem:[#allocation4 + $0x150] sm:$0xf] %v1244
        %1259 = vst [vmem:[#allocation4 + $0x158] sm:$0xf] %v1251
        %v1260 = vld [vmem:[%s439] sm:$0xee]
        %v1261 = vld [vmem:[%s439 + $0x8] sm:$0xee]
        %v1262 = vld [vmem:[%s439 + $0x10] sm:$0x11]
        %v1263 = vld [vmem:[%s439 + $0x18] sm:$0x11]
        %v1268 = vunpack.c.l.b16 %v1260
        %v1269 = vunpack.c.h.b16 %v1260
        %v1270 = vunpack.c.l.b16 %v1261
        %v1271 = vunpack.c.h.b16 %v1261
        %v1272 = vunpack.c.l.b16 %v1262
        %v1273 = vunpack.c.h.b16 %v1262
        %v1274 = vunpack.c.l.b16 %v1263
        %v1275 = vunpack.c.h.b16 %v1263
        %v1276 = vpack.c.b16 %v1272, %v1268
        %v1277 = vpack.c.b16 %v1273, %v1269
        %v1278 = vpack.c.b16 %v1274, %v1270
        %v1279 = vpack.c.b16 %v1275, %v1271
        %v1280 = vrot.slane %v1276, 1
        %v1281 = vrot.slane %v1277, 1
        %v1282 = vrot.slane %v1278, 1
        %v1283 = vrot.slane %v1279, 1
        %1288 = vst [vmem:[#allocation4 + $0x160] sm:$0xf] %v1280
        %1289 = vst [vmem:[#allocation4 + $0x168] sm:$0xf] %v1281
        %1290 = vst [vmem:[#allocation4 + $0x170] sm:$0xf] %v1282
        %1291 = vst [vmem:[#allocation4 + $0x178] sm:$0xf] %v1283
        %v1292 = vld [vmem:[%s475] sm:$0xff]
        %v1293 = vld [vmem:[%s475 + $0x8] sm:$0xff]
        %v1296 = vunpack.c.l.b16 %v1292
        %v1297 = vunpack.c.h.b16 %v1292
        %v1298 = vunpack.c.l.b16 %v1293
        %v1299 = vunpack.c.h.b16 %v1293
        %v1300 = vpack.c.b16 %v1296, %v1296
        %v1301 = vpack.c.b16 %v1297, %v1297
        %v1302 = vpack.c.b16 %v1298, %v1298
        %v1303 = vpack.c.b16 %v1299, %v1299
        %1308 = vst [vmem:[#allocation4 + $0x180] sm:$0xf] %v1300
        %1309 = vst [vmem:[#allocation4 + $0x188] sm:$0xf] %v1301
        %1310 = vst [vmem:[#allocation4 + $0x190] sm:$0xf] %v1302
        %1311 = vst [vmem:[#allocation4 + $0x198] sm:$0xf] %v1303
        %v1312 = vld [vmem:[%s475] sm:$0xff]
        %v1313 = vld [vmem:[%s475 + $0x8] sm:$0xff]
        %v1314 = vld [vmem:[%s475 + $0x10] sm:$0x11]
        %v1315 = vld [vmem:[%s475 + $0x18] sm:$0x11]
        %v1320 = vunpack.c.l.b16 %v1312
        %v1321 = vunpack.c.h.b16 %v1312
        %v1322 = vunpack.c.l.b16 %v1313
        %v1323 = vunpack.c.h.b16 %v1313
        %v1324 = vunpack.c.l.b16 %v1314
        %v1325 = vunpack.c.h.b16 %v1314
        %v1326 = vunpack.c.l.b16 %v1315
        %v1327 = vunpack.c.h.b16 %v1315
        %v1328 = vpack.c.b16 %v1324, %v1320
        %v1329 = vpack.c.b16 %v1325, %v1321
        %v1330 = vpack.c.b16 %v1326, %v1322
        %v1331 = vpack.c.b16 %v1327, %v1323
        %v1333 = vshrl.u32 %v1328, 16
        %v1335 = vshll.u32 %v1328, 16
        %v1337 = vrot.slane %v1335, 1
        %v1338 = vor.u32 %v1333, %v1337
        %v1340 = vshrl.u32 %v1329, 16
        %v1342 = vshll.u32 %v1329, 16
        %v1344 = vrot.slane %v1342, 1
        %v1345 = vor.u32 %v1340, %v1344
        %v1347 = vshrl.u32 %v1330, 16
        %v1349 = vshll.u32 %v1330, 16
        %v1351 = vrot.slane %v1349, 1
        %v1352 = vor.u32 %v1347, %v1351
        %v1354 = vshrl.u32 %v1331, 16
        %v1356 = vshll.u32 %v1331, 16
        %v1358 = vrot.slane %v1356, 1
        %v1359 = vor.u32 %v1354, %v1358
        %1364 = vst [vmem:[#allocation4 + $0x1a0] sm:$0xf] %v1338
        %1365 = vst [vmem:[#allocation4 + $0x1a8] sm:$0xf] %v1345
        %1366 = vst [vmem:[#allocation4 + $0x1b0] sm:$0xf] %v1352
        %1367 = vst [vmem:[#allocation4 + $0x1b8] sm:$0xf] %v1359
        %v1368 = vld [vmem:[%s475] sm:$0xee]
        %v1369 = vld [vmem:[%s475 + $0x8] sm:$0xee]
        %v1370 = vld [vmem:[%s475 + $0x10] sm:$0x11]
        %v1371 = vld [vmem:[%s475 + $0x18] sm:$0x11]
        %v1376 = vunpack.c.l.b16 %v1368
        %v1377 = vunpack.c.h.b16 %v1368
        %v1378 = vunpack.c.l.b16 %v1369
        %v1379 = vunpack.c.h.b16 %v1369
        %v1380 = vunpack.c.l.b16 %v1370
        %v1381 = vunpack.c.h.b16 %v1370
        %v1382 = vunpack.c.l.b16 %v1371
        %v1383 = vunpack.c.h.b16 %v1371
        %v1384 = vpack.c.b16 %v1380, %v1376
        %v1385 = vpack.c.b16 %v1381, %v1377
        %v1386 = vpack.c.b16 %v1382, %v1378
        %v1387 = vpack.c.b16 %v1383, %v1379
        %v1388 = vrot.slane %v1384, 1
        %v1389 = vrot.slane %v1385, 1
        %v1390 = vrot.slane %v1386, 1
        %v1391 = vrot.slane %v1387, 1
        %1396 = vst [vmem:[#allocation4 + $0x1c0] sm:$0xf] %v1388
        %1397 = vst [vmem:[#allocation4 + $0x1c8] sm:$0xf] %v1389
        %1398 = vst [vmem:[#allocation4 + $0x1d0] sm:$0xf] %v1390
        %1399 = vst [vmem:[#allocation4 + $0x1d8] sm:$0xf] %v1391
        %v1400 = vld [vmem:[%s511] sm:$0xff]
        %v1401 = vld [vmem:[%s511 + $0x8] sm:$0xff]
        %v1404 = vunpack.c.l.b16 %v1400
        %v1405 = vunpack.c.h.b16 %v1400
        %v1406 = vunpack.c.l.b16 %v1401
        %v1407 = vunpack.c.h.b16 %v1401
        %v1408 = vpack.c.b16 %v1404, %v1404
        %v1409 = vpack.c.b16 %v1405, %v1405
        %v1410 = vpack.c.b16 %v1406, %v1406
        %v1411 = vpack.c.b16 %v1407, %v1407
        %1416 = vst [vmem:[#allocation4 + $0x1e0] sm:$0xf] %v1408
        %1417 = vst [vmem:[#allocation4 + $0x1e8] sm:$0xf] %v1409
        %1418 = vst [vmem:[#allocation4 + $0x1f0] sm:$0xf] %v1410
        %1419 = vst [vmem:[#allocation4 + $0x1f8] sm:$0xf] %v1411
        %v1420 = vld [vmem:[%s511] sm:$0xff]
        %v1421 = vld [vmem:[%s511 + $0x8] sm:$0xff]
        %v1422 = vld [vmem:[%s511 + $0x10] sm:$0x11]
        %v1423 = vld [vmem:[%s511 + $0x18] sm:$0x11]
        %v1428 = vunpack.c.l.b16 %v1420
        %v1429 = vunpack.c.h.b16 %v1420
        %v1430 = vunpack.c.l.b16 %v1421
        %v1431 = vunpack.c.h.b16 %v1421
        %v1432 = vunpack.c.l.b16 %v1422
        %v1433 = vunpack.c.h.b16 %v1422
        %v1434 = vunpack.c.l.b16 %v1423
        %v1435 = vunpack.c.h.b16 %v1423
        %v1436 = vpack.c.b16 %v1432, %v1428
        %v1437 = vpack.c.b16 %v1433, %v1429
        %v1438 = vpack.c.b16 %v1434, %v1430
        %v1439 = vpack.c.b16 %v1435, %v1431
        %v1441 = vshrl.u32 %v1436, 16
        %v1443 = vshll.u32 %v1436, 16
        %v1445 = vrot.slane %v1443, 1
        %v1446 = vor.u32 %v1441, %v1445
        %v1448 = vshrl.u32 %v1437, 16
        %v1450 = vshll.u32 %v1437, 16
        %v1452 = vrot.slane %v1450, 1
        %v1453 = vor.u32 %v1448, %v1452
        %v1455 = vshrl.u32 %v1438, 16
        %v1457 = vshll.u32 %v1438, 16
        %v1459 = vrot.slane %v1457, 1
        %v1460 = vor.u32 %v1455, %v1459
        %v1462 = vshrl.u32 %v1439, 16
        %v1464 = vshll.u32 %v1439, 16
        %v1466 = vrot.slane %v1464, 1
        %v1467 = vor.u32 %v1462, %v1466
        %1472 = vst [vmem:[#allocation4 + $0x200] sm:$0xf] %v1446
        %1473 = vst [vmem:[#allocation4 + $0x208] sm:$0xf] %v1453
        %1474 = vst [vmem:[#allocation4 + $0x210] sm:$0xf] %v1460
        %1475 = vst [vmem:[#allocation4 + $0x218] sm:$0xf] %v1467
        %v1476 = vld [vmem:[%s511] sm:$0xee]
        %v1477 = vld [vmem:[%s511 + $0x8] sm:$0xee]
        %v1478 = vld [vmem:[%s511 + $0x10] sm:$0x11]
        %v1479 = vld [vmem:[%s511 + $0x18] sm:$0x11]
        %v1484 = vunpack.c.l.b16 %v1476
        %v1485 = vunpack.c.h.b16 %v1476
        %v1486 = vunpack.c.l.b16 %v1477
        %v1487 = vunpack.c.h.b16 %v1477
        %v1488 = vunpack.c.l.b16 %v1478
        %v1489 = vunpack.c.h.b16 %v1478
        %v1490 = vunpack.c.l.b16 %v1479
        %v1491 = vunpack.c.h.b16 %v1479
        %v1492 = vpack.c.b16 %v1488, %v1484
        %v1493 = vpack.c.b16 %v1489, %v1485
        %v1494 = vpack.c.b16 %v1490, %v1486
        %v1495 = vpack.c.b16 %v1491, %v1487
        %v1496 = vrot.slane %v1492, 1
        %v1497 = vrot.slane %v1493, 1
        %v1498 = vrot.slane %v1494, 1
        %v1499 = vrot.slane %v1495, 1
        %1504 = vst [vmem:[#allocation4 + $0x220] sm:$0xf] %v1496
        %1505 = vst [vmem:[#allocation4 + $0x228] sm:$0xf] %v1497
        %1506 = vst [vmem:[#allocation4 + $0x230] sm:$0xf] %v1498
        %1507 = vst [vmem:[#allocation4 + $0x238] sm:$0xf] %v1499
        %v1508 = vld [vmem:[%s475] sm:$0xff]
        %v1509 = vld [vmem:[%s475 + $0x8] sm:$0xff]
        %v1512 = vunpack.c.l.b16 %v1508
        %v1513 = vunpack.c.h.b16 %v1508
        %v1514 = vunpack.c.l.b16 %v1509
        %v1515 = vunpack.c.h.b16 %v1509
        %v1516 = vpack.c.b16 %v1512, %v1512
        %v1517 = vpack.c.b16 %v1513, %v1513
        %v1518 = vpack.c.b16 %v1514, %v1514
        %v1519 = vpack.c.b16 %v1515, %v1515
        %1524 = vst [vmem:[#allocation4 + $0x120] sm:$0xf0] %v1516
        %1525 = vst [vmem:[#allocation4 + $0x128] sm:$0xf0] %v1517
        %1526 = vst [vmem:[#allocation4 + $0x130] sm:$0xf0] %v1518
        %1527 = vst [vmem:[#allocation4 + $0x138] sm:$0xf0] %v1519
        %v1528 = vld [vmem:[%s475] sm:$0xff]
        %v1529 = vld [vmem:[%s475 + $0x8] sm:$0xff]
        %v1530 = vld [vmem:[%s475 + $0x10] sm:$0x11]
        %v1531 = vld [vmem:[%s475 + $0x18] sm:$0x11]
        %v1536 = vunpack.c.l.b16 %v1528
        %v1537 = vunpack.c.h.b16 %v1528
        %v1538 = vunpack.c.l.b16 %v1529
        %v1539 = vunpack.c.h.b16 %v1529
        %v1540 = vunpack.c.l.b16 %v1530
        %v1541 = vunpack.c.h.b16 %v1530
        %v1542 = vunpack.c.l.b16 %v1531
        %v1543 = vunpack.c.h.b16 %v1531
        %v1544 = vpack.c.b16 %v1540, %v1536
        %v1545 = vpack.c.b16 %v1541, %v1537
        %v1546 = vpack.c.b16 %v1542, %v1538
        %v1547 = vpack.c.b16 %v1543, %v1539
        %v1549 = vshrl.u32 %v1544, 16
        %v1551 = vrot.slane %v1549, 4
        %v1552 = vshll.u32 %v1544, 16
        %v1554 = vrot.slane %v1552, 5
        %v1555 = vor.u32 %v1551, %v1554
        %v1557 = vshrl.u32 %v1545, 16
        %v1559 = vrot.slane %v1557, 4
        %v1560 = vshll.u32 %v1545, 16
        %v1562 = vrot.slane %v1560, 5
        %v1563 = vor.u32 %v1559, %v1562
        %v1565 = vshrl.u32 %v1546, 16
        %v1567 = vrot.slane %v1565, 4
        %v1568 = vshll.u32 %v1546, 16
        %v1570 = vrot.slane %v1568, 5
        %v1571 = vor.u32 %v1567, %v1570
        %v1573 = vshrl.u32 %v1547, 16
        %v1575 = vrot.slane %v1573, 4
        %v1576 = vshll.u32 %v1547, 16
        %v1578 = vrot.slane %v1576, 5
        %v1579 = vor.u32 %v1575, %v1578
        %1584 = vst [vmem:[#allocation4 + $0x140] sm:$0xf0] %v1555
        %1585 = vst [vmem:[#allocation4 + $0x148] sm:$0xf0] %v1563
        %1586 = vst [vmem:[#allocation4 + $0x150] sm:$0xf0] %v1571
        %1587 = vst [vmem:[#allocation4 + $0x158] sm:$0xf0] %v1579
        %v1588 = vld [vmem:[%s475] sm:$0xee]
        %v1589 = vld [vmem:[%s475 + $0x8] sm:$0xee]
        %v1590 = vld [vmem:[%s475 + $0x10] sm:$0x11]
        %v1591 = vld [vmem:[%s475 + $0x18] sm:$0x11]
        %v1596 = vunpack.c.l.b16 %v1588
        %v1597 = vunpack.c.h.b16 %v1588
        %v1598 = vunpack.c.l.b16 %v1589
        %v1599 = vunpack.c.h.b16 %v1589
        %v1600 = vunpack.c.l.b16 %v1590
        %v1601 = vunpack.c.h.b16 %v1590
        %v1602 = vunpack.c.l.b16 %v1591
        %v1603 = vunpack.c.h.b16 %v1591
        %v1604 = vpack.c.b16 %v1600, %v1596
        %v1605 = vpack.c.b16 %v1601, %v1597
        %v1606 = vpack.c.b16 %v1602, %v1598
        %v1607 = vpack.c.b16 %v1603, %v1599
        %v1608 = vrot.slane %v1604, 5
        %v1609 = vrot.slane %v1605, 5
        %v1610 = vrot.slane %v1606, 5
        %v1611 = vrot.slane %v1607, 5
        %1616 = vst [vmem:[#allocation4 + $0x160] sm:$0xf0] %v1608
        %1617 = vst [vmem:[#allocation4 + $0x168] sm:$0xf0] %v1609
        %1618 = vst [vmem:[#allocation4 + $0x170] sm:$0xf0] %v1610
        %1619 = vst [vmem:[#allocation4 + $0x178] sm:$0xf0] %v1611
        %v1620 = vld [vmem:[%s511] sm:$0xff]
        %v1621 = vld [vmem:[%s511 + $0x8] sm:$0xff]
        %v1624 = vunpack.c.l.b16 %v1620
        %v1625 = vunpack.c.h.b16 %v1620
        %v1626 = vunpack.c.l.b16 %v1621
        %v1627 = vunpack.c.h.b16 %v1621
        %v1628 = vpack.c.b16 %v1624, %v1624
        %v1629 = vpack.c.b16 %v1625, %v1625
        %v1630 = vpack.c.b16 %v1626, %v1626
        %v1631 = vpack.c.b16 %v1627, %v1627
        %1636 = vst [vmem:[#allocation4 + $0x180] sm:$0xf0] %v1628
        %1637 = vst [vmem:[#allocation4 + $0x188] sm:$0xf0] %v1629
        %1638 = vst [vmem:[#allocation4 + $0x190] sm:$0xf0] %v1630
        %1639 = vst [vmem:[#allocation4 + $0x198] sm:$0xf0] %v1631
        %v1640 = vld [vmem:[%s511] sm:$0xff]
        %v1641 = vld [vmem:[%s511 + $0x8] sm:$0xff]
        %v1642 = vld [vmem:[%s511 + $0x10] sm:$0x11]
        %v1643 = vld [vmem:[%s511 + $0x18] sm:$0x11]
        %v1648 = vunpack.c.l.b16 %v1640
        %v1649 = vunpack.c.h.b16 %v1640
        %v1650 = vunpack.c.l.b16 %v1641
        %v1651 = vunpack.c.h.b16 %v1641
        %v1652 = vunpack.c.l.b16 %v1642
        %v1653 = vunpack.c.h.b16 %v1642
        %v1654 = vunpack.c.l.b16 %v1643
        %v1655 = vunpack.c.h.b16 %v1643
        %v1656 = vpack.c.b16 %v1652, %v1648
        %v1657 = vpack.c.b16 %v1653, %v1649
        %v1658 = vpack.c.b16 %v1654, %v1650
        %v1659 = vpack.c.b16 %v1655, %v1651
        %v1661 = vshrl.u32 %v1656, 16
        %v1663 = vrot.slane %v1661, 4
        %v1664 = vshll.u32 %v1656, 16
        %v1666 = vrot.slane %v1664, 5
        %v1667 = vor.u32 %v1663, %v1666
        %v1669 = vshrl.u32 %v1657, 16
        %v1671 = vrot.slane %v1669, 4
        %v1672 = vshll.u32 %v1657, 16
        %v1674 = vrot.slane %v1672, 5
        %v1675 = vor.u32 %v1671, %v1674
        %v1677 = vshrl.u32 %v1658, 16
        %v1679 = vrot.slane %v1677, 4
        %v1680 = vshll.u32 %v1658, 16
        %v1682 = vrot.slane %v1680, 5
        %v1683 = vor.u32 %v1679, %v1682
        %v1685 = vshrl.u32 %v1659, 16
        %v1687 = vrot.slane %v1685, 4
        %v1688 = vshll.u32 %v1659, 16
        %v1690 = vrot.slane %v1688, 5
        %v1691 = vor.u32 %v1687, %v1690
        %1696 = vst [vmem:[#allocation4 + $0x1a0] sm:$0xf0] %v1667
        %1697 = vst [vmem:[#allocation4 + $0x1a8] sm:$0xf0] %v1675
        %1698 = vst [vmem:[#allocation4 + $0x1b0] sm:$0xf0] %v1683
        %1699 = vst [vmem:[#allocation4 + $0x1b8] sm:$0xf0] %v1691
        %v1700 = vld [vmem:[%s511] sm:$0xee]
        %v1701 = vld [vmem:[%s511 + $0x8] sm:$0xee]
        %v1702 = vld [vmem:[%s511 + $0x10] sm:$0x11]
        %v1703 = vld [vmem:[%s511 + $0x18] sm:$0x11]
        %v1708 = vunpack.c.l.b16 %v1700
        %v1709 = vunpack.c.h.b16 %v1700
        %v1710 = vunpack.c.l.b16 %v1701
        %v1711 = vunpack.c.h.b16 %v1701
        %v1712 = vunpack.c.l.b16 %v1702
        %v1713 = vunpack.c.h.b16 %v1702
        %v1714 = vunpack.c.l.b16 %v1703
        %v1715 = vunpack.c.h.b16 %v1703
        %v1716 = vpack.c.b16 %v1712, %v1708
        %v1717 = vpack.c.b16 %v1713, %v1709
        %v1718 = vpack.c.b16 %v1714, %v1710
        %v1719 = vpack.c.b16 %v1715, %v1711
        %v1720 = vrot.slane %v1716, 5
        %v1721 = vrot.slane %v1717, 5
        %v1722 = vrot.slane %v1718, 5
        %v1723 = vrot.slane %v1719, 5
        %1728 = vst [vmem:[#allocation4 + $0x1c0] sm:$0xf0] %v1720
        %1729 = vst [vmem:[#allocation4 + $0x1c8] sm:$0xf0] %v1721
        %1730 = vst [vmem:[#allocation4 + $0x1d0] sm:$0xf0] %v1722
        %1731 = vst [vmem:[#allocation4 + $0x1d8] sm:$0xf0] %v1723
        %s1732 = scalar_lea.vmem [#allocation2], 160
        %v1733 = vld [vmem:[%s1732] sm:$0xff]
        %v1734 = vld [vmem:[%s1732 + $0x8] sm:$0xff]
        %v1737 = vunpack.c.l.b16 %v1733
        %v1738 = vunpack.c.h.b16 %v1733
        %v1739 = vunpack.c.l.b16 %v1734
        %v1740 = vunpack.c.h.b16 %v1734
        %v1741 = vpack.c.b16 %v1737, %v1737
        %v1742 = vpack.c.b16 %v1738, %v1738
        %v1743 = vpack.c.b16 %v1739, %v1739
        %v1744 = vpack.c.b16 %v1740, %v1740
        %1749 = vst [vmem:[#allocation4 + $0x1e0] sm:$0xf0] %v1741
        %1750 = vst [vmem:[#allocation4 + $0x1e8] sm:$0xf0] %v1742
        %1751 = vst [vmem:[#allocation4 + $0x1f0] sm:$0xf0] %v1743
        %1752 = vst [vmem:[#allocation4 + $0x1f8] sm:$0xf0] %v1744
        %v1753 = vld [vmem:[%s1732] sm:$0xff]
        %v1754 = vld [vmem:[%s1732 + $0x8] sm:$0xff]
        %v1755 = vld [vmem:[%s1732 + $0x10] sm:$0x11]
        %v1756 = vld [vmem:[%s1732 + $0x18] sm:$0x11]
        %v1761 = vunpack.c.l.b16 %v1753
        %v1762 = vunpack.c.h.b16 %v1753
        %v1763 = vunpack.c.l.b16 %v1754
        %v1764 = vunpack.c.h.b16 %v1754
        %v1765 = vunpack.c.l.b16 %v1755
        %v1766 = vunpack.c.h.b16 %v1755
        %v1767 = vunpack.c.l.b16 %v1756
        %v1768 = vunpack.c.h.b16 %v1756
        %v1769 = vpack.c.b16 %v1765, %v1761
        %v1770 = vpack.c.b16 %v1766, %v1762
        %v1771 = vpack.c.b16 %v1767, %v1763
        %v1772 = vpack.c.b16 %v1768, %v1764
        %v1774 = vshrl.u32 %v1769, 16
        %v1776 = vrot.slane %v1774, 4
        %v1777 = vshll.u32 %v1769, 16
        %v1779 = vrot.slane %v1777, 5
        %v1780 = vor.u32 %v1776, %v1779
        %v1782 = vshrl.u32 %v1770, 16
        %v1784 = vrot.slane %v1782, 4
        %v1785 = vshll.u32 %v1770, 16
        %v1787 = vrot.slane %v1785, 5
        %v1788 = vor.u32 %v1784, %v1787
        %v1790 = vshrl.u32 %v1771, 16
        %v1792 = vrot.slane %v1790, 4
        %v1793 = vshll.u32 %v1771, 16
        %v1795 = vrot.slane %v1793, 5
        %v1796 = vor.u32 %v1792, %v1795
        %v1798 = vshrl.u32 %v1772, 16
        %v1800 = vrot.slane %v1798, 4
        %v1801 = vshll.u32 %v1772, 16
        %v1803 = vrot.slane %v1801, 5
        %v1804 = vor.u32 %v1800, %v1803
        %1809 = vst [vmem:[#allocation4 + $0x200] sm:$0xf0] %v1780
        %1810 = vst [vmem:[#allocation4 + $0x208] sm:$0xf0] %v1788
        %1811 = vst [vmem:[#allocation4 + $0x210] sm:$0xf0] %v1796
        %1812 = vst [vmem:[#allocation4 + $0x218] sm:$0xf0] %v1804
        %v1813 = vld [vmem:[%s1732] sm:$0xee]
        %v1814 = vld [vmem:[%s1732 + $0x8] sm:$0xee]
        %v1815 = vld [vmem:[%s1732 + $0x10] sm:$0x11]
        %v1816 = vld [vmem:[%s1732 + $0x18] sm:$0x11]
        %v1821 = vunpack.c.l.b16 %v1813
        %v1822 = vunpack.c.h.b16 %v1813
        %v1823 = vunpack.c.l.b16 %v1814
        %v1824 = vunpack.c.h.b16 %v1814
        %v1825 = vunpack.c.l.b16 %v1815
        %v1826 = vunpack.c.h.b16 %v1815
        %v1827 = vunpack.c.l.b16 %v1816
        %v1828 = vunpack.c.h.b16 %v1816
        %v1829 = vpack.c.b16 %v1825, %v1821
        %v1830 = vpack.c.b16 %v1826, %v1822
        %v1831 = vpack.c.b16 %v1827, %v1823
        %v1832 = vpack.c.b16 %v1828, %v1824
        %v1833 = vrot.slane %v1829, 5
        %v1834 = vrot.slane %v1830, 5
        %v1835 = vrot.slane %v1831, 5
        %v1836 = vrot.slane %v1832, 5
        %1841 = vst [vmem:[#allocation4 + $0x220] sm:$0xf0] %v1833
        %1842 = vst [vmem:[#allocation4 + $0x228] sm:$0xf0] %v1834
        %1843 = vst [vmem:[#allocation4 + $0x230] sm:$0xf0] %v1835
        %1844 = vst [vmem:[#allocation4 + $0x238] sm:$0xf0] %v1836
        %v1845 = vld [vmem:[#allocation4] sm:$0xff]
        %v1846 = vld [vmem:[#allocation4 + $0x8] sm:$0xff]
        %v1847 = vld [vmem:[#allocation4 + $0x10] sm:$0xff]
        %v1848 = vld [vmem:[#allocation4 + $0x18] sm:$0xff]
        %v1849 = vld [vmem:[#allocation4 + $0x20] sm:$0xff]
        %v1850 = vld [vmem:[#allocation4 + $0x28] sm:$0xff]
        %v1851 = vld [vmem:[#allocation4 + $0x30] sm:$0xff]
        %v1852 = vld [vmem:[#allocation4 + $0x38] sm:$0xff]
        %v1853 = vld [vmem:[#allocation4 + $0x40] sm:$0xff]
        %v1854 = vld [vmem:[#allocation4 + $0x48] sm:$0xff]
        %v1855 = vld [vmem:[#allocation4 + $0x50] sm:$0xff]
        %v1856 = vld [vmem:[#allocation4 + $0x58] sm:$0xff]
        %v1857 = vld [vmem:[#allocation4 + $0x60] sm:$0xff]
        %v1858 = vld [vmem:[#allocation4 + $0x68] sm:$0xff]
        %v1859 = vld [vmem:[#allocation4 + $0x70] sm:$0xff]
        %v1860 = vld [vmem:[#allocation4 + $0x78] sm:$0xff]
        %v1861 = vld [vmem:[#allocation4 + $0x80] sm:$0xff]
        %v1862 = vld [vmem:[#allocation4 + $0x88] sm:$0xff]
        %v1863 = vld [vmem:[#allocation4 + $0x90] sm:$0xff]
        %v1864 = vld [vmem:[#allocation4 + $0x98] sm:$0xff]
        %v1865 = vld [vmem:[#allocation4 + $0xa0] sm:$0xff]
        %v1866 = vld [vmem:[#allocation4 + $0xa8] sm:$0xff]
        %v1867 = vld [vmem:[#allocation4 + $0xb0] sm:$0xff]
        %v1868 = vld [vmem:[#allocation4 + $0xb8] sm:$0xff]
        %v1869 = vld [vmem:[#allocation4 + $0xc0] sm:$0xff]
        %v1870 = vld [vmem:[#allocation4 + $0xc8] sm:$0xff]
        %v1871 = vld [vmem:[#allocation4 + $0xd0] sm:$0xff]
        %v1872 = vld [vmem:[#allocation4 + $0xd8] sm:$0xff]
        %v1873 = vld [vmem:[#allocation4 + $0xe0] sm:$0xff]
        %v1874 = vld [vmem:[#allocation4 + $0xe8] sm:$0xff]
        %v1875 = vld [vmem:[#allocation4 + $0xf0] sm:$0xff]
        %v1876 = vld [vmem:[#allocation4 + $0xf8] sm:$0xff]
        %v1877 = vld [vmem:[#allocation4 + $0x100] sm:$0xff]
        %v1878 = vld [vmem:[#allocation4 + $0x108] sm:$0xff]
        %v1879 = vld [vmem:[#allocation4 + $0x110] sm:$0xff]
        %v1880 = vld [vmem:[#allocation4 + $0x118] sm:$0xff]
        %v1881 = vld [vmem:[#allocation4 + $0x120] sm:$0xff]
        %v1882 = vld [vmem:[#allocation4 + $0x128] sm:$0xff]
        %v1883 = vld [vmem:[#allocation4 + $0x130] sm:$0xff]
        %v1884 = vld [vmem:[#allocation4 + $0x138] sm:$0xff]
        %v1885 = vld [vmem:[#allocation4 + $0x140] sm:$0xff]
        %v1886 = vld [vmem:[#allocation4 + $0x148] sm:$0xff]
        %v1887 = vld [vmem:[#allocation4 + $0x150] sm:$0xff]
        %v1888 = vld [vmem:[#allocation4 + $0x158] sm:$0xff]
        %v1889 = vld [vmem:[#allocation4 + $0x160] sm:$0xff]
        %v1890 = vld [vmem:[#allocation4 + $0x168] sm:$0xff]
        %v1891 = vld [vmem:[#allocation4 + $0x170] sm:$0xff]
        %v1892 = vld [vmem:[#allocation4 + $0x178] sm:$0xff]
        %v1893 = vld [vmem:[#allocation4 + $0x180] sm:$0xff]
        %v1894 = vld [vmem:[#allocation4 + $0x188] sm:$0xff]
        %v1895 = vld [vmem:[#allocation4 + $0x190] sm:$0xff]
        %v1896 = vld [vmem:[#allocation4 + $0x198] sm:$0xff]
        %v1897 = vld [vmem:[#allocation4 + $0x1a0] sm:$0xff]
        %v1898 = vld [vmem:[#allocation4 + $0x1a8] sm:$0xff]
        %v1899 = vld [vmem:[#allocation4 + $0x1b0] sm:$0xff]
        %v1900 = vld [vmem:[#allocation4 + $0x1b8] sm:$0xff]
        %v1901 = vld [vmem:[#allocation4 + $0x1c0] sm:$0xff]
        %v1902 = vld [vmem:[#allocation4 + $0x1c8] sm:$0xff]
        %v1903 = vld [vmem:[#allocation4 + $0x1d0] sm:$0xff]
        %v1904 = vld [vmem:[#allocation4 + $0x1d8] sm:$0xff]
        %v1905 = vld [vmem:[#allocation4 + $0x1e0] sm:$0xff]
        %v1906 = vld [vmem:[#allocation4 + $0x1e8] sm:$0xff]
        %v1907 = vld [vmem:[#allocation4 + $0x1f0] sm:$0xff]
        %v1908 = vld [vmem:[#allocation4 + $0x1f8] sm:$0xff]
        %v1909 = vld [vmem:[#allocation4 + $0x200] sm:$0xff]
        %v1910 = vld [vmem:[#allocation4 + $0x208] sm:$0xff]
        %v1911 = vld [vmem:[#allocation4 + $0x210] sm:$0xff]
        %v1912 = vld [vmem:[#allocation4 + $0x218] sm:$0xff]
        %v1913 = vld [vmem:[#allocation4 + $0x220] sm:$0xff]
        %v1914 = vld [vmem:[#allocation4 + $0x228] sm:$0xff]
        %v1915 = vld [vmem:[#allocation4 + $0x230] sm:$0xff]
        %v1916 = vld [vmem:[#allocation4 + $0x238] sm:$0xff]
        %v1917 = vld [vmem:[#allocation7] sm:$0xf]
        %v1918 = vld [vmem:[#allocation7 + $0x4] sm:$0xf]
        %v1919 = vld [vmem:[#allocation7 + $0x8] sm:$0xf]
        %v1920 = vld [vmem:[#allocation7 + $0xc] sm:$0xf]
        %v1921 = vld [vmem:[#allocation7 + $0x10] sm:$0xf]
        %v1922 = vld [vmem:[#allocation7 + $0x14] sm:$0xf]
        %v1923 = vld [vmem:[#allocation7 + $0x18] sm:$0xf]
        %v1924 = vld [vmem:[#allocation7 + $0x1c] sm:$0xf]
        %v1925 = vld [vmem:[#allocation7 + $0x20] sm:$0xf]
        %v1926 = vld [vmem:[#allocation7 + $0x24] sm:$0xf]
        %v1927 = vld [vmem:[#allocation7 + $0x28] sm:$0xf]
        %v1928 = vld [vmem:[#allocation7 + $0x2c] sm:$0xf]
        %v1929 = vld [vmem:[#allocation7 + $0x30] sm:$0xf]
        %v1930 = vld [vmem:[#allocation7 + $0x34] sm:$0xf]
        %v1931 = vld [vmem:[#allocation7 + $0x38] sm:$0xf]
        %v1932 = vld [vmem:[#allocation7 + $0x3c] sm:$0xf]
        %v1933 = vld [vmem:[#allocation7 + $0x40] sm:$0xf]
        %v1934 = vld [vmem:[#allocation7 + $0x44] sm:$0xf]
        %v1935 = vld [vmem:[#allocation7 + $0x48] sm:$0xf]
        %v1936 = vld [vmem:[#allocation7 + $0x4c] sm:$0xf]
        %v1937 = vld [vmem:[#allocation7 + $0x50] sm:$0xf]
        %v1938 = vld [vmem:[#allocation7 + $0x54] sm:$0xf]
        %v1939 = vld [vmem:[#allocation7 + $0x58] sm:$0xf]
        %v1940 = vld [vmem:[#allocation7 + $0x5c] sm:$0xf]
        %v1941 = vld [vmem:[#allocation7 + $0x60] sm:$0xf]
        %v1942 = vld [vmem:[#allocation7 + $0x64] sm:$0xf]
        %v1943 = vld [vmem:[#allocation7 + $0x68] sm:$0xf]
        %v1944 = vld [vmem:[#allocation7 + $0x6c] sm:$0xf]
        %v1945 = vld [vmem:[#allocation7 + $0x70] sm:$0xf]
        %v1946 = vld [vmem:[#allocation7 + $0x74] sm:$0xf]
        %v1947 = vld [vmem:[#allocation7 + $0x78] sm:$0xf]
        %v1948 = vld [vmem:[#allocation7 + $0x7c] sm:$0xf]
        %v1949 = vld [vmem:[#allocation7 + $0x80] sm:$0xf]
        %v1950 = vld [vmem:[#allocation7 + $0x84] sm:$0xf]
        %v1951 = vld [vmem:[#allocation7 + $0x88] sm:$0xf]
        %v1952 = vld [vmem:[#allocation7 + $0x8c] sm:$0xf]
        %v1953 = vld [vmem:[#allocation7 + $0x90] sm:$0xf]
        %v1954 = vld [vmem:[#allocation7 + $0x94] sm:$0xf]
        %v1955 = vld [vmem:[#allocation7 + $0x98] sm:$0xf]
        %v1956 = vld [vmem:[#allocation7 + $0x9c] sm:$0xf]
        %v1957 = vld [vmem:[#allocation7 + $0xa0] sm:$0xf]
        %v1958 = vld [vmem:[#allocation7 + $0xa4] sm:$0xf]
        %v1959 = vld [vmem:[#allocation7 + $0xa8] sm:$0xf]
        %v1960 = vld [vmem:[#allocation7 + $0xac] sm:$0xf]
        %v1961 = vld [vmem:[#allocation7 + $0xb0] sm:$0xf]
        %v1962 = vld [vmem:[#allocation7 + $0xb4] sm:$0xf]
        %v1963 = vld [vmem:[#allocation7 + $0xb8] sm:$0xf]
        %v1964 = vld [vmem:[#allocation7 + $0xbc] sm:$0xf]
        %v1965 = vld [vmem:[#allocation7 + $0xc0] sm:$0xf]
        %v1966 = vld [vmem:[#allocation7 + $0xc4] sm:$0xf]
        %v1967 = vld [vmem:[#allocation7 + $0xc8] sm:$0xf]
        %v1968 = vld [vmem:[#allocation7 + $0xcc] sm:$0xf]
        %v1969 = vld [vmem:[#allocation7 + $0xd0] sm:$0xf]
        %v1970 = vld [vmem:[#allocation7 + $0xd4] sm:$0xf]
        %v1971 = vld [vmem:[#allocation7 + $0xd8] sm:$0xf]
        %v1972 = vld [vmem:[#allocation7 + $0xdc] sm:$0xf]
        %v1973 = vld [vmem:[#allocation7 + $0xe0] sm:$0xf]
        %v1974 = vld [vmem:[#allocation7 + $0xe4] sm:$0xf]
        %v1975 = vld [vmem:[#allocation7 + $0xe8] sm:$0xf]
        %v1976 = vld [vmem:[#allocation7 + $0xec] sm:$0xf]
        %v1977 = vld [vmem:[#allocation7 + $0xf0] sm:$0xf]
        %v1978 = vld [vmem:[#allocation7 + $0xf4] sm:$0xf]
        %v1979 = vld [vmem:[#allocation7 + $0xf8] sm:$0xf]
        %v1980 = vld [vmem:[#allocation7 + $0xfc] sm:$0xf]
        %v1981 = vld [vmem:[#allocation7 + $0x100] sm:$0xf]
        %v1982 = vld [vmem:[#allocation7 + $0x104] sm:$0xf]
        %v1983 = vld [vmem:[#allocation7 + $0x108] sm:$0xf]
        %v1984 = vld [vmem:[#allocation7 + $0x10c] sm:$0xf]
        %v1985 = vld [vmem:[#allocation7 + $0x110] sm:$0xf]
        %v1986 = vld [vmem:[#allocation7 + $0x114] sm:$0xf]
        %v1987 = vld [vmem:[#allocation7 + $0x118] sm:$0xf]
        %v1988 = vld [vmem:[#allocation7 + $0x11c] sm:$0xf]
        %v1989 = vld [vmem:[#allocation7 + $0x120] sm:$0xf]
        %v1990 = vld [vmem:[#allocation7 + $0x124] sm:$0xf]
        %v1991 = vld [vmem:[#allocation7 + $0x128] sm:$0xf]
        %v1992 = vld [vmem:[#allocation7 + $0x12c] sm:$0xf]
        %v1993 = vld [vmem:[#allocation7 + $0x130] sm:$0xf]
        %v1994 = vld [vmem:[#allocation7 + $0x134] sm:$0xf]
        %v1995 = vld [vmem:[#allocation7 + $0x138] sm:$0xf]
        %v1996 = vld [vmem:[#allocation7 + $0x13c] sm:$0xf]
        %v1997 = vld [vmem:[#allocation7 + $0x140] sm:$0xf]
        %v1998 = vld [vmem:[#allocation7 + $0x144] sm:$0xf]
        %v1999 = vld [vmem:[#allocation7 + $0x148] sm:$0xf]
        %v2000 = vld [vmem:[#allocation7 + $0x14c] sm:$0xf]
        %v2001 = vld [vmem:[#allocation7 + $0x150] sm:$0xf]
        %v2002 = vld [vmem:[#allocation7 + $0x154] sm:$0xf]
        %v2003 = vld [vmem:[#allocation7 + $0x158] sm:$0xf]
        %v2004 = vld [vmem:[#allocation7 + $0x15c] sm:$0xf]
        %v2005 = vld [vmem:[#allocation7 + $0x160] sm:$0xf]
        %v2006 = vld [vmem:[#allocation7 + $0x164] sm:$0xf]
        %v2007 = vld [vmem:[#allocation7 + $0x168] sm:$0xf]
        %v2008 = vld [vmem:[#allocation7 + $0x16c] sm:$0xf]
        %v2009 = vld [vmem:[#allocation7 + $0x170] sm:$0xf]
        %v2010 = vld [vmem:[#allocation7 + $0x174] sm:$0xf]
        %v2011 = vld [vmem:[#allocation7 + $0x178] sm:$0xf]
        %v2012 = vld [vmem:[#allocation7 + $0x17c] sm:$0xf]
        %v2013 = vld [vmem:[#allocation7 + $0x180] sm:$0xf]
        %v2014 = vld [vmem:[#allocation7 + $0x184] sm:$0xf]
        %v2015 = vld [vmem:[#allocation7 + $0x188] sm:$0xf]
        %v2016 = vld [vmem:[#allocation7 + $0x18c] sm:$0xf]
        %v2017 = vld [vmem:[#allocation7 + $0x190] sm:$0xf]
        %v2018 = vld [vmem:[#allocation7 + $0x194] sm:$0xf]
        %v2019 = vld [vmem:[#allocation7 + $0x198] sm:$0xf]
        %v2020 = vld [vmem:[#allocation7 + $0x19c] sm:$0xf]
        %v2021 = vld [vmem:[#allocation7 + $0x1a0] sm:$0xf]
        %v2022 = vld [vmem:[#allocation7 + $0x1a4] sm:$0xf]
        %v2023 = vld [vmem:[#allocation7 + $0x1a8] sm:$0xf]
        %v2024 = vld [vmem:[#allocation7 + $0x1ac] sm:$0xf]
        %v2025 = vld [vmem:[#allocation7 + $0x1b0] sm:$0xf]
        %v2026 = vld [vmem:[#allocation7 + $0x1b4] sm:$0xf]
        %v2027 = vld [vmem:[#allocation7 + $0x1b8] sm:$0xf]
        %v2028 = vld [vmem:[#allocation7 + $0x1bc] sm:$0xf]
        %v2029 = vld [vmem:[#allocation7 + $0x1c0] sm:$0xf]
        %v2030 = vld [vmem:[#allocation7 + $0x1c4] sm:$0xf]
        %v2031 = vld [vmem:[#allocation7 + $0x1c8] sm:$0xf]
        %v2032 = vld [vmem:[#allocation7 + $0x1cc] sm:$0xf]
        %v2033 = vld [vmem:[#allocation7 + $0x1d0] sm:$0xf]
        %v2034 = vld [vmem:[#allocation7 + $0x1d4] sm:$0xf]
        %v2035 = vld [vmem:[#allocation7 + $0x1d8] sm:$0xf]
        %v2036 = vld [vmem:[#allocation7 + $0x1dc] sm:$0xf]
        %v2037 = vld [vmem:[#allocation7 + $0x1e0] sm:$0xf]
        %v2038 = vld [vmem:[#allocation7 + $0x1e4] sm:$0xf]
        %v2039 = vld [vmem:[#allocation7 + $0x1e8] sm:$0xf]
        %v2040 = vld [vmem:[#allocation7 + $0x1ec] sm:$0xf]
        %v2041 = vld [vmem:[#allocation7 + $0x1f0] sm:$0xf]
        %v2042 = vld [vmem:[#allocation7 + $0x1f4] sm:$0xf]
        %v2043 = vld [vmem:[#allocation7 + $0x1f8] sm:$0xf]
        %v2044 = vld [vmem:[#allocation7 + $0x1fc] sm:$0xf]
        %v2045 = vld [vmem:[#allocation7 + $0x200] sm:$0xf]
        %v2046 = vld [vmem:[#allocation7 + $0x204] sm:$0xf]
        %v2047 = vld [vmem:[#allocation7 + $0x208] sm:$0xf]
        %v2048 = vld [vmem:[#allocation7 + $0x20c] sm:$0xf]
        %v2049 = vld [vmem:[#allocation7 + $0x210] sm:$0xf]
        %v2050 = vld [vmem:[#allocation7 + $0x214] sm:$0xf]
        %v2051 = vld [vmem:[#allocation7 + $0x218] sm:$0xf]
        %v2052 = vld [vmem:[#allocation7 + $0x21c] sm:$0xf]
        %v2053 = vld [vmem:[#allocation7 + $0x220] sm:$0xf]
        %v2054 = vld [vmem:[#allocation7 + $0x224] sm:$0xf]
        %v2055 = vld [vmem:[#allocation7 + $0x228] sm:$0xf]
        %v2056 = vld [vmem:[#allocation7 + $0x22c] sm:$0xf]
        %v2057 = vld [vmem:[#allocation7 + $0x230] sm:$0xf]
        %v2058 = vld [vmem:[#allocation7 + $0x234] sm:$0xf]
        %v2059 = vld [vmem:[#allocation7 + $0x238] sm:$0xf]
        %v2060 = vld [vmem:[#allocation7 + $0x23c] sm:$0xf]
        %v2061 = vld [vmem:[#allocation7 + $0x240] sm:$0xf]
        %v2062 = vld [vmem:[#allocation7 + $0x244] sm:$0xf]
        %v2063 = vld [vmem:[#allocation7 + $0x248] sm:$0xf]
        %v2064 = vld [vmem:[#allocation7 + $0x24c] sm:$0xf]
        %v2065 = vld [vmem:[#allocation7 + $0x250] sm:$0xf]
        %v2066 = vld [vmem:[#allocation7 + $0x254] sm:$0xf]
        %v2067 = vld [vmem:[#allocation7 + $0x258] sm:$0xf]
        %v2068 = vld [vmem:[#allocation7 + $0x25c] sm:$0xf]
        %v2069 = vld [vmem:[#allocation7 + $0x260] sm:$0xf]
        %v2070 = vld [vmem:[#allocation7 + $0x264] sm:$0xf]
        %v2071 = vld [vmem:[#allocation7 + $0x268] sm:$0xf]
        %v2072 = vld [vmem:[#allocation7 + $0x26c] sm:$0xf]
        %v2073 = vld [vmem:[#allocation7 + $0x270] sm:$0xf]
        %v2074 = vld [vmem:[#allocation7 + $0x274] sm:$0xf]
        %v2075 = vld [vmem:[#allocation7 + $0x278] sm:$0xf]
        %v2076 = vld [vmem:[#allocation7 + $0x27c] sm:$0xf]
        %v2077 = vld [vmem:[#allocation7 + $0x280] sm:$0xf]
        %v2078 = vld [vmem:[#allocation7 + $0x284] sm:$0xf]
        %v2079 = vld [vmem:[#allocation7 + $0x288] sm:$0xf]
        %v2080 = vld [vmem:[#allocation7 + $0x28c] sm:$0xf]
        %v2081 = vld [vmem:[#allocation7 + $0x290] sm:$0xf]
        %v2082 = vld [vmem:[#allocation7 + $0x294] sm:$0xf]
        %v2083 = vld [vmem:[#allocation7 + $0x298] sm:$0xf]
        %v2084 = vld [vmem:[#allocation7 + $0x29c] sm:$0xf]
        %v2085 = vld [vmem:[#allocation7 + $0x2a0] sm:$0xf]
        %v2086 = vld [vmem:[#allocation7 + $0x2a4] sm:$0xf]
        %v2087 = vld [vmem:[#allocation7 + $0x2a8] sm:$0xf]
        %v2088 = vld [vmem:[#allocation7 + $0x2ac] sm:$0xf]
        %v2089 = vld [vmem:[#allocation7 + $0x2b0] sm:$0xf]
        %v2090 = vld [vmem:[#allocation7 + $0x2b4] sm:$0xf]
        %v2091 = vld [vmem:[#allocation7 + $0x2b8] sm:$0xf]
        %v2092 = vld [vmem:[#allocation7 + $0x2bc] sm:$0xf]
        %v2093 = vld [vmem:[#allocation7 + $0x2c0] sm:$0xf]
        %v2094 = vld [vmem:[#allocation7 + $0x2c4] sm:$0xf]
        %v2095 = vld [vmem:[#allocation7 + $0x2c8] sm:$0xf]
        %v2096 = vld [vmem:[#allocation7 + $0x2cc] sm:$0xf]
        %v2097 = vld [vmem:[#allocation7 + $0x2d0] sm:$0xf]
        %v2098 = vld [vmem:[#allocation7 + $0x2d4] sm:$0xf]
        %v2099 = vld [vmem:[#allocation7 + $0x2d8] sm:$0xf]
        %v2100 = vld [vmem:[#allocation7 + $0x2dc] sm:$0xf]
        %v2101 = vld [vmem:[#allocation7 + $0x2e0] sm:$0xf]
        %v2102 = vld [vmem:[#allocation7 + $0x2e4] sm:$0xf]
        %v2103 = vld [vmem:[#allocation7 + $0x2e8] sm:$0xf]
        %v2104 = vld [vmem:[#allocation7 + $0x2ec] sm:$0xf]
        %v2105 = vld [vmem:[#allocation7 + $0x2f0] sm:$0xf]
        %v2106 = vld [vmem:[#allocation7 + $0x2f4] sm:$0xf]
        %v2107 = vld [vmem:[#allocation7 + $0x2f8] sm:$0xf]
        %v2108 = vld [vmem:[#allocation7 + $0x2fc] sm:$0xf]
        %v2109 = vld [vmem:[#allocation7 + $0x300] sm:$0xf]
        %v2110 = vld [vmem:[#allocation7 + $0x304] sm:$0xf]
        %v2111 = vld [vmem:[#allocation7 + $0x308] sm:$0xf]
        %v2112 = vld [vmem:[#allocation7 + $0x30c] sm:$0xf]
        %v2113 = vld [vmem:[#allocation7 + $0x310] sm:$0xf]
        %v2114 = vld [vmem:[#allocation7 + $0x314] sm:$0xf]
        %v2115 = vld [vmem:[#allocation7 + $0x318] sm:$0xf]
        %v2116 = vld [vmem:[#allocation7 + $0x31c] sm:$0xf]
        %v2117 = vld [vmem:[#allocation7 + $0x320] sm:$0xf]
        %v2118 = vld [vmem:[#allocation7 + $0x324] sm:$0xf]
        %v2119 = vld [vmem:[#allocation7 + $0x328] sm:$0xf]
        %v2120 = vld [vmem:[#allocation7 + $0x32c] sm:$0xf]
        %v2121 = vld [vmem:[#allocation7 + $0x330] sm:$0xf]
        %v2122 = vld [vmem:[#allocation7 + $0x334] sm:$0xf]
        %v2123 = vld [vmem:[#allocation7 + $0x338] sm:$0xf]
        %v2124 = vld [vmem:[#allocation7 + $0x33c] sm:$0xf]
        %v2125 = vld [vmem:[#allocation7 + $0x340] sm:$0xf]
        %v2126 = vld [vmem:[#allocation7 + $0x344] sm:$0xf]
        %v2127 = vld [vmem:[#allocation7 + $0x348] sm:$0xf]
        %v2128 = vld [vmem:[#allocation7 + $0x34c] sm:$0xf]
        %v2129 = vld [vmem:[#allocation7 + $0x350] sm:$0xf]
        %v2130 = vld [vmem:[#allocation7 + $0x354] sm:$0xf]
        %v2131 = vld [vmem:[#allocation7 + $0x358] sm:$0xf]
        %v2132 = vld [vmem:[#allocation7 + $0x35c] sm:$0xf]
        %v2133 = vld [vmem:[#allocation7 + $0x360] sm:$0xf]
        %v2134 = vld [vmem:[#allocation7 + $0x364] sm:$0xf]
        %v2135 = vld [vmem:[#allocation7 + $0x368] sm:$0xf]
        %v2136 = vld [vmem:[#allocation7 + $0x36c] sm:$0xf]
        %v2137 = vld [vmem:[#allocation7 + $0x370] sm:$0xf]
        %v2138 = vld [vmem:[#allocation7 + $0x374] sm:$0xf]
        %v2139 = vld [vmem:[#allocation7 + $0x378] sm:$0xf]
        %v2140 = vld [vmem:[#allocation7 + $0x37c] sm:$0xf]
        %v2141 = vld [vmem:[#allocation7 + $0x380] sm:$0xf]
        %v2142 = vld [vmem:[#allocation7 + $0x384] sm:$0xf]
        %v2143 = vld [vmem:[#allocation7 + $0x388] sm:$0xf]
        %v2144 = vld [vmem:[#allocation7 + $0x38c] sm:$0xf]
        %v2145 = vld [vmem:[#allocation7 + $0x390] sm:$0xf]
        %v2146 = vld [vmem:[#allocation7 + $0x394] sm:$0xf]
        %v2147 = vld [vmem:[#allocation7 + $0x398] sm:$0xf]
        %v2148 = vld [vmem:[#allocation7 + $0x39c] sm:$0xf]
        %v2149 = vld [vmem:[#allocation7 + $0x3a0] sm:$0xf]
        %v2150 = vld [vmem:[#allocation7 + $0x3a4] sm:$0xf]
        %v2151 = vld [vmem:[#allocation7 + $0x3a8] sm:$0xf]
        %v2152 = vld [vmem:[#allocation7 + $0x3ac] sm:$0xf]
        %v2153 = vld [vmem:[#allocation7 + $0x3b0] sm:$0xf]
        %v2154 = vld [vmem:[#allocation7 + $0x3b4] sm:$0xf]
        %v2155 = vld [vmem:[#allocation7 + $0x3b8] sm:$0xf]
        %v2156 = vld [vmem:[#allocation7 + $0x3bc] sm:$0xf]
        %v2157 = vld [vmem:[#allocation7 + $0x3c0] sm:$0xf]
        %v2158 = vld [vmem:[#allocation7 + $0x3c4] sm:$0xf]
        %v2159 = vld [vmem:[#allocation7 + $0x3c8] sm:$0xf]
        %v2160 = vld [vmem:[#allocation7 + $0x3cc] sm:$0xf]
        %v2161 = vld [vmem:[#allocation7 + $0x3d0] sm:$0xf]
        %v2162 = vld [vmem:[#allocation7 + $0x3d4] sm:$0xf]
        %v2163 = vld [vmem:[#allocation7 + $0x3d8] sm:$0xf]
        %v2164 = vld [vmem:[#allocation7 + $0x3dc] sm:$0xf]
        %v2165 = vld [vmem:[#allocation7 + $0x3e0] sm:$0xf]
        %v2166 = vld [vmem:[#allocation7 + $0x3e4] sm:$0xf]
        %v2167 = vld [vmem:[#allocation7 + $0x3e8] sm:$0xf]
        %v2168 = vld [vmem:[#allocation7 + $0x3ec] sm:$0xf]
        %v2169 = vld [vmem:[#allocation7 + $0x3f0] sm:$0xf]
        %v2170 = vld [vmem:[#allocation7 + $0x3f4] sm:$0xf]
        %v2171 = vld [vmem:[#allocation7 + $0x3f8] sm:$0xf]
        %v2172 = vld [vmem:[#allocation7 + $0x3fc] sm:$0xf]
        %v2173 = vld [vmem:[#allocation7 + $0x400] sm:$0xf]
        %v2174 = vld [vmem:[#allocation7 + $0x404] sm:$0xf]
        %v2175 = vld [vmem:[#allocation7 + $0x408] sm:$0xf]
        %v2176 = vld [vmem:[#allocation7 + $0x40c] sm:$0xf]
        %v2177 = vld [vmem:[#allocation7 + $0x410] sm:$0xf]
        %v2178 = vld [vmem:[#allocation7 + $0x414] sm:$0xf]
        %v2179 = vld [vmem:[#allocation7 + $0x418] sm:$0xf]
        %v2180 = vld [vmem:[#allocation7 + $0x41c] sm:$0xf]
        %v2181 = vld [vmem:[#allocation7 + $0x420] sm:$0xf]
        %v2182 = vld [vmem:[#allocation7 + $0x424] sm:$0xf]
        %v2183 = vld [vmem:[#allocation7 + $0x428] sm:$0xf]
        %v2184 = vld [vmem:[#allocation7 + $0x42c] sm:$0xf]
        %v2185 = vld [vmem:[#allocation7 + $0x430] sm:$0xf]
        %v2186 = vld [vmem:[#allocation7 + $0x434] sm:$0xf]
        %v2187 = vld [vmem:[#allocation7 + $0x438] sm:$0xf]
        %v2188 = vld [vmem:[#allocation7 + $0x43c] sm:$0xf]
        %v2189 = vld [vmem:[#allocation7 + $0x440] sm:$0xf]
        %v2190 = vld [vmem:[#allocation7 + $0x444] sm:$0xf]
        %v2191 = vld [vmem:[#allocation7 + $0x448] sm:$0xf]
        %v2192 = vld [vmem:[#allocation7 + $0x44c] sm:$0xf]
        %v2193 = vld [vmem:[#allocation7 + $0x450] sm:$0xf]
        %v2194 = vld [vmem:[#allocation7 + $0x454] sm:$0xf]
        %v2195 = vld [vmem:[#allocation7 + $0x458] sm:$0xf]
        %v2196 = vld [vmem:[#allocation7 + $0x45c] sm:$0xf]
        %v2197 = vld [vmem:[#allocation7 + $0x460] sm:$0xf]
        %v2198 = vld [vmem:[#allocation7 + $0x464] sm:$0xf]
        %v2199 = vld [vmem:[#allocation7 + $0x468] sm:$0xf]
        %v2200 = vld [vmem:[#allocation7 + $0x46c] sm:$0xf]
        %v2201 = vld [vmem:[#allocation7 + $0x470] sm:$0xf]
        %v2202 = vld [vmem:[#allocation7 + $0x474] sm:$0xf]
        %v2203 = vld [vmem:[#allocation7 + $0x478] sm:$0xf]
        %v2204 = vld [vmem:[#allocation7 + $0x47c] sm:$0xf]
        %v2205 = vld [vmem:[#allocation7 + $0x480] sm:$0xf]
        %v2206 = vld [vmem:[#allocation7 + $0x484] sm:$0xf]
        %v2207 = vld [vmem:[#allocation7 + $0x488] sm:$0xf]
        %v2208 = vld [vmem:[#allocation7 + $0x48c] sm:$0xf]
        %v2209 = vld [vmem:[#allocation7 + $0x490] sm:$0xf]
        %v2210 = vld [vmem:[#allocation7 + $0x494] sm:$0xf]
        %v2211 = vld [vmem:[#allocation7 + $0x498] sm:$0xf]
        %v2212 = vld [vmem:[#allocation7 + $0x49c] sm:$0xf]
        %v2213 = vld [vmem:[#allocation7 + $0x4a0] sm:$0xf]
        %v2214 = vld [vmem:[#allocation7 + $0x4a4] sm:$0xf]
        %v2215 = vld [vmem:[#allocation7 + $0x4a8] sm:$0xf]
        %v2216 = vld [vmem:[#allocation7 + $0x4ac] sm:$0xf]
        %v2217 = vld [vmem:[#allocation7 + $0x4b0] sm:$0xf]
        %v2218 = vld [vmem:[#allocation7 + $0x4b4] sm:$0xf]
        %v2219 = vld [vmem:[#allocation7 + $0x4b8] sm:$0xf]
        %v2220 = vld [vmem:[#allocation7 + $0x4bc] sm:$0xf]
        %v2221 = vld [vmem:[#allocation7 + $0x4c0] sm:$0xf]
        %v2222 = vld [vmem:[#allocation7 + $0x4c4] sm:$0xf]
        %v2223 = vld [vmem:[#allocation7 + $0x4c8] sm:$0xf]
        %v2224 = vld [vmem:[#allocation7 + $0x4cc] sm:$0xf]
        %v2225 = vld [vmem:[#allocation7 + $0x4d0] sm:$0xf]
        %v2226 = vld [vmem:[#allocation7 + $0x4d4] sm:$0xf]
        %v2227 = vld [vmem:[#allocation7 + $0x4d8] sm:$0xf]
        %v2228 = vld [vmem:[#allocation7 + $0x4dc] sm:$0xf]
        %v2229 = vld [vmem:[#allocation7 + $0x4e0] sm:$0xf]
        %v2230 = vld [vmem:[#allocation7 + $0x4e4] sm:$0xf]
        %v2231 = vld [vmem:[#allocation7 + $0x4e8] sm:$0xf]
        %v2232 = vld [vmem:[#allocation7 + $0x4ec] sm:$0xf]
        %v2233 = vld [vmem:[#allocation7 + $0x4f0] sm:$0xf]
        %v2234 = vld [vmem:[#allocation7 + $0x4f4] sm:$0xf]
        %v2235 = vld [vmem:[#allocation7 + $0x4f8] sm:$0xf]
        %v2236 = vld [vmem:[#allocation7 + $0x4fc] sm:$0xf]
        %v2237 = vld [vmem:[#allocation7 + $0x500] sm:$0xf]
        %v2238 = vld [vmem:[#allocation7 + $0x504] sm:$0xf]
        %v2239 = vld [vmem:[#allocation7 + $0x508] sm:$0xf]
        %v2240 = vld [vmem:[#allocation7 + $0x50c] sm:$0xf]
        %v2241 = vld [vmem:[#allocation7 + $0x510] sm:$0xf]
        %v2242 = vld [vmem:[#allocation7 + $0x514] sm:$0xf]
        %v2243 = vld [vmem:[#allocation7 + $0x518] sm:$0xf]
        %v2244 = vld [vmem:[#allocation7 + $0x51c] sm:$0xf]
        %v2245 = vld [vmem:[#allocation7 + $0x520] sm:$0xf]
        %v2246 = vld [vmem:[#allocation7 + $0x524] sm:$0xf]
        %v2247 = vld [vmem:[#allocation7 + $0x528] sm:$0xf]
        %v2248 = vld [vmem:[#allocation7 + $0x52c] sm:$0xf]
        %v2249 = vld [vmem:[#allocation7 + $0x530] sm:$0xf]
        %v2250 = vld [vmem:[#allocation7 + $0x534] sm:$0xf]
        %v2251 = vld [vmem:[#allocation7 + $0x538] sm:$0xf]
        %v2252 = vld [vmem:[#allocation7 + $0x53c] sm:$0xf]
        %v2253 = vld [vmem:[#allocation7 + $0x540] sm:$0xf]
        %v2254 = vld [vmem:[#allocation7 + $0x544] sm:$0xf]
        %v2255 = vld [vmem:[#allocation7 + $0x548] sm:$0xf]
        %v2256 = vld [vmem:[#allocation7 + $0x54c] sm:$0xf]
        %v2257 = vld [vmem:[#allocation7 + $0x550] sm:$0xf]
        %v2258 = vld [vmem:[#allocation7 + $0x554] sm:$0xf]
        %v2259 = vld [vmem:[#allocation7 + $0x558] sm:$0xf]
        %v2260 = vld [vmem:[#allocation7 + $0x55c] sm:$0xf]
        %v2261 = vld [vmem:[#allocation7 + $0x560] sm:$0xf]
        %v2262 = vld [vmem:[#allocation7 + $0x564] sm:$0xf]
        %v2263 = vld [vmem:[#allocation7 + $0x568] sm:$0xf]
        %v2264 = vld [vmem:[#allocation7 + $0x56c] sm:$0xf]
        %v2265 = vld [vmem:[#allocation7 + $0x570] sm:$0xf]
        %v2266 = vld [vmem:[#allocation7 + $0x574] sm:$0xf]
        %v2267 = vld [vmem:[#allocation7 + $0x578] sm:$0xf]
        %v2268 = vld [vmem:[#allocation7 + $0x57c] sm:$0xf]
        %v2269 = vld [vmem:[#allocation7 + $0x580] sm:$0xf]
        %v2270 = vld [vmem:[#allocation7 + $0x584] sm:$0xf]
        %v2271 = vld [vmem:[#allocation7 + $0x588] sm:$0xf]
        %v2272 = vld [vmem:[#allocation7 + $0x58c] sm:$0xf]
        %v2273 = vld [vmem:[#allocation7 + $0x590] sm:$0xf]
        %v2274 = vld [vmem:[#allocation7 + $0x594] sm:$0xf]
        %v2275 = vld [vmem:[#allocation7 + $0x598] sm:$0xf]
        %v2276 = vld [vmem:[#allocation7 + $0x59c] sm:$0xf]
        %v2277 = vld [vmem:[#allocation7 + $0x5a0] sm:$0xf]
        %v2278 = vld [vmem:[#allocation7 + $0x5a4] sm:$0xf]
        %v2279 = vld [vmem:[#allocation7 + $0x5a8] sm:$0xf]
        %v2280 = vld [vmem:[#allocation7 + $0x5ac] sm:$0xf]
        %v2281 = vld [vmem:[#allocation7 + $0x5b0] sm:$0xf]
        %v2282 = vld [vmem:[#allocation7 + $0x5b4] sm:$0xf]
        %v2283 = vld [vmem:[#allocation7 + $0x5b8] sm:$0xf]
        %v2284 = vld [vmem:[#allocation7 + $0x5bc] sm:$0xf]
        %v2285 = vld [vmem:[#allocation7 + $0x5c0] sm:$0xf]
        %v2286 = vld [vmem:[#allocation7 + $0x5c4] sm:$0xf]
        %v2287 = vld [vmem:[#allocation7 + $0x5c8] sm:$0xf]
        %v2288 = vld [vmem:[#allocation7 + $0x5cc] sm:$0xf]
        %v2289 = vld [vmem:[#allocation7 + $0x5d0] sm:$0xf]
        %v2290 = vld [vmem:[#allocation7 + $0x5d4] sm:$0xf]
        %v2291 = vld [vmem:[#allocation7 + $0x5d8] sm:$0xf]
        %v2292 = vld [vmem:[#allocation7 + $0x5dc] sm:$0xf]
        %v2293 = vld [vmem:[#allocation7 + $0x5e0] sm:$0xf]
        %v2294 = vld [vmem:[#allocation7 + $0x5e4] sm:$0xf]
        %v2295 = vld [vmem:[#allocation7 + $0x5e8] sm:$0xf]
        %v2296 = vld [vmem:[#allocation7 + $0x5ec] sm:$0xf]
        %v2297 = vld [vmem:[#allocation7 + $0x5f0] sm:$0xf]
        %v2298 = vld [vmem:[#allocation7 + $0x5f4] sm:$0xf]
        %v2299 = vld [vmem:[#allocation7 + $0x5f8] sm:$0xf]
        %v2300 = vld [vmem:[#allocation7 + $0x5fc] sm:$0xf]
        %v2301 = vld [vmem:[#allocation7 + $0x600] sm:$0xf]
        %v2302 = vld [vmem:[#allocation7 + $0x604] sm:$0xf]
        %v2303 = vld [vmem:[#allocation7 + $0x608] sm:$0xf]
        %v2304 = vld [vmem:[#allocation7 + $0x60c] sm:$0xf]
        %v2305 = vld [vmem:[#allocation7 + $0x610] sm:$0xf]
        %v2306 = vld [vmem:[#allocation7 + $0x614] sm:$0xf]
        %v2307 = vld [vmem:[#allocation7 + $0x618] sm:$0xf]
        %v2308 = vld [vmem:[#allocation7 + $0x61c] sm:$0xf]
        %v2309 = vld [vmem:[#allocation7 + $0x620] sm:$0xf]
        %v2310 = vld [vmem:[#allocation7 + $0x624] sm:$0xf]
        %v2311 = vld [vmem:[#allocation7 + $0x628] sm:$0xf]
        %v2312 = vld [vmem:[#allocation7 + $0x62c] sm:$0xf]
        %v2313 = vld [vmem:[#allocation7 + $0x630] sm:$0xf]
        %v2314 = vld [vmem:[#allocation7 + $0x634] sm:$0xf]
        %v2315 = vld [vmem:[#allocation7 + $0x638] sm:$0xf]
        %v2316 = vld [vmem:[#allocation7 + $0x63c] sm:$0xf]
        %v2317 = vld [vmem:[#allocation7 + $0x640] sm:$0xf]
        %v2318 = vld [vmem:[#allocation7 + $0x644] sm:$0xf]
        %v2319 = vld [vmem:[#allocation7 + $0x648] sm:$0xf]
        %v2320 = vld [vmem:[#allocation7 + $0x64c] sm:$0xf]
        %v2321 = vld [vmem:[#allocation7 + $0x650] sm:$0xf]
        %v2322 = vld [vmem:[#allocation7 + $0x654] sm:$0xf]
        %v2323 = vld [vmem:[#allocation7 + $0x658] sm:$0xf]
        %v2324 = vld [vmem:[#allocation7 + $0x65c] sm:$0xf]
        %v2325 = vld [vmem:[#allocation7 + $0x660] sm:$0xf]
        %v2326 = vld [vmem:[#allocation7 + $0x664] sm:$0xf]
        %v2327 = vld [vmem:[#allocation7 + $0x668] sm:$0xf]
        %v2328 = vld [vmem:[#allocation7 + $0x66c] sm:$0xf]
        %v2329 = vld [vmem:[#allocation7 + $0x670] sm:$0xf]
        %v2330 = vld [vmem:[#allocation7 + $0x674] sm:$0xf]
        %v2331 = vld [vmem:[#allocation7 + $0x678] sm:$0xf]
        %v2332 = vld [vmem:[#allocation7 + $0x67c] sm:$0xf]
        %v2333 = vld [vmem:[#allocation7 + $0x680] sm:$0xf]
        %v2334 = vld [vmem:[#allocation7 + $0x684] sm:$0xf]
        %v2335 = vld [vmem:[#allocation7 + $0x688] sm:$0xf]
        %v2336 = vld [vmem:[#allocation7 + $0x68c] sm:$0xf]
        %v2337 = vld [vmem:[#allocation7 + $0x690] sm:$0xf]
        %v2338 = vld [vmem:[#allocation7 + $0x694] sm:$0xf]
        %v2339 = vld [vmem:[#allocation7 + $0x698] sm:$0xf]
        %v2340 = vld [vmem:[#allocation7 + $0x69c] sm:$0xf]
        %v2341 = vld [vmem:[#allocation7 + $0x6a0] sm:$0xf]
        %v2342 = vld [vmem:[#allocation7 + $0x6a4] sm:$0xf]
        %v2343 = vld [vmem:[#allocation7 + $0x6a8] sm:$0xf]
        %v2344 = vld [vmem:[#allocation7 + $0x6ac] sm:$0xf]
        %v2345 = vld [vmem:[#allocation7 + $0x6b0] sm:$0xf]
        %v2346 = vld [vmem:[#allocation7 + $0x6b4] sm:$0xf]
        %v2347 = vld [vmem:[#allocation7 + $0x6b8] sm:$0xf]
        %v2348 = vld [vmem:[#allocation7 + $0x6bc] sm:$0xf]
        %v2349 = vld [vmem:[#allocation7 + $0x6c0] sm:$0xf]
        %v2350 = vld [vmem:[#allocation7 + $0x6c4] sm:$0xf]
        %v2351 = vld [vmem:[#allocation7 + $0x6c8] sm:$0xf]
        %v2352 = vld [vmem:[#allocation7 + $0x6cc] sm:$0xf]
        %v2353 = vld [vmem:[#allocation7 + $0x6d0] sm:$0xf]
        %v2354 = vld [vmem:[#allocation7 + $0x6d4] sm:$0xf]
        %v2355 = vld [vmem:[#allocation7 + $0x6d8] sm:$0xf]
        %v2356 = vld [vmem:[#allocation7 + $0x6dc] sm:$0xf]
        %v2357 = vld [vmem:[#allocation7 + $0x6e0] sm:$0xf]
        %v2358 = vld [vmem:[#allocation7 + $0x6e4] sm:$0xf]
        %v2359 = vld [vmem:[#allocation7 + $0x6e8] sm:$0xf]
        %v2360 = vld [vmem:[#allocation7 + $0x6ec] sm:$0xf]
        %v2361 = vld [vmem:[#allocation7 + $0x6f0] sm:$0xf]
        %v2362 = vld [vmem:[#allocation7 + $0x6f4] sm:$0xf]
        %v2363 = vld [vmem:[#allocation7 + $0x6f8] sm:$0xf]
        %v2364 = vld [vmem:[#allocation7 + $0x6fc] sm:$0xf]
        %v2365 = vld [vmem:[#allocation7 + $0x700] sm:$0xf]
        %v2366 = vld [vmem:[#allocation7 + $0x704] sm:$0xf]
        %v2367 = vld [vmem:[#allocation7 + $0x708] sm:$0xf]
        %v2368 = vld [vmem:[#allocation7 + $0x70c] sm:$0xf]
        %v2369 = vld [vmem:[#allocation7 + $0x710] sm:$0xf]
        %v2370 = vld [vmem:[#allocation7 + $0x714] sm:$0xf]
        %v2371 = vld [vmem:[#allocation7 + $0x718] sm:$0xf]
        %v2372 = vld [vmem:[#allocation7 + $0x71c] sm:$0xf]
        %v2373 = vld [vmem:[#allocation7 + $0x720] sm:$0xf]
        %v2374 = vld [vmem:[#allocation7 + $0x724] sm:$0xf]
        %v2375 = vld [vmem:[#allocation7 + $0x728] sm:$0xf]
        %v2376 = vld [vmem:[#allocation7 + $0x72c] sm:$0xf]
        %v2377 = vld [vmem:[#allocation7 + $0x730] sm:$0xf]
        %v2378 = vld [vmem:[#allocation7 + $0x734] sm:$0xf]
        %v2379 = vld [vmem:[#allocation7 + $0x738] sm:$0xf]
        %v2380 = vld [vmem:[#allocation7 + $0x73c] sm:$0xf]
        %v2381 = vld [vmem:[#allocation7 + $0x740] sm:$0xf]
        %v2382 = vld [vmem:[#allocation7 + $0x744] sm:$0xf]
        %v2383 = vld [vmem:[#allocation7 + $0x748] sm:$0xf]
        %v2384 = vld [vmem:[#allocation7 + $0x74c] sm:$0xf]
        %v2385 = vld [vmem:[#allocation7 + $0x750] sm:$0xf]
        %v2386 = vld [vmem:[#allocation7 + $0x754] sm:$0xf]
        %v2387 = vld [vmem:[#allocation7 + $0x758] sm:$0xf]
        %v2388 = vld [vmem:[#allocation7 + $0x75c] sm:$0xf]
        %v2389 = vld [vmem:[#allocation7 + $0x760] sm:$0xf]
        %v2390 = vld [vmem:[#allocation7 + $0x764] sm:$0xf]
        %v2391 = vld [vmem:[#allocation7 + $0x768] sm:$0xf]
        %v2392 = vld [vmem:[#allocation7 + $0x76c] sm:$0xf]
        %v2393 = vld [vmem:[#allocation7 + $0x770] sm:$0xf]
        %v2394 = vld [vmem:[#allocation7 + $0x774] sm:$0xf]
        %v2395 = vld [vmem:[#allocation7 + $0x778] sm:$0xf]
        %v2396 = vld [vmem:[#allocation7 + $0x77c] sm:$0xf]
        %v2397 = vld [vmem:[#allocation7 + $0x780] sm:$0xf]
        %v2398 = vld [vmem:[#allocation7 + $0x784] sm:$0xf]
        %v2399 = vld [vmem:[#allocation7 + $0x788] sm:$0xf]
        %v2400 = vld [vmem:[#allocation7 + $0x78c] sm:$0xf]
        %v2401 = vld [vmem:[#allocation7 + $0x790] sm:$0xf]
        %v2402 = vld [vmem:[#allocation7 + $0x794] sm:$0xf]
        %v2403 = vld [vmem:[#allocation7 + $0x798] sm:$0xf]
        %v2404 = vld [vmem:[#allocation7 + $0x79c] sm:$0xf]
        %v2405 = vld [vmem:[#allocation7 + $0x7a0] sm:$0xf]
        %v2406 = vld [vmem:[#allocation7 + $0x7a4] sm:$0xf]
        %v2407 = vld [vmem:[#allocation7 + $0x7a8] sm:$0xf]
        %v2408 = vld [vmem:[#allocation7 + $0x7ac] sm:$0xf]
        %v2409 = vld [vmem:[#allocation7 + $0x7b0] sm:$0xf]
        %v2410 = vld [vmem:[#allocation7 + $0x7b4] sm:$0xf]
        %v2411 = vld [vmem:[#allocation7 + $0x7b8] sm:$0xf]
        %v2412 = vld [vmem:[#allocation7 + $0x7bc] sm:$0xf]
        %v2413 = vld [vmem:[#allocation7 + $0x7c0] sm:$0xf]
        %v2414 = vld [vmem:[#allocation7 + $0x7c4] sm:$0xf]
        %v2415 = vld [vmem:[#allocation7 + $0x7c8] sm:$0xf]
        %v2416 = vld [vmem:[#allocation7 + $0x7cc] sm:$0xf]
        %v2417 = vld [vmem:[#allocation7 + $0x7d0] sm:$0xf]
        %v2418 = vld [vmem:[#allocation7 + $0x7d4] sm:$0xf]
        %v2419 = vld [vmem:[#allocation7 + $0x7d8] sm:$0xf]
        %v2420 = vld [vmem:[#allocation7 + $0x7dc] sm:$0xf]
        %v2421 = vld [vmem:[#allocation7 + $0x7e0] sm:$0xf]
        %v2422 = vld [vmem:[#allocation7 + $0x7e4] sm:$0xf]
        %v2423 = vld [vmem:[#allocation7 + $0x7e8] sm:$0xf]
        %v2424 = vld [vmem:[#allocation7 + $0x7ec] sm:$0xf]
        %v2425 = vld [vmem:[#allocation7 + $0x7f0] sm:$0xf]
        %v2426 = vld [vmem:[#allocation7 + $0x7f4] sm:$0xf]
        %v2427 = vld [vmem:[#allocation7 + $0x7f8] sm:$0xf]
        %v2428 = vld [vmem:[#allocation7 + $0x7fc] sm:$0xf]
        %v2429 = vld [vmem:[#allocation7 + $0x800] sm:$0xf]
        %v2430 = vld [vmem:[#allocation7 + $0x804] sm:$0xf]
        %v2431 = vld [vmem:[#allocation7 + $0x808] sm:$0xf]
        %v2432 = vld [vmem:[#allocation7 + $0x80c] sm:$0xf]
        %v2433 = vld [vmem:[#allocation7 + $0x810] sm:$0xf]
        %v2434 = vld [vmem:[#allocation7 + $0x814] sm:$0xf]
        %v2435 = vld [vmem:[#allocation7 + $0x818] sm:$0xf]
        %v2436 = vld [vmem:[#allocation7 + $0x81c] sm:$0xf]
        %v2437 = vld [vmem:[#allocation7 + $0x820] sm:$0xf]
        %v2438 = vld [vmem:[#allocation7 + $0x824] sm:$0xf]
        %v2439 = vld [vmem:[#allocation7 + $0x828] sm:$0xf]
        %v2440 = vld [vmem:[#allocation7 + $0x82c] sm:$0xf]
        %v2441 = vld [vmem:[#allocation7 + $0x830] sm:$0xf]
        %v2442 = vld [vmem:[#allocation7 + $0x834] sm:$0xf]
        %v2443 = vld [vmem:[#allocation7 + $0x838] sm:$0xf]
        %v2444 = vld [vmem:[#allocation7 + $0x83c] sm:$0xf]
        %v2445 = vld [vmem:[#allocation7 + $0x840] sm:$0xf]
        %v2446 = vld [vmem:[#allocation7 + $0x844] sm:$0xf]
        %v2447 = vld [vmem:[#allocation7 + $0x848] sm:$0xf]
        %v2448 = vld [vmem:[#allocation7 + $0x84c] sm:$0xf]
        %v2449 = vld [vmem:[#allocation7 + $0x850] sm:$0xf]
        %v2450 = vld [vmem:[#allocation7 + $0x854] sm:$0xf]
        %v2451 = vld [vmem:[#allocation7 + $0x858] sm:$0xf]
        %v2452 = vld [vmem:[#allocation7 + $0x85c] sm:$0xf]
        %v2453 = vld [vmem:[#allocation7 + $0x860] sm:$0xf]
        %v2454 = vld [vmem:[#allocation7 + $0x864] sm:$0xf]
        %v2455 = vld [vmem:[#allocation7 + $0x868] sm:$0xf]
        %v2456 = vld [vmem:[#allocation7 + $0x86c] sm:$0xf]
        %v2457 = vld [vmem:[#allocation7 + $0x870] sm:$0xf]
        %v2458 = vld [vmem:[#allocation7 + $0x874] sm:$0xf]
        %v2459 = vld [vmem:[#allocation7 + $0x878] sm:$0xf]
        %v2460 = vld [vmem:[#allocation7 + $0x87c] sm:$0xf]
        %v2461 = vld [vmem:[#allocation7 + $0x880] sm:$0xf]
        %v2462 = vld [vmem:[#allocation7 + $0x884] sm:$0xf]
        %v2463 = vld [vmem:[#allocation7 + $0x888] sm:$0xf]
        %v2464 = vld [vmem:[#allocation7 + $0x88c] sm:$0xf]
        %v2465 = vld [vmem:[#allocation7 + $0x890] sm:$0xf]
        %v2466 = vld [vmem:[#allocation7 + $0x894] sm:$0xf]
        %v2467 = vld [vmem:[#allocation7 + $0x898] sm:$0xf]
        %v2468 = vld [vmem:[#allocation7 + $0x89c] sm:$0xf]
        %v2469 = vld [vmem:[#allocation7 + $0x8a0] sm:$0xf]
        %v2470 = vld [vmem:[#allocation7 + $0x8a4] sm:$0xf]
        %v2471 = vld [vmem:[#allocation7 + $0x8a8] sm:$0xf]
        %v2472 = vld [vmem:[#allocation7 + $0x8ac] sm:$0xf]
        %v2473 = vld [vmem:[#allocation7 + $0x8b0] sm:$0xf]
        %v2474 = vld [vmem:[#allocation7 + $0x8b4] sm:$0xf]
        %v2475 = vld [vmem:[#allocation7 + $0x8b8] sm:$0xf]
        %v2476 = vld [vmem:[#allocation7 + $0x8bc] sm:$0xf]
        %v2477 = vld [vmem:[#allocation7 + $0x8c0] sm:$0xf]
        %v2478 = vld [vmem:[#allocation7 + $0x8c4] sm:$0xf]
        %v2479 = vld [vmem:[#allocation7 + $0x8c8] sm:$0xf]
        %v2480 = vld [vmem:[#allocation7 + $0x8cc] sm:$0xf]
        %v2481 = vld [vmem:[#allocation7 + $0x8d0] sm:$0xf]
        %v2482 = vld [vmem:[#allocation7 + $0x8d4] sm:$0xf]
        %v2483 = vld [vmem:[#allocation7 + $0x8d8] sm:$0xf]
        %v2484 = vld [vmem:[#allocation7 + $0x8dc] sm:$0xf]
        %v2485 = vld [vmem:[#allocation7 + $0x8e0] sm:$0xf]
        %v2486 = vld [vmem:[#allocation7 + $0x8e4] sm:$0xf]
        %v2487 = vld [vmem:[#allocation7 + $0x8e8] sm:$0xf]
        %v2488 = vld [vmem:[#allocation7 + $0x8ec] sm:$0xf]
        %v2489 = vld [vmem:[#allocation7 + $0x8f0] sm:$0xf]
        %v2490 = vld [vmem:[#allocation7 + $0x8f4] sm:$0xf]
        %v2491 = vld [vmem:[#allocation7 + $0x8f8] sm:$0xf]
        %v2492 = vld [vmem:[#allocation7 + $0x8fc] sm:$0xf]
        %v2493 = vld [vmem:[#allocation10] sm:$0x1]
        %v2495 = vlaneseq
        %v2496 = vshrl.u32 %v2495, 7
        %v2497 = vsub.s32 0, %v2496
        %v2498 = vrot.slane %v2493, %v2497
        %v3076 = vunpack.c.l.b16 %v1917
        %v3077 = vunpack.c.l.b16 %v1918
        %v3078 = vunpack.c.l.b16 %v1919
        %v3079 = vunpack.c.l.b16 %v1920
        %v3080 = vunpack.c.l.b16 %v1921
        %v3081 = vunpack.c.l.b16 %v1922
        %v3082 = vunpack.c.l.b16 %v1923
        %v3083 = vunpack.c.l.b16 %v1924
        %v3084 = vunpack.c.l.b16 %v1925
        %v3085 = vunpack.c.l.b16 %v1926
        %v3086 = vunpack.c.l.b16 %v1927
        %v3087 = vunpack.c.l.b16 %v1928
        %v3088 = vunpack.c.l.b16 %v1929
        %v3089 = vunpack.c.l.b16 %v1930
        %v3090 = vunpack.c.l.b16 %v1931
        %v3091 = vunpack.c.l.b16 %v1932
        %v3092 = vunpack.c.l.b16 %v1933
        %v3093 = vunpack.c.l.b16 %v1934
        %v3094 = vunpack.c.l.b16 %v1935
        %v3095 = vunpack.c.l.b16 %v1936
        %v3096 = vunpack.c.l.b16 %v1937
        %v3097 = vunpack.c.l.b16 %v1938
        %v3098 = vunpack.c.l.b16 %v1939
        %v3099 = vunpack.c.l.b16 %v1940
        %v3100 = vunpack.c.l.b16 %v1941
        %v3101 = vunpack.c.l.b16 %v1942
        %v3102 = vunpack.c.l.b16 %v1943
        %v3103 = vunpack.c.l.b16 %v1944
        %v3104 = vunpack.c.l.b16 %v1945
        %v3105 = vunpack.c.l.b16 %v1946
        %v3106 = vunpack.c.l.b16 %v1947
        %v3107 = vunpack.c.l.b16 %v1948
        %v3108 = vunpack.c.l.b16 %v1949
        %v3109 = vunpack.c.l.b16 %v1950
        %v3110 = vunpack.c.l.b16 %v1951
        %v3111 = vunpack.c.l.b16 %v1952
        %v3112 = vunpack.c.l.b16 %v1953
        %v3113 = vunpack.c.l.b16 %v1954
        %v3114 = vunpack.c.l.b16 %v1955
        %v3115 = vunpack.c.l.b16 %v1956
        %v3116 = vunpack.c.l.b16 %v1957
        %v3117 = vunpack.c.l.b16 %v1958
        %v3118 = vunpack.c.l.b16 %v1959
        %v3119 = vunpack.c.l.b16 %v1960
        %v3120 = vunpack.c.l.b16 %v1961
        %v3121 = vunpack.c.l.b16 %v1962
        %v3122 = vunpack.c.l.b16 %v1963
        %v3123 = vunpack.c.l.b16 %v1964
        %v3124 = vunpack.c.l.b16 %v1965
        %v3125 = vunpack.c.l.b16 %v1966
        %v3126 = vunpack.c.l.b16 %v1967
        %v3127 = vunpack.c.l.b16 %v1968
        %v3128 = vunpack.c.l.b16 %v1969
        %v3129 = vunpack.c.l.b16 %v1970
        %v3130 = vunpack.c.l.b16 %v1971
        %v3131 = vunpack.c.l.b16 %v1972
        %v3132 = vunpack.c.l.b16 %v1973
        %v3133 = vunpack.c.l.b16 %v1974
        %v3134 = vunpack.c.l.b16 %v1975
        %v3135 = vunpack.c.l.b16 %v1976
        %v3136 = vunpack.c.l.b16 %v1977
        %v3137 = vunpack.c.l.b16 %v1978
        %v3138 = vunpack.c.l.b16 %v1979
        %v3139 = vunpack.c.l.b16 %v1980
        %v3140 = vunpack.c.l.b16 %v1981
        %v3141 = vunpack.c.l.b16 %v1982
        %v3142 = vunpack.c.l.b16 %v1983
        %v3143 = vunpack.c.l.b16 %v1984
        %v3144 = vunpack.c.l.b16 %v1985
        %v3145 = vunpack.c.l.b16 %v1986
        %v3146 = vunpack.c.l.b16 %v1987
        %v3147 = vunpack.c.l.b16 %v1988
        %v3148 = vunpack.c.l.b16 %v1989
        %v3149 = vunpack.c.l.b16 %v1990
        %v3150 = vunpack.c.l.b16 %v1991
        %v3151 = vunpack.c.l.b16 %v1992
        %v3152 = vunpack.c.l.b16 %v1993
        %v3153 = vunpack.c.l.b16 %v1994
        %v3154 = vunpack.c.l.b16 %v1995
        %v3155 = vunpack.c.l.b16 %v1996
        %v3156 = vunpack.c.l.b16 %v1997
        %v3157 = vunpack.c.l.b16 %v1998
        %v3158 = vunpack.c.l.b16 %v1999
        %v3159 = vunpack.c.l.b16 %v2000
        %v3160 = vunpack.c.l.b16 %v2001
        %v3161 = vunpack.c.l.b16 %v2002
        %v3162 = vunpack.c.l.b16 %v2003
        %v3163 = vunpack.c.l.b16 %v2004
        %v3164 = vunpack.c.l.b16 %v2005
        %v3165 = vunpack.c.l.b16 %v2006
        %v3166 = vunpack.c.l.b16 %v2007
        %v3167 = vunpack.c.l.b16 %v2008
        %v3168 = vunpack.c.l.b16 %v2009
        %v3169 = vunpack.c.l.b16 %v2010
        %v3170 = vunpack.c.l.b16 %v2011
        %v3171 = vunpack.c.l.b16 %v2012
        %v3172 = vunpack.c.l.b16 %v2013
        %v3173 = vunpack.c.l.b16 %v2014
        %v3174 = vunpack.c.l.b16 %v2015
        %v3175 = vunpack.c.l.b16 %v2016
        %v3176 = vunpack.c.l.b16 %v2017
        %v3177 = vunpack.c.l.b16 %v2018
        %v3178 = vunpack.c.l.b16 %v2019
        %v3179 = vunpack.c.l.b16 %v2020
        %v3180 = vunpack.c.l.b16 %v2021
        %v3181 = vunpack.c.l.b16 %v2022
        %v3182 = vunpack.c.l.b16 %v2023
        %v3183 = vunpack.c.l.b16 %v2024
        %v3184 = vunpack.c.l.b16 %v2025
        %v3185 = vunpack.c.l.b16 %v2026
        %v3186 = vunpack.c.l.b16 %v2027
        %v3187 = vunpack.c.l.b16 %v2028
        %v3188 = vunpack.c.l.b16 %v2029
        %v3189 = vunpack.c.l.b16 %v2030
        %v3190 = vunpack.c.l.b16 %v2031
        %v3191 = vunpack.c.l.b16 %v2032
        %v3192 = vunpack.c.l.b16 %v2033
        %v3193 = vunpack.c.l.b16 %v2034
        %v3194 = vunpack.c.l.b16 %v2035
        %v3195 = vunpack.c.l.b16 %v2036
        %v3196 = vunpack.c.l.b16 %v2037
        %v3197 = vunpack.c.l.b16 %v2038
        %v3198 = vunpack.c.l.b16 %v2039
        %v3199 = vunpack.c.l.b16 %v2040
        %v3200 = vunpack.c.l.b16 %v2041
        %v3201 = vunpack.c.l.b16 %v2042
        %v3202 = vunpack.c.l.b16 %v2043
        %v3203 = vunpack.c.l.b16 %v2044
        %v3204 = vunpack.c.l.b16 %v2045
        %v3205 = vunpack.c.l.b16 %v2046
        %v3206 = vunpack.c.l.b16 %v2047
        %v3207 = vunpack.c.l.b16 %v2048
        %v3208 = vunpack.c.l.b16 %v2049
        %v3209 = vunpack.c.l.b16 %v2050
        %v3210 = vunpack.c.l.b16 %v2051
        %v3211 = vunpack.c.l.b16 %v2052
        %v3212 = vunpack.c.l.b16 %v2053
        %v3213 = vunpack.c.l.b16 %v2054
        %v3214 = vunpack.c.l.b16 %v2055
        %v3215 = vunpack.c.l.b16 %v2056
        %v3216 = vunpack.c.l.b16 %v2057
        %v3217 = vunpack.c.l.b16 %v2058
        %v3218 = vunpack.c.l.b16 %v2059
        %v3219 = vunpack.c.l.b16 %v2060
        %v3220 = vunpack.c.l.b16 %v2061
        %v3221 = vunpack.c.l.b16 %v2062
        %v3222 = vunpack.c.l.b16 %v2063
        %v3223 = vunpack.c.l.b16 %v2064
        %v3224 = vunpack.c.l.b16 %v2065
        %v3225 = vunpack.c.l.b16 %v2066
        %v3226 = vunpack.c.l.b16 %v2067
        %v3227 = vunpack.c.l.b16 %v2068
        %v3228 = vunpack.c.l.b16 %v2069
        %v3229 = vunpack.c.l.b16 %v2070
        %v3230 = vunpack.c.l.b16 %v2071
        %v3231 = vunpack.c.l.b16 %v2072
        %v3232 = vunpack.c.l.b16 %v2073
        %v3233 = vunpack.c.l.b16 %v2074
        %v3234 = vunpack.c.l.b16 %v2075
        %v3235 = vunpack.c.l.b16 %v2076
        %v3236 = vunpack.c.l.b16 %v2077
        %v3237 = vunpack.c.l.b16 %v2078
        %v3238 = vunpack.c.l.b16 %v2079
        %v3239 = vunpack.c.l.b16 %v2080
        %v3240 = vunpack.c.l.b16 %v2081
        %v3241 = vunpack.c.l.b16 %v2082
        %v3242 = vunpack.c.l.b16 %v2083
        %v3243 = vunpack.c.l.b16 %v2084
        %v3244 = vunpack.c.l.b16 %v2085
        %v3245 = vunpack.c.l.b16 %v2086
        %v3246 = vunpack.c.l.b16 %v2087
        %v3247 = vunpack.c.l.b16 %v2088
        %v3248 = vunpack.c.l.b16 %v2089
        %v3249 = vunpack.c.l.b16 %v2090
        %v3250 = vunpack.c.l.b16 %v2091
        %v3251 = vunpack.c.l.b16 %v2092
        %v3252 = vunpack.c.l.b16 %v2093
        %v3253 = vunpack.c.l.b16 %v2094
        %v3254 = vunpack.c.l.b16 %v2095
        %v3255 = vunpack.c.l.b16 %v2096
        %v3256 = vunpack.c.l.b16 %v2097
        %v3257 = vunpack.c.l.b16 %v2098
        %v3258 = vunpack.c.l.b16 %v2099
        %v3259 = vunpack.c.l.b16 %v2100
        %v3260 = vunpack.c.l.b16 %v2101
        %v3261 = vunpack.c.l.b16 %v2102
        %v3262 = vunpack.c.l.b16 %v2103
        %v3263 = vunpack.c.l.b16 %v2104
        %v3264 = vunpack.c.l.b16 %v2105
        %v3265 = vunpack.c.l.b16 %v2106
        %v3266 = vunpack.c.l.b16 %v2107
        %v3267 = vunpack.c.l.b16 %v2108
        %v3268 = vunpack.c.l.b16 %v2109
        %v3269 = vunpack.c.l.b16 %v2110
        %v3270 = vunpack.c.l.b16 %v2111
        %v3271 = vunpack.c.l.b16 %v2112
        %v3272 = vunpack.c.l.b16 %v2113
        %v3273 = vunpack.c.l.b16 %v2114
        %v3274 = vunpack.c.l.b16 %v2115
        %v3275 = vunpack.c.l.b16 %v2116
        %v3276 = vunpack.c.l.b16 %v2117
        %v3277 = vunpack.c.l.b16 %v2118
        %v3278 = vunpack.c.l.b16 %v2119
        %v3279 = vunpack.c.l.b16 %v2120
        %v3280 = vunpack.c.l.b16 %v2121
        %v3281 = vunpack.c.l.b16 %v2122
        %v3282 = vunpack.c.l.b16 %v2123
        %v3283 = vunpack.c.l.b16 %v2124
        %v3284 = vunpack.c.l.b16 %v2125
        %v3285 = vunpack.c.l.b16 %v2126
        %v3286 = vunpack.c.l.b16 %v2127
        %v3287 = vunpack.c.l.b16 %v2128
        %v3288 = vunpack.c.l.b16 %v2129
        %v3289 = vunpack.c.l.b16 %v2130
        %v3290 = vunpack.c.l.b16 %v2131
        %v3291 = vunpack.c.l.b16 %v2132
        %v3292 = vunpack.c.l.b16 %v2133
        %v3293 = vunpack.c.l.b16 %v2134
        %v3294 = vunpack.c.l.b16 %v2135
        %v3295 = vunpack.c.l.b16 %v2136
        %v3296 = vunpack.c.l.b16 %v2137
        %v3297 = vunpack.c.l.b16 %v2138
        %v3298 = vunpack.c.l.b16 %v2139
        %v3299 = vunpack.c.l.b16 %v2140
        %v3300 = vunpack.c.l.b16 %v2141
        %v3301 = vunpack.c.l.b16 %v2142
        %v3302 = vunpack.c.l.b16 %v2143
        %v3303 = vunpack.c.l.b16 %v2144
        %v3304 = vunpack.c.l.b16 %v2145
        %v3305 = vunpack.c.l.b16 %v2146
        %v3306 = vunpack.c.l.b16 %v2147
        %v3307 = vunpack.c.l.b16 %v2148
        %v3308 = vunpack.c.l.b16 %v2149
        %v3309 = vunpack.c.l.b16 %v2150
        %v3310 = vunpack.c.l.b16 %v2151
        %v3311 = vunpack.c.l.b16 %v2152
        %v3312 = vunpack.c.l.b16 %v2153
        %v3313 = vunpack.c.l.b16 %v2154
        %v3314 = vunpack.c.l.b16 %v2155
        %v3315 = vunpack.c.l.b16 %v2156
        %v3316 = vunpack.c.l.b16 %v2157
        %v3317 = vunpack.c.l.b16 %v2158
        %v3318 = vunpack.c.l.b16 %v2159
        %v3319 = vunpack.c.l.b16 %v2160
        %v3320 = vunpack.c.l.b16 %v2161
        %v3321 = vunpack.c.l.b16 %v2162
        %v3322 = vunpack.c.l.b16 %v2163
        %v3323 = vunpack.c.l.b16 %v2164
        %v3324 = vunpack.c.l.b16 %v2165
        %v3325 = vunpack.c.l.b16 %v2166
        %v3326 = vunpack.c.l.b16 %v2167
        %v3327 = vunpack.c.l.b16 %v2168
        %v3328 = vunpack.c.l.b16 %v2169
        %v3329 = vunpack.c.l.b16 %v2170
        %v3330 = vunpack.c.l.b16 %v2171
        %v3331 = vunpack.c.l.b16 %v2172
        %v3332 = vunpack.c.l.b16 %v2173
        %v3333 = vunpack.c.l.b16 %v2174
        %v3334 = vunpack.c.l.b16 %v2175
        %v3335 = vunpack.c.l.b16 %v2176
        %v3336 = vunpack.c.l.b16 %v2177
        %v3337 = vunpack.c.l.b16 %v2178
        %v3338 = vunpack.c.l.b16 %v2179
        %v3339 = vunpack.c.l.b16 %v2180
        %v3340 = vunpack.c.l.b16 %v2181
        %v3341 = vunpack.c.l.b16 %v2182
        %v3342 = vunpack.c.l.b16 %v2183
        %v3343 = vunpack.c.l.b16 %v2184
        %v3344 = vunpack.c.l.b16 %v2185
        %v3345 = vunpack.c.l.b16 %v2186
        %v3346 = vunpack.c.l.b16 %v2187
        %v3347 = vunpack.c.l.b16 %v2188
        %v3348 = vunpack.c.l.b16 %v2189
        %v3349 = vunpack.c.l.b16 %v2190
        %v3350 = vunpack.c.l.b16 %v2191
        %v3351 = vunpack.c.l.b16 %v2192
        %v3352 = vunpack.c.l.b16 %v2193
        %v3353 = vunpack.c.l.b16 %v2194
        %v3354 = vunpack.c.l.b16 %v2195
        %v3355 = vunpack.c.l.b16 %v2196
        %v3356 = vunpack.c.l.b16 %v2197
        %v3357 = vunpack.c.l.b16 %v2198
        %v3358 = vunpack.c.l.b16 %v2199
        %v3359 = vunpack.c.l.b16 %v2200
        %v3360 = vunpack.c.l.b16 %v2201
        %v3361 = vunpack.c.l.b16 %v2202
        %v3362 = vunpack.c.l.b16 %v2203
        %v3363 = vunpack.c.l.b16 %v2204
        %v3364 = vunpack.c.l.b16 %v2205
        %v3365 = vunpack.c.l.b16 %v2206
        %v3366 = vunpack.c.l.b16 %v2207
        %v3367 = vunpack.c.l.b16 %v2208
        %v3368 = vunpack.c.l.b16 %v2209
        %v3369 = vunpack.c.l.b16 %v2210
        %v3370 = vunpack.c.l.b16 %v2211
        %v3371 = vunpack.c.l.b16 %v2212
        %v3372 = vunpack.c.l.b16 %v2213
        %v3373 = vunpack.c.l.b16 %v2214
        %v3374 = vunpack.c.l.b16 %v2215
        %v3375 = vunpack.c.l.b16 %v2216
        %v3376 = vunpack.c.l.b16 %v2217
        %v3377 = vunpack.c.l.b16 %v2218
        %v3378 = vunpack.c.l.b16 %v2219
        %v3379 = vunpack.c.l.b16 %v2220
        %v3380 = vunpack.c.l.b16 %v2221
        %v3381 = vunpack.c.l.b16 %v2222
        %v3382 = vunpack.c.l.b16 %v2223
        %v3383 = vunpack.c.l.b16 %v2224
        %v3384 = vunpack.c.l.b16 %v2225
        %v3385 = vunpack.c.l.b16 %v2226
        %v3386 = vunpack.c.l.b16 %v2227
        %v3387 = vunpack.c.l.b16 %v2228
        %v3388 = vunpack.c.l.b16 %v2229
        %v3389 = vunpack.c.l.b16 %v2230
        %v3390 = vunpack.c.l.b16 %v2231
        %v3391 = vunpack.c.l.b16 %v2232
        %v3392 = vunpack.c.l.b16 %v2233
        %v3393 = vunpack.c.l.b16 %v2234
        %v3394 = vunpack.c.l.b16 %v2235
        %v3395 = vunpack.c.l.b16 %v2236
        %v3396 = vunpack.c.l.b16 %v2237
        %v3397 = vunpack.c.l.b16 %v2238
        %v3398 = vunpack.c.l.b16 %v2239
        %v3399 = vunpack.c.l.b16 %v2240
        %v3400 = vunpack.c.l.b16 %v2241
        %v3401 = vunpack.c.l.b16 %v2242
        %v3402 = vunpack.c.l.b16 %v2243
        %v3403 = vunpack.c.l.b16 %v2244
        %v3404 = vunpack.c.l.b16 %v2245
        %v3405 = vunpack.c.l.b16 %v2246
        %v3406 = vunpack.c.l.b16 %v2247
        %v3407 = vunpack.c.l.b16 %v2248
        %v3408 = vunpack.c.l.b16 %v2249
        %v3409 = vunpack.c.l.b16 %v2250
        %v3410 = vunpack.c.l.b16 %v2251
        %v3411 = vunpack.c.l.b16 %v2252
        %v3412 = vunpack.c.l.b16 %v2253
        %v3413 = vunpack.c.l.b16 %v2254
        %v3414 = vunpack.c.l.b16 %v2255
        %v3415 = vunpack.c.l.b16 %v2256
        %v3416 = vunpack.c.l.b16 %v2257
        %v3417 = vunpack.c.l.b16 %v2258
        %v3418 = vunpack.c.l.b16 %v2259
        %v3419 = vunpack.c.l.b16 %v2260
        %v3420 = vunpack.c.l.b16 %v2261
        %v3421 = vunpack.c.l.b16 %v2262
        %v3422 = vunpack.c.l.b16 %v2263
        %v3423 = vunpack.c.l.b16 %v2264
        %v3424 = vunpack.c.l.b16 %v2265
        %v3425 = vunpack.c.l.b16 %v2266
        %v3426 = vunpack.c.l.b16 %v2267
        %v3427 = vunpack.c.l.b16 %v2268
        %v3428 = vunpack.c.l.b16 %v2269
        %v3429 = vunpack.c.l.b16 %v2270
        %v3430 = vunpack.c.l.b16 %v2271
        %v3431 = vunpack.c.l.b16 %v2272
        %v3432 = vunpack.c.l.b16 %v2273
        %v3433 = vunpack.c.l.b16 %v2274
        %v3434 = vunpack.c.l.b16 %v2275
        %v3435 = vunpack.c.l.b16 %v2276
        %v3436 = vunpack.c.l.b16 %v2277
        %v3437 = vunpack.c.l.b16 %v2278
        %v3438 = vunpack.c.l.b16 %v2279
        %v3439 = vunpack.c.l.b16 %v2280
        %v3440 = vunpack.c.l.b16 %v2281
        %v3441 = vunpack.c.l.b16 %v2282
        %v3442 = vunpack.c.l.b16 %v2283
        %v3443 = vunpack.c.l.b16 %v2284
        %v3444 = vunpack.c.l.b16 %v2285
        %v3445 = vunpack.c.l.b16 %v2286
        %v3446 = vunpack.c.l.b16 %v2287
        %v3447 = vunpack.c.l.b16 %v2288
        %v3448 = vunpack.c.l.b16 %v2289
        %v3449 = vunpack.c.l.b16 %v2290
        %v3450 = vunpack.c.l.b16 %v2291
        %v3451 = vunpack.c.l.b16 %v2292
        %v3452 = vunpack.c.l.b16 %v2293
        %v3453 = vunpack.c.l.b16 %v2294
        %v3454 = vunpack.c.l.b16 %v2295
        %v3455 = vunpack.c.l.b16 %v2296
        %v3456 = vunpack.c.l.b16 %v2297
        %v3457 = vunpack.c.l.b16 %v2298
        %v3458 = vunpack.c.l.b16 %v2299
        %v3459 = vunpack.c.l.b16 %v2300
        %v3460 = vunpack.c.l.b16 %v2301
        %v3461 = vunpack.c.l.b16 %v2302
        %v3462 = vunpack.c.l.b16 %v2303
        %v3463 = vunpack.c.l.b16 %v2304
        %v3464 = vunpack.c.l.b16 %v2305
        %v3465 = vunpack.c.l.b16 %v2306
        %v3466 = vunpack.c.l.b16 %v2307
        %v3467 = vunpack.c.l.b16 %v2308
        %v3468 = vunpack.c.l.b16 %v2309
        %v3469 = vunpack.c.l.b16 %v2310
        %v3470 = vunpack.c.l.b16 %v2311
        %v3471 = vunpack.c.l.b16 %v2312
        %v3472 = vunpack.c.l.b16 %v2313
        %v3473 = vunpack.c.l.b16 %v2314
        %v3474 = vunpack.c.l.b16 %v2315
        %v3475 = vunpack.c.l.b16 %v2316
        %v3476 = vunpack.c.l.b16 %v2317
        %v3477 = vunpack.c.l.b16 %v2318
        %v3478 = vunpack.c.l.b16 %v2319
        %v3479 = vunpack.c.l.b16 %v2320
        %v3480 = vunpack.c.l.b16 %v2321
        %v3481 = vunpack.c.l.b16 %v2322
        %v3482 = vunpack.c.l.b16 %v2323
        %v3483 = vunpack.c.l.b16 %v2324
        %v3484 = vunpack.c.l.b16 %v2325
        %v3485 = vunpack.c.l.b16 %v2326
        %v3486 = vunpack.c.l.b16 %v2327
        %v3487 = vunpack.c.l.b16 %v2328
        %v3488 = vunpack.c.l.b16 %v2329
        %v3489 = vunpack.c.l.b16 %v2330
        %v3490 = vunpack.c.l.b16 %v2331
        %v3491 = vunpack.c.l.b16 %v2332
        %v3492 = vunpack.c.l.b16 %v2333
        %v3493 = vunpack.c.l.b16 %v2334
        %v3494 = vunpack.c.l.b16 %v2335
        %v3495 = vunpack.c.l.b16 %v2336
        %v3496 = vunpack.c.l.b16 %v2337
        %v3497 = vunpack.c.l.b16 %v2338
        %v3498 = vunpack.c.l.b16 %v2339
        %v3499 = vunpack.c.l.b16 %v2340
        %v3500 = vunpack.c.l.b16 %v2341
        %v3501 = vunpack.c.l.b16 %v2342
        %v3502 = vunpack.c.l.b16 %v2343
        %v3503 = vunpack.c.l.b16 %v2344
        %v3504 = vunpack.c.l.b16 %v2345
        %v3505 = vunpack.c.l.b16 %v2346
        %v3506 = vunpack.c.l.b16 %v2347
        %v3507 = vunpack.c.l.b16 %v2348
        %v3508 = vunpack.c.l.b16 %v2349
        %v3509 = vunpack.c.l.b16 %v2350
        %v3510 = vunpack.c.l.b16 %v2351
        %v3511 = vunpack.c.l.b16 %v2352
        %v3512 = vunpack.c.l.b16 %v2353
        %v3513 = vunpack.c.l.b16 %v2354
        %v3514 = vunpack.c.l.b16 %v2355
        %v3515 = vunpack.c.l.b16 %v2356
        %v3516 = vunpack.c.l.b16 %v2357
        %v3517 = vunpack.c.l.b16 %v2358
        %v3518 = vunpack.c.l.b16 %v2359
        %v3519 = vunpack.c.l.b16 %v2360
        %v3520 = vunpack.c.l.b16 %v2361
        %v3521 = vunpack.c.l.b16 %v2362
        %v3522 = vunpack.c.l.b16 %v2363
        %v3523 = vunpack.c.l.b16 %v2364
        %v3524 = vunpack.c.l.b16 %v2365
        %v3525 = vunpack.c.l.b16 %v2366
        %v3526 = vunpack.c.l.b16 %v2367
        %v3527 = vunpack.c.l.b16 %v2368
        %v3528 = vunpack.c.l.b16 %v2369
        %v3529 = vunpack.c.l.b16 %v2370
        %v3530 = vunpack.c.l.b16 %v2371
        %v3531 = vunpack.c.l.b16 %v2372
        %v3532 = vunpack.c.l.b16 %v2373
        %v3533 = vunpack.c.l.b16 %v2374
        %v3534 = vunpack.c.l.b16 %v2375
        %v3535 = vunpack.c.l.b16 %v2376
        %v3536 = vunpack.c.l.b16 %v2377
        %v3537 = vunpack.c.l.b16 %v2378
        %v3538 = vunpack.c.l.b16 %v2379
        %v3539 = vunpack.c.l.b16 %v2380
        %v3540 = vunpack.c.l.b16 %v2381
        %v3541 = vunpack.c.l.b16 %v2382
        %v3542 = vunpack.c.l.b16 %v2383
        %v3543 = vunpack.c.l.b16 %v2384
        %v3544 = vunpack.c.l.b16 %v2385
        %v3545 = vunpack.c.l.b16 %v2386
        %v3546 = vunpack.c.l.b16 %v2387
        %v3547 = vunpack.c.l.b16 %v2388
        %v3548 = vunpack.c.l.b16 %v2389
        %v3549 = vunpack.c.l.b16 %v2390
        %v3550 = vunpack.c.l.b16 %v2391
        %v3551 = vunpack.c.l.b16 %v2392
        %v3552 = vunpack.c.l.b16 %v2393
        %v3553 = vunpack.c.l.b16 %v2394
        %v3554 = vunpack.c.l.b16 %v2395
        %v3555 = vunpack.c.l.b16 %v2396
        %v3556 = vunpack.c.l.b16 %v2397
        %v3557 = vunpack.c.l.b16 %v2398
        %v3558 = vunpack.c.l.b16 %v2399
        %v3559 = vunpack.c.l.b16 %v2400
        %v3560 = vunpack.c.l.b16 %v2401
        %v3561 = vunpack.c.l.b16 %v2402
        %v3562 = vunpack.c.l.b16 %v2403
        %v3563 = vunpack.c.l.b16 %v2404
        %v3564 = vunpack.c.l.b16 %v2405
        %v3565 = vunpack.c.l.b16 %v2406
        %v3566 = vunpack.c.l.b16 %v2407
        %v3567 = vunpack.c.l.b16 %v2408
        %v3568 = vunpack.c.l.b16 %v2409
        %v3569 = vunpack.c.l.b16 %v2410
        %v3570 = vunpack.c.l.b16 %v2411
        %v3571 = vunpack.c.l.b16 %v2412
        %v3572 = vunpack.c.l.b16 %v2413
        %v3573 = vunpack.c.l.b16 %v2414
        %v3574 = vunpack.c.l.b16 %v2415
        %v3575 = vunpack.c.l.b16 %v2416
        %v3576 = vunpack.c.l.b16 %v2417
        %v3577 = vunpack.c.l.b16 %v2418
        %v3578 = vunpack.c.l.b16 %v2419
        %v3579 = vunpack.c.l.b16 %v2420
        %v3580 = vunpack.c.l.b16 %v2421
        %v3581 = vunpack.c.l.b16 %v2422
        %v3582 = vunpack.c.l.b16 %v2423
        %v3583 = vunpack.c.l.b16 %v2424
        %v3584 = vunpack.c.l.b16 %v2425
        %v3585 = vunpack.c.l.b16 %v2426
        %v3586 = vunpack.c.l.b16 %v2427
        %v3587 = vunpack.c.l.b16 %v2428
        %v3588 = vunpack.c.l.b16 %v2429
        %v3589 = vunpack.c.l.b16 %v2430
        %v3590 = vunpack.c.l.b16 %v2431
        %v3591 = vunpack.c.l.b16 %v2432
        %v3592 = vunpack.c.l.b16 %v2433
        %v3593 = vunpack.c.l.b16 %v2434
        %v3594 = vunpack.c.l.b16 %v2435
        %v3595 = vunpack.c.l.b16 %v2436
        %v3596 = vunpack.c.l.b16 %v2437
        %v3597 = vunpack.c.l.b16 %v2438
        %v3598 = vunpack.c.l.b16 %v2439
        %v3599 = vunpack.c.l.b16 %v2440
        %v3600 = vunpack.c.l.b16 %v2441
        %v3601 = vunpack.c.l.b16 %v2442
        %v3602 = vunpack.c.l.b16 %v2443
        %v3603 = vunpack.c.l.b16 %v2444
        %v3604 = vunpack.c.l.b16 %v2445
        %v3605 = vunpack.c.l.b16 %v2446
        %v3606 = vunpack.c.l.b16 %v2447
        %v3607 = vunpack.c.l.b16 %v2448
        %v3608 = vunpack.c.l.b16 %v2449
        %v3609 = vunpack.c.l.b16 %v2450
        %v3610 = vunpack.c.l.b16 %v2451
        %v3611 = vunpack.c.l.b16 %v2452
        %v3612 = vunpack.c.l.b16 %v2453
        %v3613 = vunpack.c.l.b16 %v2454
        %v3614 = vunpack.c.l.b16 %v2455
        %v3615 = vunpack.c.l.b16 %v2456
        %v3616 = vunpack.c.l.b16 %v2457
        %v3617 = vunpack.c.l.b16 %v2458
        %v3618 = vunpack.c.l.b16 %v2459
        %v3619 = vunpack.c.l.b16 %v2460
        %v3620 = vunpack.c.l.b16 %v2461
        %v3621 = vunpack.c.l.b16 %v2462
        %v3622 = vunpack.c.l.b16 %v2463
        %v3623 = vunpack.c.l.b16 %v2464
        %v3624 = vunpack.c.l.b16 %v2465
        %v3625 = vunpack.c.l.b16 %v2466
        %v3626 = vunpack.c.l.b16 %v2467
        %v3627 = vunpack.c.l.b16 %v2468
        %v3628 = vunpack.c.l.b16 %v2469
        %v3629 = vunpack.c.l.b16 %v2470
        %v3630 = vunpack.c.l.b16 %v2471
        %v3631 = vunpack.c.l.b16 %v2472
        %v3632 = vunpack.c.l.b16 %v2473
        %v3633 = vunpack.c.l.b16 %v2474
        %v3634 = vunpack.c.l.b16 %v2475
        %v3635 = vunpack.c.l.b16 %v2476
        %v3636 = vunpack.c.l.b16 %v2477
        %v3637 = vunpack.c.l.b16 %v2478
        %v3638 = vunpack.c.l.b16 %v2479
        %v3639 = vunpack.c.l.b16 %v2480
        %v3640 = vunpack.c.l.b16 %v2481
        %v3641 = vunpack.c.l.b16 %v2482
        %v3642 = vunpack.c.l.b16 %v2483
        %v3643 = vunpack.c.l.b16 %v2484
        %v3644 = vunpack.c.l.b16 %v2485
        %v3645 = vunpack.c.l.b16 %v2486
        %v3646 = vunpack.c.l.b16 %v2487
        %v3647 = vunpack.c.l.b16 %v2488
        %v3648 = vunpack.c.l.b16 %v2489
        %v3649 = vunpack.c.l.b16 %v2490
        %v3650 = vunpack.c.l.b16 %v2491
        %v3651 = vunpack.c.l.b16 %v2492
        %v3652 = vpack.c.b16 %v3077, %v3076
        %v3653 = vpack.c.b16 %v3079, %v3078
        %v3654 = vpack.c.b16 %v3081, %v3080
        %v3655 = vpack.c.b16 %v3083, %v3082
        %v3656 = vpack.c.b16 %v3085, %v3084
        %v3657 = vpack.c.b16 %v3087, %v3086
        %v3658 = vpack.c.b16 %v3089, %v3088
        %v3659 = vpack.c.b16 %v3091, %v3090
        %v3660 = vpack.c.b16 %v3093, %v3092
        %v3661 = vpack.c.b16 %v3095, %v3094
        %v3662 = vpack.c.b16 %v3097, %v3096
        %v3663 = vpack.c.b16 %v3099, %v3098
        %v3664 = vpack.c.b16 %v3101, %v3100
        %v3665 = vpack.c.b16 %v3103, %v3102
        %v3666 = vpack.c.b16 %v3105, %v3104
        %v3667 = vpack.c.b16 %v3107, %v3106
        %v3668 = vpack.c.b16 %v3109, %v3108
        %v3669 = vpack.c.b16 %v3111, %v3110
        %v3670 = vpack.c.b16 %v3113, %v3112
        %v3671 = vpack.c.b16 %v3115, %v3114
        %v3672 = vpack.c.b16 %v3117, %v3116
        %v3673 = vpack.c.b16 %v3119, %v3118
        %v3674 = vpack.c.b16 %v3121, %v3120
        %v3675 = vpack.c.b16 %v3123, %v3122
        %v3676 = vpack.c.b16 %v3125, %v3124
        %v3677 = vpack.c.b16 %v3127, %v3126
        %v3678 = vpack.c.b16 %v3129, %v3128
        %v3679 = vpack.c.b16 %v3131, %v3130
        %v3680 = vpack.c.b16 %v3133, %v3132
        %v3681 = vpack.c.b16 %v3135, %v3134
        %v3682 = vpack.c.b16 %v3137, %v3136
        %v3683 = vpack.c.b16 %v3139, %v3138
        %v3684 = vpack.c.b16 %v3141, %v3140
        %v3685 = vpack.c.b16 %v3143, %v3142
        %v3686 = vpack.c.b16 %v3145, %v3144
        %v3687 = vpack.c.b16 %v3147, %v3146
        %v3688 = vpack.c.b16 %v3149, %v3148
        %v3689 = vpack.c.b16 %v3151, %v3150
        %v3690 = vpack.c.b16 %v3153, %v3152
        %v3691 = vpack.c.b16 %v3155, %v3154
        %v3692 = vpack.c.b16 %v3157, %v3156
        %v3693 = vpack.c.b16 %v3159, %v3158
        %v3694 = vpack.c.b16 %v3161, %v3160
        %v3695 = vpack.c.b16 %v3163, %v3162
        %v3696 = vpack.c.b16 %v3165, %v3164
        %v3697 = vpack.c.b16 %v3167, %v3166
        %v3698 = vpack.c.b16 %v3169, %v3168
        %v3699 = vpack.c.b16 %v3171, %v3170
        %v3700 = vpack.c.b16 %v3173, %v3172
        %v3701 = vpack.c.b16 %v3175, %v3174
        %v3702 = vpack.c.b16 %v3177, %v3176
        %v3703 = vpack.c.b16 %v3179, %v3178
        %v3704 = vpack.c.b16 %v3181, %v3180
        %v3705 = vpack.c.b16 %v3183, %v3182
        %v3706 = vpack.c.b16 %v3185, %v3184
        %v3707 = vpack.c.b16 %v3187, %v3186
        %v3708 = vpack.c.b16 %v3189, %v3188
        %v3709 = vpack.c.b16 %v3191, %v3190
        %v3710 = vpack.c.b16 %v3193, %v3192
        %v3711 = vpack.c.b16 %v3195, %v3194
        %v3712 = vpack.c.b16 %v3197, %v3196
        %v3713 = vpack.c.b16 %v3199, %v3198
        %v3714 = vpack.c.b16 %v3201, %v3200
        %v3715 = vpack.c.b16 %v3203, %v3202
        %v3716 = vpack.c.b16 %v3205, %v3204
        %v3717 = vpack.c.b16 %v3207, %v3206
        %v3718 = vpack.c.b16 %v3209, %v3208
        %v3719 = vpack.c.b16 %v3211, %v3210
        %v3720 = vpack.c.b16 %v3213, %v3212
        %v3721 = vpack.c.b16 %v3215, %v3214
        %v3722 = vpack.c.b16 %v3217, %v3216
        %v3723 = vpack.c.b16 %v3219, %v3218
        %v3724 = vpack.c.b16 %v3221, %v3220
        %v3725 = vpack.c.b16 %v3223, %v3222
        %v3726 = vpack.c.b16 %v3225, %v3224
        %v3727 = vpack.c.b16 %v3227, %v3226
        %v3728 = vpack.c.b16 %v3229, %v3228
        %v3729 = vpack.c.b16 %v3231, %v3230
        %v3730 = vpack.c.b16 %v3233, %v3232
        %v3731 = vpack.c.b16 %v3235, %v3234
        %v3732 = vpack.c.b16 %v3237, %v3236
        %v3733 = vpack.c.b16 %v3239, %v3238
        %v3734 = vpack.c.b16 %v3241, %v3240
        %v3735 = vpack.c.b16 %v3243, %v3242
        %v3736 = vpack.c.b16 %v3245, %v3244
        %v3737 = vpack.c.b16 %v3247, %v3246
        %v3738 = vpack.c.b16 %v3249, %v3248
        %v3739 = vpack.c.b16 %v3251, %v3250
        %v3740 = vpack.c.b16 %v3253, %v3252
        %v3741 = vpack.c.b16 %v3255, %v3254
        %v3742 = vpack.c.b16 %v3257, %v3256
        %v3743 = vpack.c.b16 %v3259, %v3258
        %v3744 = vpack.c.b16 %v3261, %v3260
        %v3745 = vpack.c.b16 %v3263, %v3262
        %v3746 = vpack.c.b16 %v3265, %v3264
        %v3747 = vpack.c.b16 %v3267, %v3266
        %v3748 = vpack.c.b16 %v3269, %v3268
        %v3749 = vpack.c.b16 %v3271, %v3270
        %v3750 = vpack.c.b16 %v3273, %v3272
        %v3751 = vpack.c.b16 %v3275, %v3274
        %v3752 = vpack.c.b16 %v3277, %v3276
        %v3753 = vpack.c.b16 %v3279, %v3278
        %v3754 = vpack.c.b16 %v3281, %v3280
        %v3755 = vpack.c.b16 %v3283, %v3282
        %v3756 = vpack.c.b16 %v3285, %v3284
        %v3757 = vpack.c.b16 %v3287, %v3286
        %v3758 = vpack.c.b16 %v3289, %v3288
        %v3759 = vpack.c.b16 %v3291, %v3290
        %v3760 = vpack.c.b16 %v3293, %v3292
        %v3761 = vpack.c.b16 %v3295, %v3294
        %v3762 = vpack.c.b16 %v3297, %v3296
        %v3763 = vpack.c.b16 %v3299, %v3298
        %v3764 = vpack.c.b16 %v3301, %v3300
        %v3765 = vpack.c.b16 %v3303, %v3302
        %v3766 = vpack.c.b16 %v3305, %v3304
        %v3767 = vpack.c.b16 %v3307, %v3306
        %v3768 = vpack.c.b16 %v3309, %v3308
        %v3769 = vpack.c.b16 %v3311, %v3310
        %v3770 = vpack.c.b16 %v3313, %v3312
        %v3771 = vpack.c.b16 %v3315, %v3314
        %v3772 = vpack.c.b16 %v3317, %v3316
        %v3773 = vpack.c.b16 %v3319, %v3318
        %v3774 = vpack.c.b16 %v3321, %v3320
        %v3775 = vpack.c.b16 %v3323, %v3322
        %v3776 = vpack.c.b16 %v3325, %v3324
        %v3777 = vpack.c.b16 %v3327, %v3326
        %v3778 = vpack.c.b16 %v3329, %v3328
        %v3779 = vpack.c.b16 %v3331, %v3330
        %v3780 = vpack.c.b16 %v3333, %v3332
        %v3781 = vpack.c.b16 %v3335, %v3334
        %v3782 = vpack.c.b16 %v3337, %v3336
        %v3783 = vpack.c.b16 %v3339, %v3338
        %v3784 = vpack.c.b16 %v3341, %v3340
        %v3785 = vpack.c.b16 %v3343, %v3342
        %v3786 = vpack.c.b16 %v3345, %v3344
        %v3787 = vpack.c.b16 %v3347, %v3346
        %v3788 = vpack.c.b16 %v3349, %v3348
        %v3789 = vpack.c.b16 %v3351, %v3350
        %v3790 = vpack.c.b16 %v3353, %v3352
        %v3791 = vpack.c.b16 %v3355, %v3354
        %v3792 = vpack.c.b16 %v3357, %v3356
        %v3793 = vpack.c.b16 %v3359, %v3358
        %v3794 = vpack.c.b16 %v3361, %v3360
        %v3795 = vpack.c.b16 %v3363, %v3362
        %v3796 = vpack.c.b16 %v3365, %v3364
        %v3797 = vpack.c.b16 %v3367, %v3366
        %v3798 = vpack.c.b16 %v3369, %v3368
        %v3799 = vpack.c.b16 %v3371, %v3370
        %v3800 = vpack.c.b16 %v3373, %v3372
        %v3801 = vpack.c.b16 %v3375, %v3374
        %v3802 = vpack.c.b16 %v3377, %v3376
        %v3803 = vpack.c.b16 %v3379, %v3378
        %v3804 = vpack.c.b16 %v3381, %v3380
        %v3805 = vpack.c.b16 %v3383, %v3382
        %v3806 = vpack.c.b16 %v3385, %v3384
        %v3807 = vpack.c.b16 %v3387, %v3386
        %v3808 = vpack.c.b16 %v3389, %v3388
        %v3809 = vpack.c.b16 %v3391, %v3390
        %v3810 = vpack.c.b16 %v3393, %v3392
        %v3811 = vpack.c.b16 %v3395, %v3394
        %v3812 = vpack.c.b16 %v3397, %v3396
        %v3813 = vpack.c.b16 %v3399, %v3398
        %v3814 = vpack.c.b16 %v3401, %v3400
        %v3815 = vpack.c.b16 %v3403, %v3402
        %v3816 = vpack.c.b16 %v3405, %v3404
        %v3817 = vpack.c.b16 %v3407, %v3406
        %v3818 = vpack.c.b16 %v3409, %v3408
        %v3819 = vpack.c.b16 %v3411, %v3410
        %v3820 = vpack.c.b16 %v3413, %v3412
        %v3821 = vpack.c.b16 %v3415, %v3414
        %v3822 = vpack.c.b16 %v3417, %v3416
        %v3823 = vpack.c.b16 %v3419, %v3418
        %v3824 = vpack.c.b16 %v3421, %v3420
        %v3825 = vpack.c.b16 %v3423, %v3422
        %v3826 = vpack.c.b16 %v3425, %v3424
        %v3827 = vpack.c.b16 %v3427, %v3426
        %v3828 = vpack.c.b16 %v3429, %v3428
        %v3829 = vpack.c.b16 %v3431, %v3430
        %v3830 = vpack.c.b16 %v3433, %v3432
        %v3831 = vpack.c.b16 %v3435, %v3434
        %v3832 = vpack.c.b16 %v3437, %v3436
        %v3833 = vpack.c.b16 %v3439, %v3438
        %v3834 = vpack.c.b16 %v3441, %v3440
        %v3835 = vpack.c.b16 %v3443, %v3442
        %v3836 = vpack.c.b16 %v3445, %v3444
        %v3837 = vpack.c.b16 %v3447, %v3446
        %v3838 = vpack.c.b16 %v3449, %v3448
        %v3839 = vpack.c.b16 %v3451, %v3450
        %v3840 = vpack.c.b16 %v3453, %v3452
        %v3841 = vpack.c.b16 %v3455, %v3454
        %v3842 = vpack.c.b16 %v3457, %v3456
        %v3843 = vpack.c.b16 %v3459, %v3458
        %v3844 = vpack.c.b16 %v3461, %v3460
        %v3845 = vpack.c.b16 %v3463, %v3462
        %v3846 = vpack.c.b16 %v3465, %v3464
        %v3847 = vpack.c.b16 %v3467, %v3466
        %v3848 = vpack.c.b16 %v3469, %v3468
        %v3849 = vpack.c.b16 %v3471, %v3470
        %v3850 = vpack.c.b16 %v3473, %v3472
        %v3851 = vpack.c.b16 %v3475, %v3474
        %v3852 = vpack.c.b16 %v3477, %v3476
        %v3853 = vpack.c.b16 %v3479, %v3478
        %v3854 = vpack.c.b16 %v3481, %v3480
        %v3855 = vpack.c.b16 %v3483, %v3482
        %v3856 = vpack.c.b16 %v3485, %v3484
        %v3857 = vpack.c.b16 %v3487, %v3486
        %v3858 = vpack.c.b16 %v3489, %v3488
        %v3859 = vpack.c.b16 %v3491, %v3490
        %v3860 = vpack.c.b16 %v3493, %v3492
        %v3861 = vpack.c.b16 %v3495, %v3494
        %v3862 = vpack.c.b16 %v3497, %v3496
        %v3863 = vpack.c.b16 %v3499, %v3498
        %v3864 = vpack.c.b16 %v3501, %v3500
        %v3865 = vpack.c.b16 %v3503, %v3502
        %v3866 = vpack.c.b16 %v3505, %v3504
        %v3867 = vpack.c.b16 %v3507, %v3506
        %v3868 = vpack.c.b16 %v3509, %v3508
        %v3869 = vpack.c.b16 %v3511, %v3510
        %v3870 = vpack.c.b16 %v3513, %v3512
        %v3871 = vpack.c.b16 %v3515, %v3514
        %v3872 = vpack.c.b16 %v3517, %v3516
        %v3873 = vpack.c.b16 %v3519, %v3518
        %v3874 = vpack.c.b16 %v3521, %v3520
        %v3875 = vpack.c.b16 %v3523, %v3522
        %v3876 = vpack.c.b16 %v3525, %v3524
        %v3877 = vpack.c.b16 %v3527, %v3526
        %v3878 = vpack.c.b16 %v3529, %v3528
        %v3879 = vpack.c.b16 %v3531, %v3530
        %v3880 = vpack.c.b16 %v3533, %v3532
        %v3881 = vpack.c.b16 %v3535, %v3534
        %v3882 = vpack.c.b16 %v3537, %v3536
        %v3883 = vpack.c.b16 %v3539, %v3538
        %v3884 = vpack.c.b16 %v3541, %v3540
        %v3885 = vpack.c.b16 %v3543, %v3542
        %v3886 = vpack.c.b16 %v3545, %v3544
        %v3887 = vpack.c.b16 %v3547, %v3546
        %v3888 = vpack.c.b16 %v3549, %v3548
        %v3889 = vpack.c.b16 %v3551, %v3550
        %v3890 = vpack.c.b16 %v3553, %v3552
        %v3891 = vpack.c.b16 %v3555, %v3554
        %v3892 = vpack.c.b16 %v3557, %v3556
        %v3893 = vpack.c.b16 %v3559, %v3558
        %v3894 = vpack.c.b16 %v3561, %v3560
        %v3895 = vpack.c.b16 %v3563, %v3562
        %v3896 = vpack.c.b16 %v3565, %v3564
        %v3897 = vpack.c.b16 %v3567, %v3566
        %v3898 = vpack.c.b16 %v3569, %v3568
        %v3899 = vpack.c.b16 %v3571, %v3570
        %v3900 = vpack.c.b16 %v3573, %v3572
        %v3901 = vpack.c.b16 %v3575, %v3574
        %v3902 = vpack.c.b16 %v3577, %v3576
        %v3903 = vpack.c.b16 %v3579, %v3578
        %v3904 = vpack.c.b16 %v3581, %v3580
        %v3905 = vpack.c.b16 %v3583, %v3582
        %v3906 = vpack.c.b16 %v3585, %v3584
        %v3907 = vpack.c.b16 %v3587, %v3586
        %v3908 = vpack.c.b16 %v3589, %v3588
        %v3909 = vpack.c.b16 %v3591, %v3590
        %v3910 = vpack.c.b16 %v3593, %v3592
        %v3911 = vpack.c.b16 %v3595, %v3594
        %v3912 = vpack.c.b16 %v3597, %v3596
        %v3913 = vpack.c.b16 %v3599, %v3598
        %v3914 = vpack.c.b16 %v3601, %v3600
        %v3915 = vpack.c.b16 %v3603, %v3602
        %v3916 = vpack.c.b16 %v3605, %v3604
        %v3917 = vpack.c.b16 %v3607, %v3606
        %v3918 = vpack.c.b16 %v3609, %v3608
        %v3919 = vpack.c.b16 %v3611, %v3610
        %v3920 = vpack.c.b16 %v3613, %v3612
        %v3921 = vpack.c.b16 %v3615, %v3614
        %v3922 = vpack.c.b16 %v3617, %v3616
        %v3923 = vpack.c.b16 %v3619, %v3618
        %v3924 = vpack.c.b16 %v3621, %v3620
        %v3925 = vpack.c.b16 %v3623, %v3622
        %v3926 = vpack.c.b16 %v3625, %v3624
        %v3927 = vpack.c.b16 %v3627, %v3626
        %v3928 = vpack.c.b16 %v3629, %v3628
        %v3929 = vpack.c.b16 %v3631, %v3630
        %v3930 = vpack.c.b16 %v3633, %v3632
        %v3931 = vpack.c.b16 %v3635, %v3634
        %v3932 = vpack.c.b16 %v3637, %v3636
        %v3933 = vpack.c.b16 %v3639, %v3638
        %v3934 = vpack.c.b16 %v3641, %v3640
        %v3935 = vpack.c.b16 %v3643, %v3642
        %v3936 = vpack.c.b16 %v3645, %v3644
        %v3937 = vpack.c.b16 %v3647, %v3646
        %v3938 = vpack.c.b16 %v3649, %v3648
        %v3939 = vpack.c.b16 %v3651, %v3650
        %4228 = vmatprep.subr.bf16.mxu0 0
        %4229 = vmatpush1.bf16.msra.mxu0 %v3652
        %4230 = vmatprep.subr.bf16.mxu0 0
        %4231 = vmatpush1.bf16.msra.mxu0 %v3653
        %4232 = vmatprep.subr.bf16.mxu0 0
        %4233 = vmatpush1.bf16.msra.mxu0 %v3654
        %4234 = vmatprep.subr.bf16.mxu0 0
        %4235 = vmatpush1.bf16.msra.mxu0 %v3655
        %4236 = vmatprep.subr.bf16.mxu0 0
        %4237 = vmatpush1.bf16.msra.mxu0 %v3656
        %4238 = vmatprep.subr.bf16.mxu0 0
        %4239 = vmatpush1.bf16.msra.mxu0 %v3657
        %4240 = vmatprep.subr.bf16.mxu0 0
        %4241 = vmatpush1.bf16.msra.mxu0 %v3658
        %4242 = vmatprep.subr.bf16.mxu0 0
        %4243 = vmatpush1.bf16.msra.mxu0 %v3659
        %4244 = vmatprep.subr.bf16.mxu0 0
        %4245 = vmatpush1.bf16.msra.mxu0 %v3660
        %4246 = vmatprep.subr.bf16.mxu0 0
        %4247 = vmatpush1.bf16.msra.mxu0 %v3661
        %4248 = vmatprep.subr.bf16.mxu0 0
        %4249 = vmatpush1.bf16.msra.mxu0 %v3662
        %4250 = vmatprep.subr.bf16.mxu0 0
        %4251 = vmatpush1.bf16.msra.mxu0 %v3663
        %4252 = vmatprep.subr.bf16.mxu0 0
        %4253 = vmatpush1.bf16.msra.mxu0 %v3664
        %4254 = vmatprep.subr.bf16.mxu0 0
        %4255 = vmatpush1.bf16.msra.mxu0 %v3665
        %4256 = vmatprep.subr.bf16.mxu0 0
        %4257 = vmatpush1.bf16.msra.mxu0 %v3666
        %4258 = vmatprep.subr.bf16.mxu0 0
        %4259 = vmatpush1.bf16.msra.mxu0 %v3667
        %4260 = vmatprep.mubr.bf16.mxu0 %v1846
        %4261 = vmatmul.mubr.bf16.gmra.mrb[0].mxu0 %v1845
        %v4262 = vpop.f32.mrb[0].mxu0
        %v4263 = vadd.f32 %v2498, %v4262
        %v4264 = vpop.f32.mrb[0].mxu0
        %v4265 = vpop.f32.mrb[0].mxu0
        %v4266 = vadd.f32 %v2498, %v4265
        %v4267 = vpop.f32.mrb[0].mxu0
        %4268 = vmatprep.mubr.bf16.mxu0 %v1882
        %4269 = vmatmul.mubr.bf16.gmra.mrb[0].mxu0 %v1881
        %v4270 = vpop.f32.mrb[0].mxu0
        %v4271 = vadd.f32 %v2498, %v4270
        %v4272 = vpop.f32.mrb[0].mxu0
        %v4273 = vpop.f32.mrb[0].mxu0
        %v4274 = vadd.f32 %v2498, %v4273
        %v4275 = vpop.f32.mrb[0].mxu0
        %4276 = vdwg.mxu0
        %4277 = vmatprep.subr.bf16.mxu0 0
        %4278 = vmatpush1.bf16.msra.mxu0 %v3668
        %4279 = vmatprep.subr.bf16.mxu0 0
        %4280 = vmatpush1.bf16.msra.mxu0 %v3669
        %4281 = vmatprep.subr.bf16.mxu0 0
        %4282 = vmatpush1.bf16.msra.mxu0 %v3670
        %4283 = vmatprep.subr.bf16.mxu0 0
        %4284 = vmatpush1.bf16.msra.mxu0 %v3671
        %4285 = vmatprep.subr.bf16.mxu0 0
        %4286 = vmatpush1.bf16.msra.mxu0 %v3672
        %4287 = vmatprep.subr.bf16.mxu0 0
        %4288 = vmatpush1.bf16.msra.mxu0 %v3673
        %4289 = vmatprep.subr.bf16.mxu0 0
        %4290 = vmatpush1.bf16.msra.mxu0 %v3674
        %4291 = vmatprep.subr.bf16.mxu0 0
        %4292 = vmatpush1.bf16.msra.mxu0 %v3675
        %4293 = vmatprep.subr.bf16.mxu0 0
        %4294 = vmatpush1.bf16.msra.mxu0 %v3676
        %4295 = vmatprep.subr.bf16.mxu0 0
        %4296 = vmatpush1.bf16.msra.mxu0 %v3677
        %4297 = vmatprep.subr.bf16.mxu0 0
        %4298 = vmatpush1.bf16.msra.mxu0 %v3678
        %4299 = vmatprep.subr.bf16.mxu0 0
        %4300 = vmatpush1.bf16.msra.mxu0 %v3679
        %4301 = vmatprep.subr.bf16.mxu0 0
        %4302 = vmatpush1.bf16.msra.mxu0 %v3680
        %4303 = vmatprep.subr.bf16.mxu0 0
        %4304 = vmatpush1.bf16.msra.mxu0 %v3681
        %4305 = vmatprep.subr.bf16.mxu0 0
        %4306 = vmatpush1.bf16.msra.mxu0 %v3682
        %4307 = vmatprep.subr.bf16.mxu0 0
        %4308 = vmatpush1.bf16.msra.mxu0 %v3683
        %4309 = vmatprep.mubr.bf16.mxu0 %v1848
        %4310 = vmatmul.mubr.bf16.gmra.mrb[0].mxu0 %v1847
        %v4311 = vpop.f32.mrb[0].mxu0
        %v4312 = vadd.f32 %v4263, %v4311
        %v4313 = vpop.f32.mrb[0].mxu0
        %v4314 = vpop.f32.mrb[0].mxu0
        %v4315 = vadd.f32 %v4266, %v4314
        %v4316 = vpop.f32.mrb[0].mxu0
        %4317 = vmatprep.mubr.bf16.mxu0 %v1884
        %4318 = vmatmul.mubr.bf16.gmra.mrb[0].mxu0 %v1883
        %v4319 = vpop.f32.mrb[0].mxu0
        %v4320 = vadd.f32 %v4271, %v4319
        %v4321 = vpop.f32.mrb[0].mxu0
        %v4322 = vpop.f32.mrb[0].mxu0
        %v4323 = vadd.f32 %v4274, %v4322
        %v4324 = vpop.f32.mrb[0].mxu0
        %4325 = vdwg.mxu0
        %4326 = vmatprep.subr.bf16.mxu0 0
        %4327 = vmatpush1.bf16.msra.mxu0 %v3684
        %4328 = vmatprep.subr.bf16.mxu0 0
        %4329 = vmatpush1.bf16.msra.mxu0 %v3685
        %4330 = vmatprep.subr.bf16.mxu0 0
        %4331 = vmatpush1.bf16.msra.mxu0 %v3686
        %4332 = vmatprep.subr.bf16.mxu0 0
        %4333 = vmatpush1.bf16.msra.mxu0 %v3687
        %4334 = vmatprep.subr.bf16.mxu0 0
        %4335 = vmatpush1.bf16.msra.mxu0 %v3688
        %4336 = vmatprep.subr.bf16.mxu0 0
        %4337 = vmatpush1.bf16.msra.mxu0 %v3689
        %4338 = vmatprep.subr.bf16.mxu0 0
        %4339 = vmatpush1.bf16.msra.mxu0 %v3690
        %4340 = vmatprep.subr.bf16.mxu0 0
        %4341 = vmatpush1.bf16.msra.mxu0 %v3691
        %4342 = vmatprep.subr.bf16.mxu0 0
        %4343 = vmatpush1.bf16.msra.mxu0 %v3692
        %4344 = vmatprep.subr.bf16.mxu0 0
        %4345 = vmatpush1.bf16.msra.mxu0 %v3693
        %4346 = vmatprep.subr.bf16.mxu0 0
        %4347 = vmatpush1.bf16.msra.mxu0 %v3694
        %4348 = vmatprep.subr.bf16.mxu0 0
        %4349 = vmatpush1.bf16.msra.mxu0 %v3695
        %4350 = vmatprep.subr.bf16.mxu0 0
        %4351 = vmatpush1.bf16.msra.mxu0 %v3696
        %4352 = vmatprep.subr.bf16.mxu0 0
        %4353 = vmatpush1.bf16.msra.mxu0 %v3697
        %4354 = vmatprep.subr.bf16.mxu0 0
        %4355 = vmatpush1.bf16.msra.mxu0 %v3698
        %4356 = vmatprep.subr.bf16.mxu0 0
        %4357 = vmatpush1.bf16.msra.mxu0 %v3699
        %4358 = vmatprep.mubr.bf16.mxu0 %v1850
        %4359 = vmatmul.mubr.bf16.gmra.mrb[0].mxu0 %v1849
        %v4360 = vpop.f32.mrb[0].mxu0
        %v4361 = vadd.f32 %v4312, %v4360
        %v4362 = vpop.f32.mrb[0].mxu0
        %v4363 = vpop.f32.mrb[0].mxu0
        %v4364 = vadd.f32 %v4315, %v4363
        %v4365 = vpop.f32.mrb[0].mxu0
        %4366 = vmatprep.mubr.bf16.mxu0 %v1886
        %4367 = vmatmul.mubr.bf16.gmra.mrb[0].mxu0 %v1885
        %v4368 = vpop.f32.mrb[0].mxu0
        %v4369 = vadd.f32 %v4320, %v4368
        %v4370 = vpop.f32.mrb[0].mxu0
        %v4371 = vpop.f32.mrb[0].mxu0
        %v4372 = vadd.f32 %v4323, %v4371
        %v4373 = vpop.f32.mrb[0].mxu0
        %4374 = vdwg.mxu0
        %4375 = vmatprep.subr.bf16.mxu0 0
        %4376 = vmatpush1.bf16.msra.mxu0 %v3700
        %4377 = vmatprep.subr.bf16.mxu0 0
        %4378 = vmatpush1.bf16.msra.mxu0 %v3701
        %4379 = vmatprep.subr.bf16.mxu0 0
        %4380 = vmatpush1.bf16.msra.mxu0 %v3702
        %4381 = vmatprep.subr.bf16.mxu0 0
        %4382 = vmatpush1.bf16.msra.mxu0 %v3703
        %4383 = vmatprep.subr.bf16.mxu0 0
        %4384 = vmatpush1.bf16.msra.mxu0 %v3704
        %4385 = vmatprep.subr.bf16.mxu0 0
        %4386 = vmatpush1.bf16.msra.mxu0 %v3705
        %4387 = vmatprep.subr.bf16.mxu0 0
        %4388 = vmatpush1.bf16.msra.mxu0 %v3706
        %4389 = vmatprep.subr.bf16.mxu0 0
        %4390 = vmatpush1.bf16.msra.mxu0 %v3707
        %4391 = vmatprep.subr.bf16.mxu0 0
        %4392 = vmatpush1.bf16.msra.mxu0 %v3708
        %4393 = vmatprep.subr.bf16.mxu0 0
        %4394 = vmatpush1.bf16.msra.mxu0 %v3709
        %4395 = vmatprep.subr.bf16.mxu0 0
        %4396 = vmatpush1.bf16.msra.mxu0 %v3710
        %4397 = vmatprep.subr.bf16.mxu0 0
        %4398 = vmatpush1.bf16.msra.mxu0 %v3711
        %4399 = vmatprep.subr.bf16.mxu0 0
        %4400 = vmatpush1.bf16.msra.mxu0 %v3712
        %4401 = vmatprep.subr.bf16.mxu0 0
        %4402 = vmatpush1.bf16.msra.mxu0 %v3713
        %4403 = vmatprep.subr.bf16.mxu0 0
        %4404 = vmatpush1.bf16.msra.mxu0 %v3714
        %4405 = vmatprep.subr.bf16.mxu0 0
        %4406 = vmatpush1.bf16.msra.mxu0 %v3715
        %4407 = vmatprep.mubr.bf16.mxu0 %v1852
        %4408 = vmatmul.mubr.bf16.gmra.mrb[0].mxu0 %v1851
        %v4409 = vpop.f32.mrb[0].mxu0
        %v4410 = vadd.f32 %v4361, %v4409
        %v4411 = vpop.f32.mrb[0].mxu0
        %v4412 = vpop.f32.mrb[0].mxu0
        %v4413 = vadd.f32 %v4364, %v4412
        %v4414 = vpop.f32.mrb[0].mxu0
        %4415 = vmatprep.mubr.bf16.mxu0 %v1888
        %4416 = vmatmul.mubr.bf16.gmra.mrb[0].mxu0 %v1887
        %v4417 = vpop.f32.mrb[0].mxu0
        %v4418 = vadd.f32 %v4369, %v4417
        %v4419 = vpop.f32.mrb[0].mxu0
        %v4420 = vpop.f32.mrb[0].mxu0
        %v4421 = vadd.f32 %v4372, %v4420
        %v4422 = vpop.f32.mrb[0].mxu0
        %4423 = vdwg.mxu0
        %4424 = vmatprep.subr.bf16.mxu0 0
        %4425 = vmatpush1.bf16.msra.mxu0 %v3716
        %4426 = vmatprep.subr.bf16.mxu0 0
        %4427 = vmatpush1.bf16.msra.mxu0 %v3717
        %4428 = vmatprep.subr.bf16.mxu0 0
        %4429 = vmatpush1.bf16.msra.mxu0 %v3718
        %4430 = vmatprep.subr.bf16.mxu0 0
        %4431 = vmatpush1.bf16.msra.mxu0 %v3719
        %4432 = vmatprep.subr.bf16.mxu0 0
        %4433 = vmatpush1.bf16.msra.mxu0 %v3720
        %4434 = vmatprep.subr.bf16.mxu0 0
        %4435 = vmatpush1.bf16.msra.mxu0 %v3721
        %4436 = vmatprep.subr.bf16.mxu0 0
        %4437 = vmatpush1.bf16.msra.mxu0 %v3722
        %4438 = vmatprep.subr.bf16.mxu0 0
        %4439 = vmatpush1.bf16.msra.mxu0 %v3723
        %4440 = vmatprep.subr.bf16.mxu0 0
        %4441 = vmatpush1.bf16.msra.mxu0 %v3724
        %4442 = vmatprep.subr.bf16.mxu0 0
        %4443 = vmatpush1.bf16.msra.mxu0 %v3725
        %4444 = vmatprep.subr.bf16.mxu0 0
        %4445 = vmatpush1.bf16.msra.mxu0 %v3726
        %4446 = vmatprep.subr.bf16.mxu0 0
        %4447 = vmatpush1.bf16.msra.mxu0 %v3727
        %4448 = vmatprep.subr.bf16.mxu0 0
        %4449 = vmatpush1.bf16.msra.mxu0 %v3728
        %4450 = vmatprep.subr.bf16.mxu0 0
        %4451 = vmatpush1.bf16.msra.mxu0 %v3729
        %4452 = vmatprep.subr.bf16.mxu0 0
        %4453 = vmatpush1.bf16.msra.mxu0 %v3730
        %4454 = vmatprep.subr.bf16.mxu0 0
        %4455 = vmatpush1.bf16.msra.mxu0 %v3731
        %4456 = vmatprep.mubr.bf16.mxu0 %v1854
        %4457 = vmatmul.mubr.bf16.gmra.mrb[0].mxu0 %v1853
        %v4458 = vpop.f32.mrb[0].mxu0
        %v4459 = vadd.f32 %v4410, %v4458
        %v4460 = vpop.f32.mrb[0].mxu0
        %v4461 = vpop.f32.mrb[0].mxu0
        %v4462 = vadd.f32 %v4413, %v4461
        %v4463 = vpop.f32.mrb[0].mxu0
        %4464 = vmatprep.mubr.bf16.mxu0 %v1890
        %4465 = vmatmul.mubr.bf16.gmra.mrb[0].mxu0 %v1889
        %v4466 = vpop.f32.mrb[0].mxu0
        %v4467 = vadd.f32 %v4418, %v4466
        %v4468 = vpop.f32.mrb[0].mxu0
        %v4469 = vpop.f32.mrb[0].mxu0
        %v4470 = vadd.f32 %v4421, %v4469
        %v4471 = vpop.f32.mrb[0].mxu0
        %4472 = vdwg.mxu0
        %4473 = vmatprep.subr.bf16.mxu0 0
        %4474 = vmatpush1.bf16.msra.mxu0 %v3732
        %4475 = vmatprep.subr.bf16.mxu0 0
        %4476 = vmatpush1.bf16.msra.mxu0 %v3733
        %4477 = vmatprep.subr.bf16.mxu0 0
        %4478 = vmatpush1.bf16.msra.mxu0 %v3734
        %4479 = vmatprep.subr.bf16.mxu0 0
        %4480 = vmatpush1.bf16.msra.mxu0 %v3735
        %4481 = vmatprep.subr.bf16.mxu0 0
        %4482 = vmatpush1.bf16.msra.mxu0 %v3736
        %4483 = vmatprep.subr.bf16.mxu0 0
        %4484 = vmatpush1.bf16.msra.mxu0 %v3737
        %4485 = vmatprep.subr.bf16.mxu0 0
        %4486 = vmatpush1.bf16.msra.mxu0 %v3738
        %4487 = vmatprep.subr.bf16.mxu0 0
        %4488 = vmatpush1.bf16.msra.mxu0 %v3739
        %4489 = vmatprep.subr.bf16.mxu0 0
        %4490 = vmatpush1.bf16.msra.mxu0 %v3740
        %4491 = vmatprep.subr.bf16.mxu0 0
        %4492 = vmatpush1.bf16.msra.mxu0 %v3741
        %4493 = vmatprep.subr.bf16.mxu0 0
        %4494 = vmatpush1.bf16.msra.mxu0 %v3742
        %4495 = vmatprep.subr.bf16.mxu0 0
        %4496 = vmatpush1.bf16.msra.mxu0 %v3743
        %4497 = vmatprep.subr.bf16.mxu0 0
        %4498 = vmatpush1.bf16.msra.mxu0 %v3744
        %4499 = vmatprep.subr.bf16.mxu0 0
        %4500 = vmatpush1.bf16.msra.mxu0 %v3745
        %4501 = vmatprep.subr.bf16.mxu0 0
        %4502 = vmatpush1.bf16.msra.mxu0 %v3746
        %4503 = vmatprep.subr.bf16.mxu0 0
        %4504 = vmatpush1.bf16.msra.mxu0 %v3747
        %4505 = vmatprep.mubr.bf16.mxu0 %v1856
        %4506 = vmatmul.mubr.bf16.gmra.mrb[0].mxu0 %v1855
        %v4507 = vpop.f32.mrb[0].mxu0
        %v4508 = vadd.f32 %v4459, %v4507
        %v4509 = vpop.f32.mrb[0].mxu0
        %v4510 = vpop.f32.mrb[0].mxu0
        %v4511 = vadd.f32 %v4462, %v4510
        %v4512 = vpop.f32.mrb[0].mxu0
        %4513 = vmatprep.mubr.bf16.mxu0 %v1892
        %4514 = vmatmul.mubr.bf16.gmra.mrb[0].mxu0 %v1891
        %v4515 = vpop.f32.mrb[0].mxu0
        %v4516 = vadd.f32 %v4467, %v4515
        %v4517 = vpop.f32.mrb[0].mxu0
        %v4518 = vpop.f32.mrb[0].mxu0
        %v4519 = vadd.f32 %v4470, %v4518
        %v4520 = vpop.f32.mrb[0].mxu0
        %4521 = vdwg.mxu0
        %4522 = vmatprep.subr.bf16.mxu0 0
        %4523 = vmatpush1.bf16.msra.mxu0 %v3748
        %4524 = vmatprep.subr.bf16.mxu0 0
        %4525 = vmatpush1.bf16.msra.mxu0 %v3749
        %4526 = vmatprep.subr.bf16.mxu0 0
        %4527 = vmatpush1.bf16.msra.mxu0 %v3750
        %4528 = vmatprep.subr.bf16.mxu0 0
        %4529 = vmatpush1.bf16.msra.mxu0 %v3751
        %4530 = vmatprep.subr.bf16.mxu0 0
        %4531 = vmatpush1.bf16.msra.mxu0 %v3752
        %4532 = vmatprep.subr.bf16.mxu0 0
        %4533 = vmatpush1.bf16.msra.mxu0 %v3753
        %4534 = vmatprep.subr.bf16.mxu0 0
        %4535 = vmatpush1.bf16.msra.mxu0 %v3754
        %4536 = vmatprep.subr.bf16.mxu0 0
        %4537 = vmatpush1.bf16.msra.mxu0 %v3755
        %4538 = vmatprep.subr.bf16.mxu0 0
        %4539 = vmatpush1.bf16.msra.mxu0 %v3756
        %4540 = vmatprep.subr.bf16.mxu0 0
        %4541 = vmatpush1.bf16.msra.mxu0 %v3757
        %4542 = vmatprep.subr.bf16.mxu0 0
        %4543 = vmatpush1.bf16.msra.mxu0 %v3758
        %4544 = vmatprep.subr.bf16.mxu0 0
        %4545 = vmatpush1.bf16.msra.mxu0 %v3759
        %4546 = vmatprep.subr.bf16.mxu0 0
        %4547 = vmatpush1.bf16.msra.mxu0 %v3760
        %4548 = vmatprep.subr.bf16.mxu0 0
        %4549 = vmatpush1.bf16.msra.mxu0 %v3761
        %4550 = vmatprep.subr.bf16.mxu0 0
        %4551 = vmatpush1.bf16.msra.mxu0 %v3762
        %4552 = vmatprep.subr.bf16.mxu0 0
        %4553 = vmatpush1.bf16.msra.mxu0 %v3763
        %4554 = vmatprep.mubr.bf16.mxu0 %v1858
        %4555 = vmatmul.mubr.bf16.gmra.mrb[0].mxu0 %v1857
        %v4556 = vpop.f32.mrb[0].mxu0
        %v4557 = vadd.f32 %v4508, %v4556
        %v4558 = vpop.f32.mrb[0].mxu0
        %v4559 = vpop.f32.mrb[0].mxu0
        %v4560 = vadd.f32 %v4511, %v4559
        %v4561 = vpop.f32.mrb[0].mxu0
        %4562 = vmatprep.mubr.bf16.mxu0 %v1894
        %4563 = vmatmul.mubr.bf16.gmra.mrb[0].mxu0 %v1893
        %v4564 = vpop.f32.mrb[0].mxu0
        %v4565 = vadd.f32 %v4516, %v4564
        %v4566 = vpop.f32.mrb[0].mxu0
        %v4567 = vpop.f32.mrb[0].mxu0
        %v4568 = vadd.f32 %v4519, %v4567
        %v4569 = vpop.f32.mrb[0].mxu0
        %4570 = vdwg.mxu0
        %4571 = vmatprep.subr.bf16.mxu0 0
        %4572 = vmatpush1.bf16.msra.mxu0 %v3764
        %4573 = vmatprep.subr.bf16.mxu0 0
        %4574 = vmatpush1.bf16.msra.mxu0 %v3765
        %4575 = vmatprep.subr.bf16.mxu0 0
        %4576 = vmatpush1.bf16.msra.mxu0 %v3766
        %4577 = vmatprep.subr.bf16.mxu0 0
        %4578 = vmatpush1.bf16.msra.mxu0 %v3767
        %4579 = vmatprep.subr.bf16.mxu0 0
        %4580 = vmatpush1.bf16.msra.mxu0 %v3768
        %4581 = vmatprep.subr.bf16.mxu0 0
        %4582 = vmatpush1.bf16.msra.mxu0 %v3769
        %4583 = vmatprep.subr.bf16.mxu0 0
        %4584 = vmatpush1.bf16.msra.mxu0 %v3770
        %4585 = vmatprep.subr.bf16.mxu0 0
        %4586 = vmatpush1.bf16.msra.mxu0 %v3771
        %4587 = vmatprep.subr.bf16.mxu0 0
        %4588 = vmatpush1.bf16.msra.mxu0 %v3772
        %4589 = vmatprep.subr.bf16.mxu0 0
        %4590 = vmatpush1.bf16.msra.mxu0 %v3773
        %4591 = vmatprep.subr.bf16.mxu0 0
        %4592 = vmatpush1.bf16.msra.mxu0 %v3774
        %4593 = vmatprep.subr.bf16.mxu0 0
        %4594 = vmatpush1.bf16.msra.mxu0 %v3775
        %4595 = vmatprep.subr.bf16.mxu0 0
        %4596 = vmatpush1.bf16.msra.mxu0 %v3776
        %4597 = vmatprep.subr.bf16.mxu0 0
        %4598 = vmatpush1.bf16.msra.mxu0 %v3777
        %4599 = vmatprep.subr.bf16.mxu0 0
        %4600 = vmatpush1.bf16.msra.mxu0 %v3778
        %4601 = vmatprep.subr.bf16.mxu0 0
        %4602 = vmatpush1.bf16.msra.mxu0 %v3779
        %4603 = vmatprep.mubr.bf16.mxu0 %v1860
        %4604 = vmatmul.mubr.bf16.gmra.mrb[0].mxu0 %v1859
        %v4605 = vpop.f32.mrb[0].mxu0
        %v4606 = vadd.f32 %v4557, %v4605
        %v4607 = vpop.f32.mrb[0].mxu0
        %v4608 = vpop.f32.mrb[0].mxu0
        %v4609 = vadd.f32 %v4560, %v4608
        %v4610 = vpop.f32.mrb[0].mxu0
        %4611 = vmatprep.mubr.bf16.mxu0 %v1896
        %4612 = vmatmul.mubr.bf16.gmra.mrb[0].mxu0 %v1895
        %v4613 = vpop.f32.mrb[0].mxu0
        %v4614 = vadd.f32 %v4565, %v4613
        %v4615 = vpop.f32.mrb[0].mxu0
        %v4616 = vpop.f32.mrb[0].mxu0
        %v4617 = vadd.f32 %v4568, %v4616
        %v4618 = vpop.f32.mrb[0].mxu0
        %4619 = vdwg.mxu0
        %4620 = vmatprep.subr.bf16.mxu0 0
        %4621 = vmatpush1.bf16.msra.mxu0 %v3780
        %4622 = vmatprep.subr.bf16.mxu0 0
        %4623 = vmatpush1.bf16.msra.mxu0 %v3781
        %4624 = vmatprep.subr.bf16.mxu0 0
        %4625 = vmatpush1.bf16.msra.mxu0 %v3782
        %4626 = vmatprep.subr.bf16.mxu0 0
        %4627 = vmatpush1.bf16.msra.mxu0 %v3783
        %4628 = vmatprep.subr.bf16.mxu0 0
        %4629 = vmatpush1.bf16.msra.mxu0 %v3784
        %4630 = vmatprep.subr.bf16.mxu0 0
        %4631 = vmatpush1.bf16.msra.mxu0 %v3785
        %4632 = vmatprep.subr.bf16.mxu0 0
        %4633 = vmatpush1.bf16.msra.mxu0 %v3786
        %4634 = vmatprep.subr.bf16.mxu0 0
        %4635 = vmatpush1.bf16.msra.mxu0 %v3787
        %4636 = vmatprep.subr.bf16.mxu0 0
        %4637 = vmatpush1.bf16.msra.mxu0 %v3788
        %4638 = vmatprep.subr.bf16.mxu0 0
        %4639 = vmatpush1.bf16.msra.mxu0 %v3789
        %4640 = vmatprep.subr.bf16.mxu0 0
        %4641 = vmatpush1.bf16.msra.mxu0 %v3790
        %4642 = vmatprep.subr.bf16.mxu0 0
        %4643 = vmatpush1.bf16.msra.mxu0 %v3791
        %4644 = vmatprep.subr.bf16.mxu0 0
        %4645 = vmatpush1.bf16.msra.mxu0 %v3792
        %4646 = vmatprep.subr.bf16.mxu0 0
        %4647 = vmatpush1.bf16.msra.mxu0 %v3793
        %4648 = vmatprep.subr.bf16.mxu0 0
        %4649 = vmatpush1.bf16.msra.mxu0 %v3794
        %4650 = vmatprep.subr.bf16.mxu0 0
        %4651 = vmatpush1.bf16.msra.mxu0 %v3795
        %4652 = vmatprep.mubr.bf16.mxu0 %v1862
        %4653 = vmatmul.mubr.bf16.gmra.mrb[0].mxu0 %v1861
        %v4654 = vpop.f32.mrb[0].mxu0
        %v4655 = vadd.f32 %v4606, %v4654
        %v4656 = vpop.f32.mrb[0].mxu0
        %v4657 = vpop.f32.mrb[0].mxu0
        %v4658 = vadd.f32 %v4609, %v4657
        %v4659 = vpop.f32.mrb[0].mxu0
        %4660 = vmatprep.mubr.bf16.mxu0 %v1898
        %4661 = vmatmul.mubr.bf16.gmra.mrb[0].mxu0 %v1897
        %v4662 = vpop.f32.mrb[0].mxu0
        %v4663 = vadd.f32 %v4614, %v4662
        %v4664 = vpop.f32.mrb[0].mxu0
        %v4665 = vpop.f32.mrb[0].mxu0
        %v4666 = vadd.f32 %v4617, %v4665
        %v4667 = vpop.f32.mrb[0].mxu0
        %4668 = vdwg.mxu0
        %4669 = vmatprep.subr.bf16.mxu0 0
        %4670 = vmatpush1.bf16.msra.mxu0 %v3796
        %4671 = vmatprep.subr.bf16.mxu0 0
        %4672 = vmatpush1.bf16.msra.mxu0 %v3797
        %4673 = vmatprep.subr.bf16.mxu0 0
        %4674 = vmatpush1.bf16.msra.mxu0 %v3798
        %4675 = vmatprep.subr.bf16.mxu0 0
        %4676 = vmatpush1.bf16.msra.mxu0 %v3799
        %4677 = vmatprep.subr.bf16.mxu0 0
        %4678 = vmatpush1.bf16.msra.mxu0 %v3800
        %4679 = vmatprep.subr.bf16.mxu0 0
        %4680 = vmatpush1.bf16.msra.mxu0 %v3801
        %4681 = vmatprep.subr.bf16.mxu0 0
        %4682 = vmatpush1.bf16.msra.mxu0 %v3802
        %4683 = vmatprep.subr.bf16.mxu0 0
        %4684 = vmatpush1.bf16.msra.mxu0 %v3803
        %4685 = vmatprep.subr.bf16.mxu0 0
        %4686 = vmatpush1.bf16.msra.mxu0 %v3804
        %4687 = vmatprep.subr.bf16.mxu0 0
        %4688 = vmatpush1.bf16.msra.mxu0 %v3805
        %4689 = vmatprep.subr.bf16.mxu0 0
        %4690 = vmatpush1.bf16.msra.mxu0 %v3806
        %4691 = vmatprep.subr.bf16.mxu0 0
        %4692 = vmatpush1.bf16.msra.mxu0 %v3807
        %4693 = vmatprep.subr.bf16.mxu0 0
        %4694 = vmatpush1.bf16.msra.mxu0 %v3808
        %4695 = vmatprep.subr.bf16.mxu0 0
        %4696 = vmatpush1.bf16.msra.mxu0 %v3809
        %4697 = vmatprep.subr.bf16.mxu0 0
        %4698 = vmatpush1.bf16.msra.mxu0 %v3810
        %4699 = vmatprep.subr.bf16.mxu0 0
        %4700 = vmatpush1.bf16.msra.mxu0 %v3811
        %4701 = vmatprep.mubr.bf16.mxu0 %v1864
        %4702 = vmatmul.mubr.bf16.gmra.mrb[0].mxu0 %v1863
        %v4703 = vpop.f32.mrb[0].mxu0
        %v4704 = vadd.f32 %v4655, %v4703
        %v4705 = vpop.f32.mrb[0].mxu0
        %v4706 = vpop.f32.mrb[0].mxu0
        %v4707 = vadd.f32 %v4658, %v4706
        %v4708 = vpop.f32.mrb[0].mxu0
        %4709 = vmatprep.mubr.bf16.mxu0 %v1900
        %4710 = vmatmul.mubr.bf16.gmra.mrb[0].mxu0 %v1899
        %v4711 = vpop.f32.mrb[0].mxu0
        %v4712 = vadd.f32 %v4663, %v4711
        %v4713 = vpop.f32.mrb[0].mxu0
        %v4714 = vpop.f32.mrb[0].mxu0
        %v4715 = vadd.f32 %v4666, %v4714
        %v4716 = vpop.f32.mrb[0].mxu0
        %4717 = vdwg.mxu0
        %4718 = vmatprep.subr.bf16.mxu0 0
        %4719 = vmatpush1.bf16.msra.mxu0 %v3812
        %4720 = vmatprep.subr.bf16.mxu0 0
        %4721 = vmatpush1.bf16.msra.mxu0 %v3813
        %4722 = vmatprep.subr.bf16.mxu0 0
        %4723 = vmatpush1.bf16.msra.mxu0 %v3814
        %4724 = vmatprep.subr.bf16.mxu0 0
        %4725 = vmatpush1.bf16.msra.mxu0 %v3815
        %4726 = vmatprep.subr.bf16.mxu0 0
        %4727 = vmatpush1.bf16.msra.mxu0 %v3816
        %4728 = vmatprep.subr.bf16.mxu0 0
        %4729 = vmatpush1.bf16.msra.mxu0 %v3817
        %4730 = vmatprep.subr.bf16.mxu0 0
        %4731 = vmatpush1.bf16.msra.mxu0 %v3818
        %4732 = vmatprep.subr.bf16.mxu0 0
        %4733 = vmatpush1.bf16.msra.mxu0 %v3819
        %4734 = vmatprep.subr.bf16.mxu0 0
        %4735 = vmatpush1.bf16.msra.mxu0 %v3820
        %4736 = vmatprep.subr.bf16.mxu0 0
        %4737 = vmatpush1.bf16.msra.mxu0 %v3821
        %4738 = vmatprep.subr.bf16.mxu0 0
        %4739 = vmatpush1.bf16.msra.mxu0 %v3822
        %4740 = vmatprep.subr.bf16.mxu0 0
        %4741 = vmatpush1.bf16.msra.mxu0 %v3823
        %4742 = vmatprep.subr.bf16.mxu0 0
        %4743 = vmatpush1.bf16.msra.mxu0 %v3824
        %4744 = vmatprep.subr.bf16.mxu0 0
        %4745 = vmatpush1.bf16.msra.mxu0 %v3825
        %4746 = vmatprep.subr.bf16.mxu0 0
        %4747 = vmatpush1.bf16.msra.mxu0 %v3826
        %4748 = vmatprep.subr.bf16.mxu0 0
        %4749 = vmatpush1.bf16.msra.mxu0 %v3827
        %4750 = vmatprep.mubr.bf16.mxu0 %v1866
        %4751 = vmatmul.mubr.bf16.gmra.mrb[0].mxu0 %v1865
        %v4752 = vpop.f32.mrb[0].mxu0
        %v4753 = vadd.f32 %v4704, %v4752
        %v4754 = vpop.f32.mrb[0].mxu0
        %v4755 = vpop.f32.mrb[0].mxu0
        %v4756 = vadd.f32 %v4707, %v4755
        %v4757 = vpop.f32.mrb[0].mxu0
        %4758 = vmatprep.mubr.bf16.mxu0 %v1902
        %4759 = vmatmul.mubr.bf16.gmra.mrb[0].mxu0 %v1901
        %v4760 = vpop.f32.mrb[0].mxu0
        %v4761 = vadd.f32 %v4712, %v4760
        %v4762 = vpop.f32.mrb[0].mxu0
        %v4763 = vpop.f32.mrb[0].mxu0
        %v4764 = vadd.f32 %v4715, %v4763
        %v4765 = vpop.f32.mrb[0].mxu0
        %4766 = vdwg.mxu0
        %4767 = vmatprep.subr.bf16.mxu0 0
        %4768 = vmatpush1.bf16.msra.mxu0 %v3828
        %4769 = vmatprep.subr.bf16.mxu0 0
        %4770 = vmatpush1.bf16.msra.mxu0 %v3829
        %4771 = vmatprep.subr.bf16.mxu0 0
        %4772 = vmatpush1.bf16.msra.mxu0 %v3830
        %4773 = vmatprep.subr.bf16.mxu0 0
        %4774 = vmatpush1.bf16.msra.mxu0 %v3831
        %4775 = vmatprep.subr.bf16.mxu0 0
        %4776 = vmatpush1.bf16.msra.mxu0 %v3832
        %4777 = vmatprep.subr.bf16.mxu0 0
        %4778 = vmatpush1.bf16.msra.mxu0 %v3833
        %4779 = vmatprep.subr.bf16.mxu0 0
        %4780 = vmatpush1.bf16.msra.mxu0 %v3834
        %4781 = vmatprep.subr.bf16.mxu0 0
        %4782 = vmatpush1.bf16.msra.mxu0 %v3835
        %4783 = vmatprep.subr.bf16.mxu0 0
        %4784 = vmatpush1.bf16.msra.mxu0 %v3836
        %4785 = vmatprep.subr.bf16.mxu0 0
        %4786 = vmatpush1.bf16.msra.mxu0 %v3837
        %4787 = vmatprep.subr.bf16.mxu0 0
        %4788 = vmatpush1.bf16.msra.mxu0 %v3838
        %4789 = vmatprep.subr.bf16.mxu0 0
        %4790 = vmatpush1.bf16.msra.mxu0 %v3839
        %4791 = vmatprep.subr.bf16.mxu0 0
        %4792 = vmatpush1.bf16.msra.mxu0 %v3840
        %4793 = vmatprep.subr.bf16.mxu0 0
        %4794 = vmatpush1.bf16.msra.mxu0 %v3841
        %4795 = vmatprep.subr.bf16.mxu0 0
        %4796 = vmatpush1.bf16.msra.mxu0 %v3842
        %4797 = vmatprep.subr.bf16.mxu0 0
        %4798 = vmatpush1.bf16.msra.mxu0 %v3843
        %4799 = vmatprep.mubr.bf16.mxu0 %v1868
        %4800 = vmatmul.mubr.bf16.gmra.mrb[0].mxu0 %v1867
        %v4801 = vpop.f32.mrb[0].mxu0
        %v4802 = vadd.f32 %v4753, %v4801
        %v4803 = vpop.f32.mrb[0].mxu0
        %v4804 = vpop.f32.mrb[0].mxu0
        %v4805 = vadd.f32 %v4756, %v4804
        %v4806 = vpop.f32.mrb[0].mxu0
        %4807 = vmatprep.mubr.bf16.mxu0 %v1904
        %4808 = vmatmul.mubr.bf16.gmra.mrb[0].mxu0 %v1903
        %v4809 = vpop.f32.mrb[0].mxu0
        %v4810 = vadd.f32 %v4761, %v4809
        %v4811 = vpop.f32.mrb[0].mxu0
        %v4812 = vpop.f32.mrb[0].mxu0
        %v4813 = vadd.f32 %v4764, %v4812
        %v4814 = vpop.f32.mrb[0].mxu0
        %4815 = vdwg.mxu0
        %4816 = vmatprep.subr.bf16.mxu0 0
        %4817 = vmatpush1.bf16.msra.mxu0 %v3844
        %4818 = vmatprep.subr.bf16.mxu0 0
        %4819 = vmatpush1.bf16.msra.mxu0 %v3845
        %4820 = vmatprep.subr.bf16.mxu0 0
        %4821 = vmatpush1.bf16.msra.mxu0 %v3846
        %4822 = vmatprep.subr.bf16.mxu0 0
        %4823 = vmatpush1.bf16.msra.mxu0 %v3847
        %4824 = vmatprep.subr.bf16.mxu0 0
        %4825 = vmatpush1.bf16.msra.mxu0 %v3848
        %4826 = vmatprep.subr.bf16.mxu0 0
        %4827 = vmatpush1.bf16.msra.mxu0 %v3849
        %4828 = vmatprep.subr.bf16.mxu0 0
        %4829 = vmatpush1.bf16.msra.mxu0 %v3850
        %4830 = vmatprep.subr.bf16.mxu0 0
        %4831 = vmatpush1.bf16.msra.mxu0 %v3851
        %4832 = vmatprep.subr.bf16.mxu0 0
        %4833 = vmatpush1.bf16.msra.mxu0 %v3852
        %4834 = vmatprep.subr.bf16.mxu0 0
        %4835 = vmatpush1.bf16.msra.mxu0 %v3853
        %4836 = vmatprep.subr.bf16.mxu0 0
        %4837 = vmatpush1.bf16.msra.mxu0 %v3854
        %4838 = vmatprep.subr.bf16.mxu0 0
        %4839 = vmatpush1.bf16.msra.mxu0 %v3855
        %4840 = vmatprep.subr.bf16.mxu0 0
        %4841 = vmatpush1.bf16.msra.mxu0 %v3856
        %4842 = vmatprep.subr.bf16.mxu0 0
        %4843 = vmatpush1.bf16.msra.mxu0 %v3857
        %4844 = vmatprep.subr.bf16.mxu0 0
        %4845 = vmatpush1.bf16.msra.mxu0 %v3858
        %4846 = vmatprep.subr.bf16.mxu0 0
        %4847 = vmatpush1.bf16.msra.mxu0 %v3859
        %4848 = vmatprep.mubr.bf16.mxu0 %v1870
        %4849 = vmatmul.mubr.bf16.gmra.mrb[0].mxu0 %v1869
        %v4850 = vpop.f32.mrb[0].mxu0
        %v4851 = vadd.f32 %v4802, %v4850
        %v4852 = vpop.f32.mrb[0].mxu0
        %v4853 = vpop.f32.mrb[0].mxu0
        %v4854 = vadd.f32 %v4805, %v4853
        %v4855 = vpop.f32.mrb[0].mxu0
        %4856 = vmatprep.mubr.bf16.mxu0 %v1906
        %4857 = vmatmul.mubr.bf16.gmra.mrb[0].mxu0 %v1905
        %v4858 = vpop.f32.mrb[0].mxu0
        %v4859 = vadd.f32 %v4810, %v4858
        %v4860 = vpop.f32.mrb[0].mxu0
        %v4861 = vpop.f32.mrb[0].mxu0
        %v4862 = vadd.f32 %v4813, %v4861
        %v4863 = vpop.f32.mrb[0].mxu0
        %4864 = vdwg.mxu0
        %4865 = vmatprep.subr.bf16.mxu0 0
        %4866 = vmatpush1.bf16.msra.mxu0 %v3860
        %4867 = vmatprep.subr.bf16.mxu0 0
        %4868 = vmatpush1.bf16.msra.mxu0 %v3861
        %4869 = vmatprep.subr.bf16.mxu0 0
        %4870 = vmatpush1.bf16.msra.mxu0 %v3862
        %4871 = vmatprep.subr.bf16.mxu0 0
        %4872 = vmatpush1.bf16.msra.mxu0 %v3863
        %4873 = vmatprep.subr.bf16.mxu0 0
        %4874 = vmatpush1.bf16.msra.mxu0 %v3864
        %4875 = vmatprep.subr.bf16.mxu0 0
        %4876 = vmatpush1.bf16.msra.mxu0 %v3865
        %4877 = vmatprep.subr.bf16.mxu0 0
        %4878 = vmatpush1.bf16.msra.mxu0 %v3866
        %4879 = vmatprep.subr.bf16.mxu0 0
        %4880 = vmatpush1.bf16.msra.mxu0 %v3867
        %4881 = vmatprep.subr.bf16.mxu0 0
        %4882 = vmatpush1.bf16.msra.mxu0 %v3868
        %4883 = vmatprep.subr.bf16.mxu0 0
        %4884 = vmatpush1.bf16.msra.mxu0 %v3869
        %4885 = vmatprep.subr.bf16.mxu0 0
        %4886 = vmatpush1.bf16.msra.mxu0 %v3870
        %4887 = vmatprep.subr.bf16.mxu0 0
        %4888 = vmatpush1.bf16.msra.mxu0 %v3871
        %4889 = vmatprep.subr.bf16.mxu0 0
        %4890 = vmatpush1.bf16.msra.mxu0 %v3872
        %4891 = vmatprep.subr.bf16.mxu0 0
        %4892 = vmatpush1.bf16.msra.mxu0 %v3873
        %4893 = vmatprep.subr.bf16.mxu0 0
        %4894 = vmatpush1.bf16.msra.mxu0 %v3874
        %4895 = vmatprep.subr.bf16.mxu0 0
        %4896 = vmatpush1.bf16.msra.mxu0 %v3875
        %4897 = vmatprep.mubr.bf16.mxu0 %v1872
        %4898 = vmatmul.mubr.bf16.gmra.mrb[0].mxu0 %v1871
        %v4899 = vpop.f32.mrb[0].mxu0
        %v4900 = vadd.f32 %v4851, %v4899
        %v4901 = vpop.f32.mrb[0].mxu0
        %v4902 = vpop.f32.mrb[0].mxu0
        %v4903 = vadd.f32 %v4854, %v4902
        %v4904 = vpop.f32.mrb[0].mxu0
        %4905 = vmatprep.mubr.bf16.mxu0 %v1908
        %4906 = vmatmul.mubr.bf16.gmra.mrb[0].mxu0 %v1907
        %v4907 = vpop.f32.mrb[0].mxu0
        %v4908 = vadd.f32 %v4859, %v4907
        %v4909 = vpop.f32.mrb[0].mxu0
        %v4910 = vpop.f32.mrb[0].mxu0
        %v4911 = vadd.f32 %v4862, %v4910
        %v4912 = vpop.f32.mrb[0].mxu0
        %4913 = vdwg.mxu0
        %4914 = vmatprep.subr.bf16.mxu0 0
        %4915 = vmatpush1.bf16.msra.mxu0 %v3876
        %4916 = vmatprep.subr.bf16.mxu0 0
        %4917 = vmatpush1.bf16.msra.mxu0 %v3877
        %4918 = vmatprep.subr.bf16.mxu0 0
        %4919 = vmatpush1.bf16.msra.mxu0 %v3878
        %4920 = vmatprep.subr.bf16.mxu0 0
        %4921 = vmatpush1.bf16.msra.mxu0 %v3879
        %4922 = vmatprep.subr.bf16.mxu0 0
        %4923 = vmatpush1.bf16.msra.mxu0 %v3880
        %4924 = vmatprep.subr.bf16.mxu0 0
        %4925 = vmatpush1.bf16.msra.mxu0 %v3881
        %4926 = vmatprep.subr.bf16.mxu0 0
        %4927 = vmatpush1.bf16.msra.mxu0 %v3882
        %4928 = vmatprep.subr.bf16.mxu0 0
        %4929 = vmatpush1.bf16.msra.mxu0 %v3883
        %4930 = vmatprep.subr.bf16.mxu0 0
        %4931 = vmatpush1.bf16.msra.mxu0 %v3884
        %4932 = vmatprep.subr.bf16.mxu0 0
        %4933 = vmatpush1.bf16.msra.mxu0 %v3885
        %4934 = vmatprep.subr.bf16.mxu0 0
        %4935 = vmatpush1.bf16.msra.mxu0 %v3886
        %4936 = vmatprep.subr.bf16.mxu0 0
        %4937 = vmatpush1.bf16.msra.mxu0 %v3887
        %4938 = vmatprep.subr.bf16.mxu0 0
        %4939 = vmatpush1.bf16.msra.mxu0 %v3888
        %4940 = vmatprep.subr.bf16.mxu0 0
        %4941 = vmatpush1.bf16.msra.mxu0 %v3889
        %4942 = vmatprep.subr.bf16.mxu0 0
        %4943 = vmatpush1.bf16.msra.mxu0 %v3890
        %4944 = vmatprep.subr.bf16.mxu0 0
        %4945 = vmatpush1.bf16.msra.mxu0 %v3891
        %4946 = vmatprep.mubr.bf16.mxu0 %v1874
        %4947 = vmatmul.mubr.bf16.gmra.mrb[0].mxu0 %v1873
        %v4948 = vpop.f32.mrb[0].mxu0
        %v4949 = vadd.f32 %v4900, %v4948
        %v4950 = vpop.f32.mrb[0].mxu0
        %v4951 = vpop.f32.mrb[0].mxu0
        %v4952 = vadd.f32 %v4903, %v4951
        %v4953 = vpop.f32.mrb[0].mxu0
        %4954 = vmatprep.mubr.bf16.mxu0 %v1910
        %4955 = vmatmul.mubr.bf16.gmra.mrb[0].mxu0 %v1909
        %v4956 = vpop.f32.mrb[0].mxu0
        %v4957 = vadd.f32 %v4908, %v4956
        %v4958 = vpop.f32.mrb[0].mxu0
        %v4959 = vpop.f32.mrb[0].mxu0
        %v4960 = vadd.f32 %v4911, %v4959
        %v4961 = vpop.f32.mrb[0].mxu0
        %4962 = vdwg.mxu0
        %4963 = vmatprep.subr.bf16.mxu0 0
        %4964 = vmatpush1.bf16.msra.mxu0 %v3892
        %4965 = vmatprep.subr.bf16.mxu0 0
        %4966 = vmatpush1.bf16.msra.mxu0 %v3893
        %4967 = vmatprep.subr.bf16.mxu0 0
        %4968 = vmatpush1.bf16.msra.mxu0 %v3894
        %4969 = vmatprep.subr.bf16.mxu0 0
        %4970 = vmatpush1.bf16.msra.mxu0 %v3895
        %4971 = vmatprep.subr.bf16.mxu0 0
        %4972 = vmatpush1.bf16.msra.mxu0 %v3896
        %4973 = vmatprep.subr.bf16.mxu0 0
        %4974 = vmatpush1.bf16.msra.mxu0 %v3897
        %4975 = vmatprep.subr.bf16.mxu0 0
        %4976 = vmatpush1.bf16.msra.mxu0 %v3898
        %4977 = vmatprep.subr.bf16.mxu0 0
        %4978 = vmatpush1.bf16.msra.mxu0 %v3899
        %4979 = vmatprep.subr.bf16.mxu0 0
        %4980 = vmatpush1.bf16.msra.mxu0 %v3900
        %4981 = vmatprep.subr.bf16.mxu0 0
        %4982 = vmatpush1.bf16.msra.mxu0 %v3901
        %4983 = vmatprep.subr.bf16.mxu0 0
        %4984 = vmatpush1.bf16.msra.mxu0 %v3902
        %4985 = vmatprep.subr.bf16.mxu0 0
        %4986 = vmatpush1.bf16.msra.mxu0 %v3903
        %4987 = vmatprep.subr.bf16.mxu0 0
        %4988 = vmatpush1.bf16.msra.mxu0 %v3904
        %4989 = vmatprep.subr.bf16.mxu0 0
        %4990 = vmatpush1.bf16.msra.mxu0 %v3905
        %4991 = vmatprep.subr.bf16.mxu0 0
        %4992 = vmatpush1.bf16.msra.mxu0 %v3906
        %4993 = vmatprep.subr.bf16.mxu0 0
        %4994 = vmatpush1.bf16.msra.mxu0 %v3907
        %4995 = vmatprep.mubr.bf16.mxu0 %v1876
        %4996 = vmatmul.mubr.bf16.gmra.mrb[0].mxu0 %v1875
        %v4997 = vpop.f32.mrb[0].mxu0
        %v4998 = vadd.f32 %v4949, %v4997
        %v4999 = vpop.f32.mrb[0].mxu0
        %v5000 = vpop.f32.mrb[0].mxu0
        %v5001 = vadd.f32 %v4952, %v5000
        %v5002 = vpop.f32.mrb[0].mxu0
        %5003 = vmatprep.mubr.bf16.mxu0 %v1912
        %5004 = vmatmul.mubr.bf16.gmra.mrb[0].mxu0 %v1911
        %v5005 = vpop.f32.mrb[0].mxu0
        %v5006 = vadd.f32 %v4957, %v5005
        %v5007 = vpop.f32.mrb[0].mxu0
        %v5008 = vpop.f32.mrb[0].mxu0
        %v5009 = vadd.f32 %v4960, %v5008
        %v5010 = vpop.f32.mrb[0].mxu0
        %5011 = vdwg.mxu0
        %5012 = vmatprep.subr.bf16.mxu0 0
        %5013 = vmatpush1.bf16.msra.mxu0 %v3908
        %5014 = vmatprep.subr.bf16.mxu0 0
        %5015 = vmatpush1.bf16.msra.mxu0 %v3909
        %5016 = vmatprep.subr.bf16.mxu0 0
        %5017 = vmatpush1.bf16.msra.mxu0 %v3910
        %5018 = vmatprep.subr.bf16.mxu0 0
        %5019 = vmatpush1.bf16.msra.mxu0 %v3911
        %5020 = vmatprep.subr.bf16.mxu0 0
        %5021 = vmatpush1.bf16.msra.mxu0 %v3912
        %5022 = vmatprep.subr.bf16.mxu0 0
        %5023 = vmatpush1.bf16.msra.mxu0 %v3913
        %5024 = vmatprep.subr.bf16.mxu0 0
        %5025 = vmatpush1.bf16.msra.mxu0 %v3914
        %5026 = vmatprep.subr.bf16.mxu0 0
        %5027 = vmatpush1.bf16.msra.mxu0 %v3915
        %5028 = vmatprep.subr.bf16.mxu0 0
        %5029 = vmatpush1.bf16.msra.mxu0 %v3916
        %5030 = vmatprep.subr.bf16.mxu0 0
        %5031 = vmatpush1.bf16.msra.mxu0 %v3917
        %5032 = vmatprep.subr.bf16.mxu0 0
        %5033 = vmatpush1.bf16.msra.mxu0 %v3918
        %5034 = vmatprep.subr.bf16.mxu0 0
        %5035 = vmatpush1.bf16.msra.mxu0 %v3919
        %5036 = vmatprep.subr.bf16.mxu0 0
        %5037 = vmatpush1.bf16.msra.mxu0 %v3920
        %5038 = vmatprep.subr.bf16.mxu0 0
        %5039 = vmatpush1.bf16.msra.mxu0 %v3921
        %5040 = vmatprep.subr.bf16.mxu0 0
        %5041 = vmatpush1.bf16.msra.mxu0 %v3922
        %5042 = vmatprep.subr.bf16.mxu0 0
        %5043 = vmatpush1.bf16.msra.mxu0 %v3923
        %5044 = vmatprep.mubr.bf16.mxu0 %v1878
        %5045 = vmatmul.mubr.bf16.gmra.mrb[0].mxu0 %v1877
        %v5046 = vpop.f32.mrb[0].mxu0
        %v5047 = vadd.f32 %v4998, %v5046
        %v5048 = vpop.f32.mrb[0].mxu0
        %v5049 = vpop.f32.mrb[0].mxu0
        %v5050 = vadd.f32 %v5001, %v5049
        %v5051 = vpop.f32.mrb[0].mxu0
        %5052 = vmatprep.mubr.bf16.mxu0 %v1914
        %5053 = vmatmul.mubr.bf16.gmra.mrb[0].mxu0 %v1913
        %v5054 = vpop.f32.mrb[0].mxu0
        %v5055 = vadd.f32 %v5006, %v5054
        %v5056 = vpop.f32.mrb[0].mxu0
        %v5057 = vpop.f32.mrb[0].mxu0
        %v5058 = vadd.f32 %v5009, %v5057
        %v5059 = vpop.f32.mrb[0].mxu0
        %5060 = vdwg.mxu0
        %5061 = vmatprep.subr.bf16.mxu0 0
        %5062 = vmatpush1.bf16.msra.mxu0 %v3924
        %5063 = vmatprep.subr.bf16.mxu0 0
        %5064 = vmatpush1.bf16.msra.mxu0 %v3925
        %5065 = vmatprep.subr.bf16.mxu0 0
        %5066 = vmatpush1.bf16.msra.mxu0 %v3926
        %5067 = vmatprep.subr.bf16.mxu0 0
        %5068 = vmatpush1.bf16.msra.mxu0 %v3927
        %5069 = vmatprep.subr.bf16.mxu0 0
        %5070 = vmatpush1.bf16.msra.mxu0 %v3928
        %5071 = vmatprep.subr.bf16.mxu0 0
        %5072 = vmatpush1.bf16.msra.mxu0 %v3929
        %5073 = vmatprep.subr.bf16.mxu0 0
        %5074 = vmatpush1.bf16.msra.mxu0 %v3930
        %5075 = vmatprep.subr.bf16.mxu0 0
        %5076 = vmatpush1.bf16.msra.mxu0 %v3931
        %5077 = vmatprep.subr.bf16.mxu0 0
        %5078 = vmatpush1.bf16.msra.mxu0 %v3932
        %5079 = vmatprep.subr.bf16.mxu0 0
        %5080 = vmatpush1.bf16.msra.mxu0 %v3933
        %5081 = vmatprep.subr.bf16.mxu0 0
        %5082 = vmatpush1.bf16.msra.mxu0 %v3934
        %5083 = vmatprep.subr.bf16.mxu0 0
        %5084 = vmatpush1.bf16.msra.mxu0 %v3935
        %5085 = vmatprep.subr.bf16.mxu0 0
        %5086 = vmatpush1.bf16.msra.mxu0 %v3936
        %5087 = vmatprep.subr.bf16.mxu0 0
        %5088 = vmatpush1.bf16.msra.mxu0 %v3937
        %5089 = vmatprep.subr.bf16.mxu0 0
        %5090 = vmatpush1.bf16.msra.mxu0 %v3938
        %5091 = vmatprep.subr.bf16.mxu0 0
        %5092 = vmatpush1.bf16.msra.mxu0 %v3939
        %5093 = vmatprep.mubr.bf16.mxu0 %v1880
        %5094 = vmatmul.mubr.bf16.gmra.mrb[0].mxu0 %v1879
        %v5095 = vpop.f32.mrb[0].mxu0
        %v5096 = vadd.f32 %v5047, %v5095
        %v5097 = vpop.f32.mrb[0].mxu0
        %v5098 = vpop.f32.mrb[0].mxu0
        %v5099 = vadd.f32 %v5050, %v5098
        %v5100 = vpop.f32.mrb[0].mxu0
        %5101 = vmatprep.mubr.bf16.mxu0 %v1916
        %5102 = vmatmul.mubr.bf16.gmra.mrb[0].mxu0 %v1915
        %v5103 = vpop.f32.mrb[0].mxu0
        %v5104 = vadd.f32 %v5055, %v5103
        %v5105 = vpop.f32.mrb[0].mxu0
        %v5106 = vpop.f32.mrb[0].mxu0
        %v5107 = vadd.f32 %v5058, %v5106
        %v5108 = vpop.f32.mrb[0].mxu0
        %5109 = vdwg.mxu0
        %v5110 = vmax.f32 %v5096, 0.0
        %v5111 = vmax.f32 %v5099, 0.0
        %v5112 = vmax.f32 %v5104, 0.0
        %v5113 = vmax.f32 %v5107, 0.0
        %v5114 = vmax.f32 %v5110, %v5111
        %v5115 = vpack.c.bf16 %v5114, %v5114
        %v5116 = vmax.f32 %v5112, %v5113
        %v5117 = vpack.c.bf16 %v5116, %v5116
        %v5119 = vunpack.c.l.b16 %v5115
        %v5120 = vpack.c.b16 %v5119, %v5119
        %v5122 = vshrl.u32 %v5120, 16
        %v5124 = vrot.slane %v5122, 7
        %v5125 = vshll.u32 %v5120, 16
        %v5127 = vor.u32 %v5124, %v5125
        %v5128 = vrot.slane %v5124, 4
        %s5131 = scalar_lea.vmem [#allocation3], 8
        %v5132 = vld [vmem:[%s5131] sm:$0xf]
        %v5133 = vsel %vm392, %v5127, %v5132
        %5134 = vst [vmem:[%s5131] sm:$0xf] %v5133
        %v5135 = vld [vmem:[%s5131 + $0x4] sm:$0x1]
        %v5136 = vsel %vm405, %v5128, %v5135
        %5137 = vst [vmem:[%s5131 + $0x4] sm:$0x1] %v5136
        %v5139 = vunpack.c.l.b16 %v5117
        %v5140 = vpack.c.b16 %v5139, %v5139
        %v5142 = vshrl.u32 %v5140, 16
        %v5144 = vrot.slane %v5142, 7
        %v5145 = vshll.u32 %v5140, 16
        %v5147 = vor.u32 %v5144, %v5145
        %v5148 = vrot.slane %v5144, 4
        %s5151 = scalar_lea.vmem [#allocation3], 16
        %v5152 = vld [vmem:[%s5151] sm:$0xf]
        %v5153 = vsel %vm392, %v5147, %v5152
        %5154 = vst [vmem:[%s5151] sm:$0xf] %v5153
        %v5155 = vld [vmem:[%s5151 + $0x4] sm:$0x1]
        %v5156 = vsel %vm405, %v5148, %v5155
        %5157 = vst [vmem:[%s5151 + $0x4] sm:$0x1] %v5156
        %v5158 = vld [vmem:[#allocation3] sm:$0xf]
        %5159 = vst [vmem:[#allocation5] sm:$0xf] %v5158
        %v5160 = vld [vmem:[#allocation3] sm:$0xf]
        %v5161 = vld [vmem:[#allocation3 + $0x4] sm:$0x1]
        %v5164 = vunpack.c.l.b16 %v5160
        %v5165 = vunpack.c.l.b16 %v5161
        %v5166 = vpack.c.b16 %v5165, %v5164
        %v5168 = vshrl.u32 %v5166, 16
        %v5170 = vshll.u32 %v5166, 16
        %v5172 = vrot.slane %v5170, 1
        %v5173 = vor.u32 %v5168, %v5172
        %5175 = vst [vmem:[#allocation5 + $0x8] sm:$0xf] %v5173
        %v5176 = vld [vmem:[#allocation3] sm:$0xe]
        %v5177 = vld [vmem:[#allocation3 + $0x4] sm:$0x1]
        %v5180 = vunpack.c.l.b16 %v5176
        %v5181 = vunpack.c.l.b16 %v5177
        %v5182 = vpack.c.b16 %v5181, %v5180
        %v5183 = vrot.slane %v5182, 1
        %5185 = vst [vmem:[#allocation5 + $0x10] sm:$0xf] %v5183
        %v5186 = vld [vmem:[%s5131] sm:$0xf]
        %5187 = vst [vmem:[#allocation5 + $0x18] sm:$0xf] %v5186
        %v5188 = vld [vmem:[%s5131] sm:$0xf]
        %v5189 = vld [vmem:[%s5131 + $0x4] sm:$0x1]
        %v5192 = vunpack.c.l.b16 %v5188
        %v5193 = vunpack.c.l.b16 %v5189
        %v5194 = vpack.c.b16 %v5193, %v5192
        %v5196 = vshrl.u32 %v5194, 16
        %v5198 = vshll.u32 %v5194, 16
        %v5200 = vrot.slane %v5198, 1
        %v5201 = vor.u32 %v5196, %v5200
        %5203 = vst [vmem:[#allocation5 + $0x20] sm:$0xf] %v5201
        %v5204 = vld [vmem:[%s5131] sm:$0xe]
        %v5205 = vld [vmem:[%s5131 + $0x4] sm:$0x1]
        %v5208 = vunpack.c.l.b16 %v5204
        %v5209 = vunpack.c.l.b16 %v5205
        %v5210 = vpack.c.b16 %v5209, %v5208
        %v5211 = vrot.slane %v5210, 1
        %5213 = vst [vmem:[#allocation5 + $0x28] sm:$0xf] %v5211
        %v5214 = vld [vmem:[%s5151] sm:$0xf]
        %5215 = vst [vmem:[#allocation5 + $0x30] sm:$0xf] %v5214
        %v5216 = vld [vmem:[%s5151] sm:$0xf]
        %v5217 = vld [vmem:[%s5151 + $0x4] sm:$0x1]
        %v5220 = vunpack.c.l.b16 %v5216
        %v5221 = vunpack.c.l.b16 %v5217
        %v5222 = vpack.c.b16 %v5221, %v5220
        %v5224 = vshrl.u32 %v5222, 16
        %v5226 = vshll.u32 %v5222, 16
        %v5228 = vrot.slane %v5226, 1
        %v5229 = vor.u32 %v5224, %v5228
        %5231 = vst [vmem:[#allocation5 + $0x38] sm:$0xf] %v5229
        %v5232 = vld [vmem:[%s5151] sm:$0xe]
        %v5233 = vld [vmem:[%s5151 + $0x4] sm:$0x1]
        %v5236 = vunpack.c.l.b16 %v5232
        %v5237 = vunpack.c.l.b16 %v5233
        %v5238 = vpack.c.b16 %v5237, %v5236
        %v5239 = vrot.slane %v5238, 1
        %5241 = vst [vmem:[#allocation5 + $0x40] sm:$0xf] %v5239
        %v5242 = vld [vmem:[%s5131] sm:$0xf]
        %v5244 = vunpack.c.l.b16 %v5242
        %v5245 = vpack.c.b16 %v5244, %v5244
        %5247 = vst [vmem:[#allocation5] sm:$0xf0] %v5245
        %v5248 = vld [vmem:[%s5131] sm:$0xf]
        %v5249 = vld [vmem:[%s5131 + $0x4] sm:$0x1]
        %v5252 = vunpack.c.l.b16 %v5248
        %v5253 = vunpack.c.l.b16 %v5249
        %v5254 = vpack.c.b16 %v5253, %v5252
        %v5256 = vshrl.u32 %v5254, 16
        %v5258 = vrot.slane %v5256, 4
        %v5259 = vshll.u32 %v5254, 16
        %v5261 = vrot.slane %v5259, 5
        %v5262 = vor.u32 %v5258, %v5261
        %5264 = vst [vmem:[#allocation5 + $0x8] sm:$0xf0] %v5262
        %v5265 = vld [vmem:[%s5131] sm:$0xe]
        %v5266 = vld [vmem:[%s5131 + $0x4] sm:$0x1]
        %v5269 = vunpack.c.l.b16 %v5265
        %v5270 = vunpack.c.l.b16 %v5266
        %v5271 = vpack.c.b16 %v5270, %v5269
        %v5272 = vrot.slane %v5271, 5
        %5274 = vst [vmem:[#allocation5 + $0x10] sm:$0xf0] %v5272
        %v5275 = vld [vmem:[%s5151] sm:$0xf]
        %v5277 = vunpack.c.l.b16 %v5275
        %v5278 = vpack.c.b16 %v5277, %v5277
        %5280 = vst [vmem:[#allocation5 + $0x18] sm:$0xf0] %v5278
        %v5281 = vld [vmem:[%s5151] sm:$0xf]
        %v5282 = vld [vmem:[%s5151 + $0x4] sm:$0x1]
        %v5285 = vunpack.c.l.b16 %v5281
        %v5286 = vunpack.c.l.b16 %v5282
        %v5287 = vpack.c.b16 %v5286, %v5285
        %v5289 = vshrl.u32 %v5287, 16
        %v5291 = vrot.slane %v5289, 4
        %v5292 = vshll.u32 %v5287, 16
        %v5294 = vrot.slane %v5292, 5
        %v5295 = vor.u32 %v5291, %v5294
        %5297 = vst [vmem:[#allocation5 + $0x20] sm:$0xf0] %v5295
        %v5298 = vld [vmem:[%s5151] sm:$0xe]
        %v5299 = vld [vmem:[%s5151 + $0x4] sm:$0x1]
        %v5302 = vunpack.c.l.b16 %v5298
        %v5303 = vunpack.c.l.b16 %v5299
        %v5304 = vpack.c.b16 %v5303, %v5302
        %v5305 = vrot.slane %v5304, 5
        %5307 = vst [vmem:[#allocation5 + $0x28] sm:$0xf0] %v5305
        %s5308 = scalar_lea.vmem [#allocation3], 24
        %v5309 = vld [vmem:[%s5308] sm:$0xf]
        %v5311 = vunpack.c.l.b16 %v5309
        %v5312 = vpack.c.b16 %v5311, %v5311
        %5314 = vst [vmem:[#allocation5 + $0x30] sm:$0xf0] %v5312
        %v5315 = vld [vmem:[%s5308] sm:$0xf]
        %v5316 = vld [vmem:[%s5308 + $0x4] sm:$0x1]
        %v5319 = vunpack.c.l.b16 %v5315
        %v5320 = vunpack.c.l.b16 %v5316
        %v5321 = vpack.c.b16 %v5320, %v5319
        %v5323 = vshrl.u32 %v5321, 16
        %v5325 = vrot.slane %v5323, 4
        %v5326 = vshll.u32 %v5321, 16
        %v5328 = vrot.slane %v5326, 5
        %v5329 = vor.u32 %v5325, %v5328
        %5331 = vst [vmem:[#allocation5 + $0x38] sm:$0xf0] %v5329
        %v5332 = vld [vmem:[%s5308] sm:$0xe]
        %v5333 = vld [vmem:[%s5308 + $0x4] sm:$0x1]
        %v5336 = vunpack.c.l.b16 %v5332
        %v5337 = vunpack.c.l.b16 %v5333
        %v5338 = vpack.c.b16 %v5337, %v5336
        %v5339 = vrot.slane %v5338, 5
        %5341 = vst [vmem:[#allocation5 + $0x40] sm:$0xf0] %v5339
        %v5342 = vld [vmem:[#allocation5] sm:$0xff]
        %v5343 = vld [vmem:[#allocation5 + $0x8] sm:$0xff]
        %v5344 = vld [vmem:[#allocation5 + $0x10] sm:$0xff]
        %v5345 = vld [vmem:[#allocation5 + $0x18] sm:$0xff]
        %v5346 = vld [vmem:[#allocation5 + $0x20] sm:$0xff]
        %v5347 = vld [vmem:[#allocation5 + $0x28] sm:$0xff]
        %v5348 = vld [vmem:[#allocation5 + $0x30] sm:$0xff]
        %v5349 = vld [vmem:[#allocation5 + $0x38] sm:$0xff]
        %v5350 = vld [vmem:[#allocation5 + $0x40] sm:$0xff]
        %v5351 = vld [vmem:[#allocation12] sm:$0xf]
        %v5352 = vld [vmem:[#allocation12 + $0x4] sm:$0xf]
        %v5353 = vld [vmem:[#allocation12 + $0x8] sm:$0xf]
        %v5354 = vld [vmem:[#allocation12 + $0xc] sm:$0xf]
        %v5355 = vld [vmem:[#allocation12 + $0x10] sm:$0xf]
        %v5356 = vld [vmem:[#allocation12 + $0x14] sm:$0xf]
        %v5357 = vld [vmem:[#allocation12 + $0x18] sm:$0xf]
        %v5358 = vld [vmem:[#allocation12 + $0x1c] sm:$0xf]
        %v5359 = vld [vmem:[#allocation12 + $0x20] sm:$0xf]
        %v5360 = vld [vmem:[#allocation12 + $0x24] sm:$0xf]
        %v5361 = vld [vmem:[#allocation12 + $0x28] sm:$0xf]
        %v5362 = vld [vmem:[#allocation12 + $0x2c] sm:$0xf]
        %v5363 = vld [vmem:[#allocation12 + $0x30] sm:$0xf]
        %v5364 = vld [vmem:[#allocation12 + $0x34] sm:$0xf]
        %v5365 = vld [vmem:[#allocation12 + $0x38] sm:$0xf]
        %v5366 = vld [vmem:[#allocation12 + $0x3c] sm:$0xf]
        %v5367 = vld [vmem:[#allocation12 + $0x40] sm:$0xf]
        %v5368 = vld [vmem:[#allocation12 + $0x44] sm:$0xf]
        %v5369 = vld [vmem:[#allocation12 + $0x48] sm:$0xf]
        %v5370 = vld [vmem:[#allocation12 + $0x4c] sm:$0xf]
        %v5371 = vld [vmem:[#allocation12 + $0x50] sm:$0xf]
        %v5372 = vld [vmem:[#allocation12 + $0x54] sm:$0xf]
        %v5373 = vld [vmem:[#allocation12 + $0x58] sm:$0xf]
        %v5374 = vld [vmem:[#allocation12 + $0x5c] sm:$0xf]
        %v5375 = vld [vmem:[#allocation12 + $0x60] sm:$0xf]
        %v5376 = vld [vmem:[#allocation12 + $0x64] sm:$0xf]
        %v5377 = vld [vmem:[#allocation12 + $0x68] sm:$0xf]
        %v5378 = vld [vmem:[#allocation12 + $0x6c] sm:$0xf]
        %v5379 = vld [vmem:[#allocation12 + $0x70] sm:$0xf]
        %v5380 = vld [vmem:[#allocation12 + $0x74] sm:$0xf]
        %v5381 = vld [vmem:[#allocation12 + $0x78] sm:$0xf]
        %v5382 = vld [vmem:[#allocation12 + $0x7c] sm:$0xf]
        %v5383 = vld [vmem:[#allocation12 + $0x80] sm:$0xf]
        %v5384 = vld [vmem:[#allocation12 + $0x84] sm:$0xf]
        %v5385 = vld [vmem:[#allocation12 + $0x88] sm:$0xf]
        %v5386 = vld [vmem:[#allocation12 + $0x8c] sm:$0xf]
        %v5387 = vld [vmem:[#allocation12 + $0x90] sm:$0xf]
        %v5388 = vld [vmem:[#allocation12 + $0x94] sm:$0xf]
        %v5389 = vld [vmem:[#allocation12 + $0x98] sm:$0xf]
        %v5390 = vld [vmem:[#allocation12 + $0x9c] sm:$0xf]
        %v5391 = vld [vmem:[#allocation12 + $0xa0] sm:$0xf]
        %v5392 = vld [vmem:[#allocation12 + $0xa4] sm:$0xf]
        %v5393 = vld [vmem:[#allocation12 + $0xa8] sm:$0xf]
        %v5394 = vld [vmem:[#allocation12 + $0xac] sm:$0xf]
        %v5395 = vld [vmem:[#allocation12 + $0xb0] sm:$0xf]
        %v5396 = vld [vmem:[#allocation12 + $0xb4] sm:$0xf]
        %v5397 = vld [vmem:[#allocation12 + $0xb8] sm:$0xf]
        %v5398 = vld [vmem:[#allocation12 + $0xbc] sm:$0xf]
        %v5399 = vld [vmem:[#allocation12 + $0xc0] sm:$0xf]
        %v5400 = vld [vmem:[#allocation12 + $0xc4] sm:$0xf]
        %v5401 = vld [vmem:[#allocation12 + $0xc8] sm:$0xf]
        %v5402 = vld [vmem:[#allocation12 + $0xcc] sm:$0xf]
        %v5403 = vld [vmem:[#allocation12 + $0xd0] sm:$0xf]
        %v5404 = vld [vmem:[#allocation12 + $0xd4] sm:$0xf]
        %v5405 = vld [vmem:[#allocation12 + $0xd8] sm:$0xf]
        %v5406 = vld [vmem:[#allocation12 + $0xdc] sm:$0xf]
        %v5407 = vld [vmem:[#allocation12 + $0xe0] sm:$0xf]
        %v5408 = vld [vmem:[#allocation12 + $0xe4] sm:$0xf]
        %v5409 = vld [vmem:[#allocation12 + $0xe8] sm:$0xf]
        %v5410 = vld [vmem:[#allocation12 + $0xec] sm:$0xf]
        %v5411 = vld [vmem:[#allocation12 + $0xf0] sm:$0xf]
        %v5412 = vld [vmem:[#allocation12 + $0xf4] sm:$0xf]
        %v5413 = vld [vmem:[#allocation12 + $0xf8] sm:$0xf]
        %v5414 = vld [vmem:[#allocation12 + $0xfc] sm:$0xf]
        %v5415 = vld [vmem:[#allocation12 + $0x100] sm:$0xf]
        %v5416 = vld [vmem:[#allocation12 + $0x104] sm:$0xf]
        %v5417 = vld [vmem:[#allocation12 + $0x108] sm:$0xf]
        %v5418 = vld [vmem:[#allocation12 + $0x10c] sm:$0xf]
        %v5419 = vld [vmem:[#allocation12 + $0x110] sm:$0xf]
        %v5420 = vld [vmem:[#allocation12 + $0x114] sm:$0xf]
        %v5421 = vld [vmem:[#allocation12 + $0x118] sm:$0xf]
        %v5422 = vld [vmem:[#allocation12 + $0x11c] sm:$0xf]
        %v5423 = vld [vmem:[#allocation12 + $0x120] sm:$0xf]
        %v5424 = vld [vmem:[#allocation12 + $0x124] sm:$0xf]
        %v5425 = vld [vmem:[#allocation12 + $0x128] sm:$0xf]
        %v5426 = vld [vmem:[#allocation12 + $0x12c] sm:$0xf]
        %v5427 = vld [vmem:[#allocation12 + $0x130] sm:$0xf]
        %v5428 = vld [vmem:[#allocation12 + $0x134] sm:$0xf]
        %v5429 = vld [vmem:[#allocation12 + $0x138] sm:$0xf]
        %v5430 = vld [vmem:[#allocation12 + $0x13c] sm:$0xf]
        %v5431 = vld [vmem:[#allocation12 + $0x140] sm:$0xf]
        %v5432 = vld [vmem:[#allocation12 + $0x144] sm:$0xf]
        %v5433 = vld [vmem:[#allocation12 + $0x148] sm:$0xf]
        %v5434 = vld [vmem:[#allocation12 + $0x14c] sm:$0xf]
        %v5435 = vld [vmem:[#allocation12 + $0x150] sm:$0xf]
        %v5436 = vld [vmem:[#allocation12 + $0x154] sm:$0xf]
        %v5437 = vld [vmem:[#allocation12 + $0x158] sm:$0xf]
        %v5438 = vld [vmem:[#allocation12 + $0x15c] sm:$0xf]
        %v5439 = vld [vmem:[#allocation12 + $0x160] sm:$0xf]
        %v5440 = vld [vmem:[#allocation12 + $0x164] sm:$0xf]
        %v5441 = vld [vmem:[#allocation12 + $0x168] sm:$0xf]
        %v5442 = vld [vmem:[#allocation12 + $0x16c] sm:$0xf]
        %v5443 = vld [vmem:[#allocation12 + $0x170] sm:$0xf]
        %v5444 = vld [vmem:[#allocation12 + $0x174] sm:$0xf]
        %v5445 = vld [vmem:[#allocation12 + $0x178] sm:$0xf]
        %v5446 = vld [vmem:[#allocation12 + $0x17c] sm:$0xf]
        %v5447 = vld [vmem:[#allocation12 + $0x180] sm:$0xf]
        %v5448 = vld [vmem:[#allocation12 + $0x184] sm:$0xf]
        %v5449 = vld [vmem:[#allocation12 + $0x188] sm:$0xf]
        %v5450 = vld [vmem:[#allocation12 + $0x18c] sm:$0xf]
        %v5451 = vld [vmem:[#allocation12 + $0x190] sm:$0xf]
        %v5452 = vld [vmem:[#allocation12 + $0x194] sm:$0xf]
        %v5453 = vld [vmem:[#allocation12 + $0x198] sm:$0xf]
        %v5454 = vld [vmem:[#allocation12 + $0x19c] sm:$0xf]
        %v5455 = vld [vmem:[#allocation12 + $0x1a0] sm:$0xf]
        %v5456 = vld [vmem:[#allocation12 + $0x1a4] sm:$0xf]
        %v5457 = vld [vmem:[#allocation12 + $0x1a8] sm:$0xf]
        %v5458 = vld [vmem:[#allocation12 + $0x1ac] sm:$0xf]
        %v5459 = vld [vmem:[#allocation12 + $0x1b0] sm:$0xf]
        %v5460 = vld [vmem:[#allocation12 + $0x1b4] sm:$0xf]
        %v5461 = vld [vmem:[#allocation12 + $0x1b8] sm:$0xf]
        %v5462 = vld [vmem:[#allocation12 + $0x1bc] sm:$0xf]
        %v5463 = vld [vmem:[#allocation12 + $0x1c0] sm:$0xf]
        %v5464 = vld [vmem:[#allocation12 + $0x1c4] sm:$0xf]
        %v5465 = vld [vmem:[#allocation12 + $0x1c8] sm:$0xf]
        %v5466 = vld [vmem:[#allocation12 + $0x1cc] sm:$0xf]
        %v5467 = vld [vmem:[#allocation12 + $0x1d0] sm:$0xf]
        %v5468 = vld [vmem:[#allocation12 + $0x1d4] sm:$0xf]
        %v5469 = vld [vmem:[#allocation12 + $0x1d8] sm:$0xf]
        %v5470 = vld [vmem:[#allocation12 + $0x1dc] sm:$0xf]
        %v5471 = vld [vmem:[#allocation12 + $0x1e0] sm:$0xf]
        %v5472 = vld [vmem:[#allocation12 + $0x1e4] sm:$0xf]
        %v5473 = vld [vmem:[#allocation12 + $0x1e8] sm:$0xf]
        %v5474 = vld [vmem:[#allocation12 + $0x1ec] sm:$0xf]
        %v5475 = vld [vmem:[#allocation12 + $0x1f0] sm:$0xf]
        %v5476 = vld [vmem:[#allocation12 + $0x1f4] sm:$0xf]
        %v5477 = vld [vmem:[#allocation12 + $0x1f8] sm:$0xf]
        %v5478 = vld [vmem:[#allocation12 + $0x1fc] sm:$0xf]
        %v5479 = vld [vmem:[#allocation12 + $0x200] sm:$0xf]
        %v5480 = vld [vmem:[#allocation12 + $0x204] sm:$0xf]
        %v5481 = vld [vmem:[#allocation12 + $0x208] sm:$0xf]
        %v5482 = vld [vmem:[#allocation12 + $0x20c] sm:$0xf]
        %v5483 = vld [vmem:[#allocation12 + $0x210] sm:$0xf]
        %v5484 = vld [vmem:[#allocation12 + $0x214] sm:$0xf]
        %v5485 = vld [vmem:[#allocation12 + $0x218] sm:$0xf]
        %v5486 = vld [vmem:[#allocation12 + $0x21c] sm:$0xf]
        %v5487 = vld [vmem:[#allocation12 + $0x220] sm:$0xf]
        %v5488 = vld [vmem:[#allocation12 + $0x224] sm:$0xf]
        %v5489 = vld [vmem:[#allocation12 + $0x228] sm:$0xf]
        %v5490 = vld [vmem:[#allocation12 + $0x22c] sm:$0xf]
        %v5491 = vld [vmem:[#allocation12 + $0x230] sm:$0xf]
        %v5492 = vld [vmem:[#allocation12 + $0x234] sm:$0xf]
        %v5493 = vld [vmem:[#allocation12 + $0x238] sm:$0xf]
        %v5494 = vld [vmem:[#allocation12 + $0x23c] sm:$0xf]
        %v5495 = vld [vmem:[#allocation13] sm:$0x1]
        %v5497 = vlaneseq
        %v5498 = vshrl.u32 %v5497, 7
        %v5499 = vsub.s32 0, %v5498
        %v5500 = vrot.slane %v5495, %v5499
        %v5646 = vunpack.c.l.b16 %v5351
        %v5647 = vunpack.c.l.b16 %v5352
        %v5648 = vunpack.c.l.b16 %v5353
        %v5649 = vunpack.c.l.b16 %v5354
        %v5650 = vunpack.c.l.b16 %v5355
        %v5651 = vunpack.c.l.b16 %v5356
        %v5652 = vunpack.c.l.b16 %v5357
        %v5653 = vunpack.c.l.b16 %v5358
        %v5654 = vunpack.c.l.b16 %v5359
        %v5655 = vunpack.c.l.b16 %v5360
        %v5656 = vunpack.c.l.b16 %v5361
        %v5657 = vunpack.c.l.b16 %v5362
        %v5658 = vunpack.c.l.b16 %v5363
        %v5659 = vunpack.c.l.b16 %v5364
        %v5660 = vunpack.c.l.b16 %v5365
        %v5661 = vunpack.c.l.b16 %v5366
        %v5662 = vunpack.c.l.b16 %v5367
        %v5663 = vunpack.c.l.b16 %v5368
        %v5664 = vunpack.c.l.b16 %v5369
        %v5665 = vunpack.c.l.b16 %v5370
        %v5666 = vunpack.c.l.b16 %v5371
        %v5667 = vunpack.c.l.b16 %v5372
        %v5668 = vunpack.c.l.b16 %v5373
        %v5669 = vunpack.c.l.b16 %v5374
        %v5670 = vunpack.c.l.b16 %v5375
        %v5671 = vunpack.c.l.b16 %v5376
        %v5672 = vunpack.c.l.b16 %v5377
        %v5673 = vunpack.c.l.b16 %v5378
        %v5674 = vunpack.c.l.b16 %v5379
        %v5675 = vunpack.c.l.b16 %v5380
        %v5676 = vunpack.c.l.b16 %v5381
        %v5677 = vunpack.c.l.b16 %v5382
        %v5678 = vunpack.c.l.b16 %v5383
        %v5679 = vunpack.c.l.b16 %v5384
        %v5680 = vunpack.c.l.b16 %v5385
        %v5681 = vunpack.c.l.b16 %v5386
        %v5682 = vunpack.c.l.b16 %v5387
        %v5683 = vunpack.c.l.b16 %v5388
        %v5684 = vunpack.c.l.b16 %v5389
        %v5685 = vunpack.c.l.b16 %v5390
        %v5686 = vunpack.c.l.b16 %v5391
        %v5687 = vunpack.c.l.b16 %v5392
        %v5688 = vunpack.c.l.b16 %v5393
        %v5689 = vunpack.c.l.b16 %v5394
        %v5690 = vunpack.c.l.b16 %v5395
        %v5691 = vunpack.c.l.b16 %v5396
        %v5692 = vunpack.c.l.b16 %v5397
        %v5693 = vunpack.c.l.b16 %v5398
        %v5694 = vunpack.c.l.b16 %v5399
        %v5695 = vunpack.c.l.b16 %v5400
        %v5696 = vunpack.c.l.b16 %v5401
        %v5697 = vunpack.c.l.b16 %v5402
        %v5698 = vunpack.c.l.b16 %v5403
        %v5699 = vunpack.c.l.b16 %v5404
        %v5700 = vunpack.c.l.b16 %v5405
        %v5701 = vunpack.c.l.b16 %v5406
        %v5702 = vunpack.c.l.b16 %v5407
        %v5703 = vunpack.c.l.b16 %v5408
        %v5704 = vunpack.c.l.b16 %v5409
        %v5705 = vunpack.c.l.b16 %v5410
        %v5706 = vunpack.c.l.b16 %v5411
        %v5707 = vunpack.c.l.b16 %v5412
        %v5708 = vunpack.c.l.b16 %v5413
        %v5709 = vunpack.c.l.b16 %v5414
        %v5710 = vunpack.c.l.b16 %v5415
        %v5711 = vunpack.c.l.b16 %v5416
        %v5712 = vunpack.c.l.b16 %v5417
        %v5713 = vunpack.c.l.b16 %v5418
        %v5714 = vunpack.c.l.b16 %v5419
        %v5715 = vunpack.c.l.b16 %v5420
        %v5716 = vunpack.c.l.b16 %v5421
        %v5717 = vunpack.c.l.b16 %v5422
        %v5718 = vunpack.c.l.b16 %v5423
        %v5719 = vunpack.c.l.b16 %v5424
        %v5720 = vunpack.c.l.b16 %v5425
        %v5721 = vunpack.c.l.b16 %v5426
        %v5722 = vunpack.c.l.b16 %v5427
        %v5723 = vunpack.c.l.b16 %v5428
        %v5724 = vunpack.c.l.b16 %v5429
        %v5725 = vunpack.c.l.b16 %v5430
        %v5726 = vunpack.c.l.b16 %v5431
        %v5727 = vunpack.c.l.b16 %v5432
        %v5728 = vunpack.c.l.b16 %v5433
        %v5729 = vunpack.c.l.b16 %v5434
        %v5730 = vunpack.c.l.b16 %v5435
        %v5731 = vunpack.c.l.b16 %v5436
        %v5732 = vunpack.c.l.b16 %v5437
        %v5733 = vunpack.c.l.b16 %v5438
        %v5734 = vunpack.c.l.b16 %v5439
        %v5735 = vunpack.c.l.b16 %v5440
        %v5736 = vunpack.c.l.b16 %v5441
        %v5737 = vunpack.c.l.b16 %v5442
        %v5738 = vunpack.c.l.b16 %v5443
        %v5739 = vunpack.c.l.b16 %v5444
        %v5740 = vunpack.c.l.b16 %v5445
        %v5741 = vunpack.c.l.b16 %v5446
        %v5742 = vunpack.c.l.b16 %v5447
        %v5743 = vunpack.c.l.b16 %v5448
        %v5744 = vunpack.c.l.b16 %v5449
        %v5745 = vunpack.c.l.b16 %v5450
        %v5746 = vunpack.c.l.b16 %v5451
        %v5747 = vunpack.c.l.b16 %v5452
        %v5748 = vunpack.c.l.b16 %v5453
        %v5749 = vunpack.c.l.b16 %v5454
        %v5750 = vunpack.c.l.b16 %v5455
        %v5751 = vunpack.c.l.b16 %v5456
        %v5752 = vunpack.c.l.b16 %v5457
        %v5753 = vunpack.c.l.b16 %v5458
        %v5754 = vunpack.c.l.b16 %v5459
        %v5755 = vunpack.c.l.b16 %v5460
        %v5756 = vunpack.c.l.b16 %v5461
        %v5757 = vunpack.c.l.b16 %v5462
        %v5758 = vunpack.c.l.b16 %v5463
        %v5759 = vunpack.c.l.b16 %v5464
        %v5760 = vunpack.c.l.b16 %v5465
        %v5761 = vunpack.c.l.b16 %v5466
        %v5762 = vunpack.c.l.b16 %v5467
        %v5763 = vunpack.c.l.b16 %v5468
        %v5764 = vunpack.c.l.b16 %v5469
        %v5765 = vunpack.c.l.b16 %v5470
        %v5766 = vunpack.c.l.b16 %v5471
        %v5767 = vunpack.c.l.b16 %v5472
        %v5768 = vunpack.c.l.b16 %v5473
        %v5769 = vunpack.c.l.b16 %v5474
        %v5770 = vunpack.c.l.b16 %v5475
        %v5771 = vunpack.c.l.b16 %v5476
        %v5772 = vunpack.c.l.b16 %v5477
        %v5773 = vunpack.c.l.b16 %v5478
        %v5774 = vunpack.c.l.b16 %v5479
        %v5775 = vunpack.c.l.b16 %v5480
        %v5776 = vunpack.c.l.b16 %v5481
        %v5777 = vunpack.c.l.b16 %v5482
        %v5778 = vunpack.c.l.b16 %v5483
        %v5779 = vunpack.c.l.b16 %v5484
        %v5780 = vunpack.c.l.b16 %v5485
        %v5781 = vunpack.c.l.b16 %v5486
        %v5782 = vunpack.c.l.b16 %v5487
        %v5783 = vunpack.c.l.b16 %v5488
        %v5784 = vunpack.c.l.b16 %v5489
        %v5785 = vunpack.c.l.b16 %v5490
        %v5786 = vunpack.c.l.b16 %v5491
        %v5787 = vunpack.c.l.b16 %v5492
        %v5788 = vunpack.c.l.b16 %v5493
        %v5789 = vunpack.c.l.b16 %v5494
        %v5790 = vpack.c.b16 %v5647, %v5646
        %v5791 = vpack.c.b16 %v5649, %v5648
        %v5792 = vpack.c.b16 %v5651, %v5650
        %v5793 = vpack.c.b16 %v5653, %v5652
        %v5794 = vpack.c.b16 %v5655, %v5654
        %v5795 = vpack.c.b16 %v5657, %v5656
        %v5796 = vpack.c.b16 %v5659, %v5658
        %v5797 = vpack.c.b16 %v5661, %v5660
        %v5798 = vpack.c.b16 %v5663, %v5662
        %v5799 = vpack.c.b16 %v5665, %v5664
        %v5800 = vpack.c.b16 %v5667, %v5666
        %v5801 = vpack.c.b16 %v5669, %v5668
        %v5802 = vpack.c.b16 %v5671, %v5670
        %v5803 = vpack.c.b16 %v5673, %v5672
        %v5804 = vpack.c.b16 %v5675, %v5674
        %v5805 = vpack.c.b16 %v5677, %v5676
        %v5806 = vpack.c.b16 %v5679, %v5678
        %v5807 = vpack.c.b16 %v5681, %v5680
        %v5808 = vpack.c.b16 %v5683, %v5682
        %v5809 = vpack.c.b16 %v5685, %v5684
        %v5810 = vpack.c.b16 %v5687, %v5686
        %v5811 = vpack.c.b16 %v5689, %v5688
        %v5812 = vpack.c.b16 %v5691, %v5690
        %v5813 = vpack.c.b16 %v5693, %v5692
        %v5814 = vpack.c.b16 %v5695, %v5694
        %v5815 = vpack.c.b16 %v5697, %v5696
        %v5816 = vpack.c.b16 %v5699, %v5698
        %v5817 = vpack.c.b16 %v5701, %v5700
        %v5818 = vpack.c.b16 %v5703, %v5702
        %v5819 = vpack.c.b16 %v5705, %v5704
        %v5820 = vpack.c.b16 %v5707, %v5706
        %v5821 = vpack.c.b16 %v5709, %v5708
        %v5822 = vpack.c.b16 %v5711, %v5710
        %v5823 = vpack.c.b16 %v5713, %v5712
        %v5824 = vpack.c.b16 %v5715, %v5714
        %v5825 = vpack.c.b16 %v5717, %v5716
        %v5826 = vpack.c.b16 %v5719, %v5718
        %v5827 = vpack.c.b16 %v5721, %v5720
        %v5828 = vpack.c.b16 %v5723, %v5722
        %v5829 = vpack.c.b16 %v5725, %v5724
        %v5830 = vpack.c.b16 %v5727, %v5726
        %v5831 = vpack.c.b16 %v5729, %v5728
        %v5832 = vpack.c.b16 %v5731, %v5730
        %v5833 = vpack.c.b16 %v5733, %v5732
        %v5834 = vpack.c.b16 %v5735, %v5734
        %v5835 = vpack.c.b16 %v5737, %v5736
        %v5836 = vpack.c.b16 %v5739, %v5738
        %v5837 = vpack.c.b16 %v5741, %v5740
        %v5838 = vpack.c.b16 %v5743, %v5742
        %v5839 = vpack.c.b16 %v5745, %v5744
        %v5840 = vpack.c.b16 %v5747, %v5746
        %v5841 = vpack.c.b16 %v5749, %v5748
        %v5842 = vpack.c.b16 %v5751, %v5750
        %v5843 = vpack.c.b16 %v5753, %v5752
        %v5844 = vpack.c.b16 %v5755, %v5754
        %v5845 = vpack.c.b16 %v5757, %v5756
        %v5846 = vpack.c.b16 %v5759, %v5758
        %v5847 = vpack.c.b16 %v5761, %v5760
        %v5848 = vpack.c.b16 %v5763, %v5762
        %v5849 = vpack.c.b16 %v5765, %v5764
        %v5850 = vpack.c.b16 %v5767, %v5766
        %v5851 = vpack.c.b16 %v5769, %v5768
        %v5852 = vpack.c.b16 %v5771, %v5770
        %v5853 = vpack.c.b16 %v5773, %v5772
        %v5854 = vpack.c.b16 %v5775, %v5774
        %v5855 = vpack.c.b16 %v5777, %v5776
        %v5856 = vpack.c.b16 %v5779, %v5778
        %v5857 = vpack.c.b16 %v5781, %v5780
        %v5858 = vpack.c.b16 %v5783, %v5782
        %v5859 = vpack.c.b16 %v5785, %v5784
        %v5860 = vpack.c.b16 %v5787, %v5786
        %v5861 = vpack.c.b16 %v5789, %v5788
        %5934 = vmatprep.subr.bf16.mxu0 0
        %5935 = vmatpush1.bf16.msra.mxu0 %v5790
        %5936 = vmatprep.subr.bf16.mxu0 0
        %5937 = vmatpush1.bf16.msra.mxu0 %v5791
        %5938 = vmatprep.subr.bf16.mxu0 0
        %5939 = vmatpush1.bf16.msra.mxu0 %v5792
        %5940 = vmatprep.subr.bf16.mxu0 0
        %5941 = vmatpush1.bf16.msra.mxu0 %v5793
        %5942 = vmatprep.subr.bf16.mxu0 0
        %5943 = vmatpush1.bf16.msra.mxu0 %v5794
        %5944 = vmatprep.subr.bf16.mxu0 0
        %5945 = vmatpush1.bf16.msra.mxu0 %v5795
        %5946 = vmatprep.subr.bf16.mxu0 0
        %5947 = vmatpush1.bf16.msra.mxu0 %v5796
        %5948 = vmatprep.subr.bf16.mxu0 0
        %5949 = vmatpush1.bf16.msra.mxu0 %v5797
        %5950 = vmatprep.subr.bf16.mxu0 0
        %5951 = vmatpush1.bf16.msra.mxu0 %v5798
        %5952 = vmatprep.subr.bf16.mxu0 0
        %5953 = vmatpush1.bf16.msra.mxu0 %v5799
        %5954 = vmatprep.subr.bf16.mxu0 0
        %5955 = vmatpush1.bf16.msra.mxu0 %v5800
        %5956 = vmatprep.subr.bf16.mxu0 0
        %5957 = vmatpush1.bf16.msra.mxu0 %v5801
        %5958 = vmatprep.subr.bf16.mxu0 0
        %5959 = vmatpush1.bf16.msra.mxu0 %v5802
        %5960 = vmatprep.subr.bf16.mxu0 0
        %5961 = vmatpush1.bf16.msra.mxu0 %v5803
        %5962 = vmatprep.subr.bf16.mxu0 0
        %5963 = vmatpush1.bf16.msra.mxu0 %v5804
        %5964 = vmatprep.subr.bf16.mxu0 0
        %5965 = vmatpush1.bf16.msra.mxu0 %v5805
        %5966 = vmatprep.mubr.bf16.mxu0 %v5343
        %5967 = vmatmul.mubr.bf16.gmra.mrb[0].mxu0 %v5342
        %v5968 = vpop.f32.mrb[0].mxu0
        %v5969 = vadd.f32 %v5500, %v5968
        %v5970 = vpop.f32.mrb[0].mxu0
        %v5971 = vpop.f32.mrb[0].mxu0
        %v5972 = vadd.f32 %v5500, %v5971
        %v5973 = vpop.f32.mrb[0].mxu0
        %5974 = vdwg.mxu0
        %5975 = vmatprep.subr.bf16.mxu0 0
        %5976 = vmatpush1.bf16.msra.mxu0 %v5806
        %5977 = vmatprep.subr.bf16.mxu0 0
        %5978 = vmatpush1.bf16.msra.mxu0 %v5807
        %5979 = vmatprep.subr.bf16.mxu0 0
        %5980 = vmatpush1.bf16.msra.mxu0 %v5808
        %5981 = vmatprep.subr.bf16.mxu0 0
        %5982 = vmatpush1.bf16.msra.mxu0 %v5809
        %5983 = vmatprep.subr.bf16.mxu0 0
        %5984 = vmatpush1.bf16.msra.mxu0 %v5810
        %5985 = vmatprep.subr.bf16.mxu0 0
        %5986 = vmatpush1.bf16.msra.mxu0 %v5811
        %5987 = vmatprep.subr.bf16.mxu0 0
        %5988 = vmatpush1.bf16.msra.mxu0 %v5812
        %5989 = vmatprep.subr.bf16.mxu0 0
        %5990 = vmatpush1.bf16.msra.mxu0 %v5813
        %5991 = vmatprep.subr.bf16.mxu0 0
        %5992 = vmatpush1.bf16.msra.mxu0 %v5814
        %5993 = vmatprep.subr.bf16.mxu0 0
        %5994 = vmatpush1.bf16.msra.mxu0 %v5815
        %5995 = vmatprep.subr.bf16.mxu0 0
        %5996 = vmatpush1.bf16.msra.mxu0 %v5816
        %5997 = vmatprep.subr.bf16.mxu0 0
        %5998 = vmatpush1.bf16.msra.mxu0 %v5817
        %5999 = vmatprep.subr.bf16.mxu0 0
        %6000 = vmatpush1.bf16.msra.mxu0 %v5818
        %6001 = vmatprep.subr.bf16.mxu0 0
        %6002 = vmatpush1.bf16.msra.mxu0 %v5819
        %6003 = vmatprep.subr.bf16.mxu0 0
        %6004 = vmatpush1.bf16.msra.mxu0 %v5820
        %6005 = vmatprep.subr.bf16.mxu0 0
        %6006 = vmatpush1.bf16.msra.mxu0 %v5821
        %6007 = vmatprep.mubr.bf16.mxu0 %v5345
        %6008 = vmatmul.mubr.bf16.gmra.mrb[0].mxu0 %v5344
        %v6009 = vpop.f32.mrb[0].mxu0
        %v6010 = vadd.f32 %v5969, %v6009
        %v6011 = vpop.f32.mrb[0].mxu0
        %v6012 = vpop.f32.mrb[0].mxu0
        %v6013 = vadd.f32 %v5972, %v6012
        %v6014 = vpop.f32.mrb[0].mxu0
        %6015 = vdwg.mxu0
        %6016 = vmatprep.subr.bf16.mxu0 0
        %6017 = vmatpush1.bf16.msra.mxu0 %v5822
        %6018 = vmatprep.subr.bf16.mxu0 0
        %6019 = vmatpush1.bf16.msra.mxu0 %v5823
        %6020 = vmatprep.subr.bf16.mxu0 0
        %6021 = vmatpush1.bf16.msra.mxu0 %v5824
        %6022 = vmatprep.subr.bf16.mxu0 0
        %6023 = vmatpush1.bf16.msra.mxu0 %v5825
        %6024 = vmatprep.subr.bf16.mxu0 0
        %6025 = vmatpush1.bf16.msra.mxu0 %v5826
        %6026 = vmatprep.subr.bf16.mxu0 0
        %6027 = vmatpush1.bf16.msra.mxu0 %v5827
        %6028 = vmatprep.subr.bf16.mxu0 0
        %6029 = vmatpush1.bf16.msra.mxu0 %v5828
        %6030 = vmatprep.subr.bf16.mxu0 0
        %6031 = vmatpush1.bf16.msra.mxu0 %v5829
        %6032 = vmatprep.subr.bf16.mxu0 0
        %6033 = vmatpush1.bf16.msra.mxu0 %v5830
        %6034 = vmatprep.subr.bf16.mxu0 0
        %6035 = vmatpush1.bf16.msra.mxu0 %v5831
        %6036 = vmatprep.subr.bf16.mxu0 0
        %6037 = vmatpush1.bf16.msra.mxu0 %v5832
        %6038 = vmatprep.subr.bf16.mxu0 0
        %6039 = vmatpush1.bf16.msra.mxu0 %v5833
        %6040 = vmatprep.subr.bf16.mxu0 0
        %6041 = vmatpush1.bf16.msra.mxu0 %v5834
        %6042 = vmatprep.subr.bf16.mxu0 0
        %6043 = vmatpush1.bf16.msra.mxu0 %v5835
        %6044 = vmatprep.subr.bf16.mxu0 0
        %6045 = vmatpush1.bf16.msra.mxu0 %v5836
        %6046 = vmatprep.subr.bf16.mxu0 0
        %6047 = vmatpush1.bf16.msra.mxu0 %v5837
        %6048 = vmatprep.mubr.bf16.mxu0 %v5347
        %6049 = vmatmul.mubr.bf16.gmra.mrb[0].mxu0 %v5346
        %v6050 = vpop.f32.mrb[0].mxu0
        %v6051 = vadd.f32 %v6010, %v6050
        %v6052 = vpop.f32.mrb[0].mxu0
        %v6053 = vpop.f32.mrb[0].mxu0
        %v6054 = vadd.f32 %v6013, %v6053
        %v6055 = vpop.f32.mrb[0].mxu0
        %6056 = vdwg.mxu0
        %6057 = vmatprep.subr.bf16.mxu0 0
        %6058 = vmatpush1.bf16.msra.mxu0 %v5838
        %6059 = vmatprep.subr.bf16.mxu0 0
        %6060 = vmatpush1.bf16.msra.mxu0 %v5839
        %6061 = vmatprep.subr.bf16.mxu0 0
        %6062 = vmatpush1.bf16.msra.mxu0 %v5840
        %6063 = vmatprep.subr.bf16.mxu0 0
        %6064 = vmatpush1.bf16.msra.mxu0 %v5841
        %6065 = vmatprep.subr.bf16.mxu0 0
        %6066 = vmatpush1.bf16.msra.mxu0 %v5842
        %6067 = vmatprep.subr.bf16.mxu0 0
        %6068 = vmatpush1.bf16.msra.mxu0 %v5843
        %6069 = vmatprep.subr.bf16.mxu0 0
        %6070 = vmatpush1.bf16.msra.mxu0 %v5844
        %6071 = vmatprep.subr.bf16.mxu0 0
        %6072 = vmatpush1.bf16.msra.mxu0 %v5845
        %6073 = vmatprep.subr.bf16.mxu0 0
        %6074 = vmatpush1.bf16.msra.mxu0 %v5846
        %6075 = vmatprep.subr.bf16.mxu0 0
        %6076 = vmatpush1.bf16.msra.mxu0 %v5847
        %6077 = vmatprep.subr.bf16.mxu0 0
        %6078 = vmatpush1.bf16.msra.mxu0 %v5848
        %6079 = vmatprep.subr.bf16.mxu0 0
        %6080 = vmatpush1.bf16.msra.mxu0 %v5849
        %6081 = vmatprep.subr.bf16.mxu0 0
        %6082 = vmatpush1.bf16.msra.mxu0 %v5850
        %6083 = vmatprep.subr.bf16.mxu0 0
        %6084 = vmatpush1.bf16.msra.mxu0 %v5851
        %6085 = vmatprep.subr.bf16.mxu0 0
        %6086 = vmatpush1.bf16.msra.mxu0 %v5852
        %6087 = vmatprep.subr.bf16.mxu0 0
        %6088 = vmatpush1.bf16.msra.mxu0 %v5853
        %6089 = vmatprep.mubr.bf16.mxu0 %v5349
        %6090 = vmatmul.mubr.bf16.gmra.mrb[0].mxu0 %v5348
        %v6091 = vpop.f32.mrb[0].mxu0
        %v6092 = vadd.f32 %v6051, %v6091
        %v6093 = vpop.f32.mrb[0].mxu0
        %v6094 = vpop.f32.mrb[0].mxu0
        %v6095 = vadd.f32 %v6054, %v6094
        %v6096 = vpop.f32.mrb[0].mxu0
        %6097 = vdwg.mxu0
        %6098 = vmatprep.subr.bf16.mxu0 0
        %6099 = vmatpush1.bf16.msra.mxu0 %v5854
        %6100 = vmatprep.subr.bf16.mxu0 0
        %6101 = vmatpush1.bf16.msra.mxu0 %v5855
        %6102 = vmatprep.subr.bf16.mxu0 0
        %6103 = vmatpush1.bf16.msra.mxu0 %v5856
        %6104 = vmatprep.subr.bf16.mxu0 0
        %6105 = vmatpush1.bf16.msra.mxu0 %v5857
        %6106 = vmatprep.subr.bf16.mxu0 0
        %6107 = vmatpush1.bf16.msra.mxu0 %v5858
        %6108 = vmatprep.subr.bf16.mxu0 0
        %6109 = vmatpush1.bf16.msra.mxu0 %v5859
        %6110 = vmatprep.subr.bf16.mxu0 0
        %6111 = vmatpush1.bf16.msra.mxu0 %v5860
        %6112 = vmatprep.subr.bf16.mxu0 0
        %6113 = vmatpush1.bf16.msra.mxu0 %v5861
        %6114 = vmatprep.subr.bf16.mxu0 0
        %6115 = vmatpush1.bf16.msra.mxu0 0
        %6116 = vmatprep.subr.bf16.mxu0 0
        %6117 = vmatpush1.bf16.msra.mxu0 0
        %6118 = vmatprep.subr.bf16.mxu0 0
        %6119 = vmatpush1.bf16.msra.mxu0 0
        %6120 = vmatprep.subr.bf16.mxu0 0
        %6121 = vmatpush1.bf16.msra.mxu0 0
        %6122 = vmatprep.subr.bf16.mxu0 0
        %6123 = vmatpush1.bf16.msra.mxu0 0
        %6124 = vmatprep.subr.bf16.mxu0 0
        %6125 = vmatpush1.bf16.msra.mxu0 0
        %6126 = vmatprep.subr.bf16.mxu0 0
        %6127 = vmatpush1.bf16.msra.mxu0 0
        %6128 = vmatprep.subr.bf16.mxu0 0
        %6129 = vmatpush1.bf16.msra.mxu0 0
        %6130 = vmatprep.mubr.bf16.mxu0 0
        %6131 = vmatmul.mubr.bf16.gmra.mrb[0].mxu0 %v5350
        %v6132 = vpop.f32.mrb[0].mxu0
        %v6133 = vadd.f32 %v6092, %v6132
        %v6134 = vpop.f32.mrb[0].mxu0
        %v6135 = vpop.f32.mrb[0].mxu0
        %v6136 = vadd.f32 %v6095, %v6135
        %v6137 = vpop.f32.mrb[0].mxu0
        %6138 = vdwg.mxu0
        %v6139 = vmax.f32 %v6133, 0.0
        %v6140 = vmax.f32 %v6136, 0.0
        %v6141 = vmax.f32 %v6139, %v6140
        %v6142 = vld [vmem:[%s5] sm:$0xff]
        %v6143 = vld [vmem:[%s5 + $0x8] sm:$0xff]
        %v6144 = vld [vmem:[%s5 + $0x10] sm:$0xff]
        %v6145 = vld [vmem:[%s5 + $0x18] sm:$0xff]
        %v6146 = vld [vmem:[%s5 + $0x20] sm:$0xff]
        %v6147 = vld [vmem:[%s5 + $0x28] sm:$0xff]
        %v6148 = vld [vmem:[%s5 + $0x30] sm:$0xff]
        %v6149 = vld [vmem:[%s5 + $0x38] sm:$0xff]
        %v6150 = vld [vmem:[%s5 + $0x40] sm:$0xff]
        %v6151 = vld [vmem:[%s5 + $0x48] sm:$0xff]
        %v6152 = vld [vmem:[%s5 + $0x50] sm:$0xff]
        %v6153 = vld [vmem:[%s5 + $0x58] sm:$0xff]
        %v6154 = vld [vmem:[%s5 + $0x60] sm:$0xff]
        %v6155 = vld [vmem:[%s5 + $0x68] sm:$0xff]
        %v6156 = vld [vmem:[%s5 + $0x70] sm:$0xff]
        %v6157 = vld [vmem:[%s5 + $0x78] sm:$0xff]
        %v6158 = vld [vmem:[#allocation6] sm:$0x1]
        %v6160 = vlaneseq
        %v6161 = vshrl.u32 %v6160, 7
        %v6162 = vsub.s32 0, %v6161
        %v6163 = vrot.slane %v6158, %v6162
        %6164 = vset.pattern.permute.xlu0 0
        %6165 = vperm.xlu0 %6164, %v6163
        %v6166 = vpop.permute.xlu0 %6165
        %6168 = vmatprep.subr.mxu0 0.0
        %6169 = vmatpush1.msra.mxu0 %v6142
        %6170 = vmatprep.subr.mxu0 0.0
        %6171 = vmatpush1.msra.mxu0 %v6143
        %6172 = vmatprep.subr.mxu0 0.0
        %6173 = vmatpush1.msra.mxu0 %v6144
        %6174 = vmatprep.subr.mxu0 0.0
        %6175 = vmatpush1.msra.mxu0 %v6145
        %6176 = vmatprep.subr.mxu0 0.0
        %6177 = vmatpush1.msra.mxu0 %v6146
        %6178 = vmatprep.subr.mxu0 0.0
        %6179 = vmatpush1.msra.mxu0 %v6147
        %6180 = vmatprep.subr.mxu0 0.0
        %6181 = vmatpush1.msra.mxu0 %v6148
        %6182 = vmatprep.subr.mxu0 0.0
        %6183 = vmatpush1.msra.mxu0 %v6149
        %6184 = vmatprep.subr.mxu0 0.0
        %6185 = vmatpush1.msra.mxu0 %v6150
        %6186 = vmatprep.subr.mxu0 0.0
        %6187 = vmatpush1.msra.mxu0 %v6151
        %6188 = vmatprep.subr.mxu0 0.0
        %6189 = vmatpush1.msra.mxu0 %v6152
        %6190 = vmatprep.subr.mxu0 0.0
        %6191 = vmatpush1.msra.mxu0 %v6153
        %6192 = vmatprep.subr.mxu0 0.0
        %6193 = vmatpush1.msra.mxu0 %v6154
        %6194 = vmatprep.subr.mxu0 0.0
        %6195 = vmatpush1.msra.mxu0 %v6155
        %6196 = vmatprep.subr.mxu0 0.0
        %6197 = vmatpush1.msra.mxu0 %v6156
        %6198 = vmatprep.subr.mxu0 0.0
        %6199 = vmatpush1.msra.mxu0 %v6157
        %6200 = vmatprep.subr.mxu0 0.0
        %6201 = vmatpush1.msra.mxu0 0.0
        %6202 = vmatprep.subr.mxu0 0.0
        %6203 = vmatpush1.msra.mxu0 0.0
        %6204 = vmatprep.subr.mxu0 0.0
        %6205 = vmatpush1.msra.mxu0 0.0
        %6206 = vmatprep.subr.mxu0 0.0
        %6207 = vmatpush1.msra.mxu0 0.0
        %6208 = vmatprep.subr.mxu0 0.0
        %6209 = vmatpush1.msra.mxu0 0.0
        %6210 = vmatprep.subr.mxu0 0.0
        %6211 = vmatpush1.msra.mxu0 0.0
        %6212 = vmatprep.subr.mxu0 0.0
        %6213 = vmatpush1.msra.mxu0 0.0
        %6214 = vmatprep.subr.mxu0 0.0
        %6215 = vmatpush1.msra.mxu0 0.0
        %6216 = vmatprep.subr.mxu0 0.0
        %6217 = vmatpush1.msra.mxu0 0.0
        %6218 = vmatprep.subr.mxu0 0.0
        %6219 = vmatpush1.msra.mxu0 0.0
        %6220 = vmatprep.subr.mxu0 0.0
        %6221 = vmatpush1.msra.mxu0 0.0
        %6222 = vmatprep.subr.mxu0 0.0
        %6223 = vmatpush1.msra.mxu0 0.0
        %6224 = vmatprep.subr.mxu0 0.0
        %6225 = vmatpush1.msra.mxu0 0.0
        %6226 = vmatprep.subr.mxu0 0.0
        %6227 = vmatpush1.msra.mxu0 0.0
        %6228 = vmatprep.subr.mxu0 0.0
        %6229 = vmatpush1.msra.mxu0 0.0
        %6230 = vmatprep.subr.mxu0 0.0
        %6231 = vmatpush1.msra.mxu0 0.0
        %6232 = vmatprep.mubr.f32.mxu0 0.0
        %6233 = vmatmul.mubr.f32.gmra.mrb[0].mxu0 %v6141
        %v6234 = vpop.f32.mrb[0].mxu0
        %v6235 = vadd.f32 %v6166, %v6234
        %v6236 = vpop.f32.mrb[0].mxu0
        %6237 = vdwg.mxu0
        %v6238 = vsub.f32 %v6235, %v6235
        %v6239 = vadd.f32 %v6238, 1.0
        %vm6240 = vcmask 64512
        %6241 = vst.msk [vmem:[%s328] sm:$0xff] %vm6240, %v6239
        %s6242 = sand.u32 %s186, 1
        %s6243 = scalar_lea.sflag [#allocation9], %s6242
        %s6244 = sand.u32 %s186, 1
        %s6245 = smul.addr %s6244, 8
        %s6246 = scalar_lea.vmem [#allocation15], %s6245
        // Predicated region
        $region65: #{softmax_spatial_detector.1} parent=47 // pred_check
          %p6247 = pneg %p196
        $region66: #{softmax_spatial_detector.1} parent=47 // pred_check_branch
          %6249 = sbr.rel (%p6247) target = $region68
        $region67: #{softmax_spatial_detector.1} parent=47 // pred_region
          %s6251 = ssub.s32 128, 128
          %6252 = vsyncadd %s6243, %s6251
          %s6253 = smul.addr %s26, 128
          %s6254 = scalar_lea.hbm %s7, %s6253
          %s6256 = sshll.u32 %s6246, 4
          %s6257 = int_to_ptr.vmem [resolvable:$true] %s6256
          %6259 = dma.vmem_to_hbm [thread:$0]  %s6257, 128, %s6254, %s6243
        $region68: #{softmax_spatial_detector.1} parent=47 // pred_fallthru
          _
      $region48: #{softmax_spatial_detector.1} parent=5 // pred_fallthru
        _
      %p6260 = scmp.le.s32.totalorder 2, %s21
      // Predicated region
      $region69: #{softmax_spatial_detector.1} parent=5 // pred_check
        %p6261 = pneg %p6260
      $region70: #{softmax_spatial_detector.1} parent=5 // pred_check_branch
        %6263 = sbr.rel (%p6261) target = $region72
      $region71: #{softmax_spatial_detector.1} parent=5 // pred_region
        %s6264 = ssub.s32 %s21, 2
        // Predicated region
        $region73: #{softmax_spatial_detector.1} parent=71 // pred_check
          %p6265 = pneg %p202
        $region74: #{softmax_spatial_detector.1} parent=71 // pred_check_branch
          %6267 = sbr.rel (%p6265) target = $region76
        $region75: #{softmax_spatial_detector.1} parent=71 // pred_region
          %s6268 = sand.u32 %s187, 1
          %s6269 = scalar_lea.sflag [#allocation9], %s6268
          %s6270 = sand.u32 %s187, 1
          %s6271 = smul.addr %s6270, 8
          %s6272 = scalar_lea.vmem [#allocation15], %s6271
          %6273 = dma.done %s6269, 128
        $region76: #{softmax_spatial_detector.1} parent=71 // pred_fallthru
          _
      $region72: #{softmax_spatial_detector.1} parent=5 // pred_fallthru
        _
    $region6: #{softmax_spatial_detector.1} parent=1 // loop_footer
      %s25 = sadd.s32 1, %s21
    $region7: #{softmax_spatial_detector.1} parent=1 // loop_footer_branch
      %20 = sbr.rel target = $region3
    $region8: #{softmax_spatial_detector.1} parent=1 // loop_exit
      _
    %6274 = vsyncpa [#allocation8], 1
    %s6275 = scalar_lea.sflag [#allocation8], 1
    %6276 = vsyncpa %s6275, 1
    %6277 = vsyncpa [#allocation11], 1
    %6278 = vsyncpa [#allocation14], 1
    %6279 = vsyncpa [#allocation9], 1
    %s6280 = scalar_lea.sflag [#allocation9], 1
    %6281 = vsyncpa %s6280, 1

</llo_original>
